<compile_context>
chip_gen: v6e
topology: v6e:2x2x1
jax: 0.10.0
libtpu: 0.0.40
codegen_flags: <defaults>
</compile_context>

<pallas_src>
import functools

import jax
import jax.numpy as jnp
import numpy as np
from jax.experimental import pallas as pl
from jax.experimental.pallas import tpu as pltpu


def _round_up(x, m):
    return (x + m - 1) // m * m


def relg_kernel(h_ref, e_ref, src_ref, dstc_ref, dstr_ref, coeff_ref, indeg_ref,
                wall_ref, wc_ref, ba_ref, ebias_ref,
                hscale_ref, hshift_ref, escale_ref, eshift_ref,
                h_out_ref, e_out_ref,
                nodefeat_ref, acc_ref,
                *, residual, mask_zero_indeg):
    f32 = jnp.float32
    bf16 = jnp.bfloat16
    i = pl.program_id(0)
    n_pad = h_ref.shape[0]
    t_e = e_ref.shape[0]
    d_out = e_out_ref.shape[1]
    num_bases = coeff_ref.shape[0]
    gather_w = (1 + num_bases) * d_out      # [Dh | Rh_0 .. Rh_{nb-1}]
    eh_lo = gather_w                         # Eh slice
    ah_lo = gather_w + d_out                 # Ah slice

    # ---- one-time fused node-level projection (persists in VMEM across edge tiles) --
    @pl.when(i == 0)
    def _init():
        nodefeat_ref[...] = jnp.dot(h_ref[...], wall_ref[...],
                                    preferred_element_type=f32).astype(bf16)
        acc_ref[...] = jnp.zeros_like(acc_ref)

    # ---- tile-local incidence one-hots (bool -> bf16 cast, no O(E*N) HBM traffic) ---
    src_ids = src_ref[...]            # [t_e, 1] int32, -1 on padded edges -> zero row
    dst_ids = dstc_ref[...]           # [t_e, 1] int32
    dst_ids_row = dstr_ref[...]       # [1, t_e] int32
    iota_en = jax.lax.broadcasted_iota(jnp.int32, (t_e, n_pad), 1)
    iota_ne = jax.lax.broadcasted_iota(jnp.int32, (n_pad, t_e), 0)
    src_oh = (iota_en == src_ids).astype(bf16)        # [t_e, n_pad]
    dst_oh = (iota_en == dst_ids).astype(bf16)        # [t_e, n_pad]
    # NOTE: could be dropped with a trans_a dot_general for the scatter matmul; kept
    # explicit to guarantee an MXU (not XLU-transpose) lowering.
    dst_oh_t = (iota_ne == dst_ids_row).astype(bf16)  # [n_pad, t_e]

    # ---- per-edge gathers (bf16 MXU, f32 accumulation) ------------------------------
    src_g = jnp.dot(src_oh, nodefeat_ref[:, 0:gather_w], preferred_element_type=f32)
    eh_dst = jnp.dot(dst_oh, nodefeat_ref[:, eh_lo:eh_lo + d_out],
                     preferred_element_type=f32)

    # e_ij = C(e) + D(h)[src] + E(h)[dst]   (bc + bd + be folded into one bias add)
    ce = jnp.dot(e_ref[...].astype(bf16), wc_ref[...], preferred_element_type=f32)
    e_ij = ce + src_g[:, 0:d_out] + eh_dst + ebias_ref[...]

    # relational message: combine gathered node-level basis projections per edge.
    # TODO(synk): for num_bases >= ~3 split the gather into per-basis slices and fold
    #             the combine in immediately to bound vreg/VMEM-transient pressure.
    r_ij = coeff_ref[0] * src_g[:, d_out:2 * d_out]
    for b in range(1, num_bases):
        r_ij = r_ij + coeff_ref[b] * src_g[:, (1 + b) * d_out:(2 + b) * d_out]

    sigma = jax.nn.sigmoid(e_ij)

    # ---- fused segment sum: one [t_e, 2*op] scatter matmul for num and den ----------
    msg = jnp.concatenate([(sigma * r_ij).astype(bf16), sigma.astype(bf16)], axis=1)
    acc_ref[...] += jnp.dot(dst_oh_t, msg, preferred_element_type=f32)

    # ---- edge output epilogue (graph_norm + eval BN folded into scale/shift) --------
    e_new = jnp.maximum(e_ij * escale_ref[...] + eshift_ref[...], 0.0)
    if residual:
        e_new = e_ref[...] + e_new
    e_out_ref[...] = e_new

    # ---- node output: finalize once all edge tiles have been accumulated ------------
    @pl.when(i == pl.num_programs(0) - 1)
    def _finalize():
        ah = nodefeat_ref[:, ah_lo:ah_lo + d_out].astype(f32) + ba_ref[...]
        num = acc_ref[:, 0:d_out]
        den = acc_ref[:, d_out:2 * d_out]
        h_agg = ah + num * pl.reciprocal(den + 1e-6, approx=True)
        if mask_zero_indeg:
            # nodes with no incoming edge keep their input features (DGL UDF semantics);
            # only valid when in_dim == out_dim (gated on the logical dims).
            h_agg = jnp.where(indeg_ref[...] > 0.0, h_agg, h_ref[...].astype(f32))
        h_new = jnp.maximum(h_agg * hscale_ref[...] + hshift_ref[...], 0.0)
        if residual:
            h_new = h_ref[...].astype(f32) + h_new
        h_out_ref[...] = h_new


def relg_forward(h, e, src, dst, etype, params, *, num_rels, num_bases,
                 graph_norm=True, batch_norm=True, residual=True, tile_e=256):
    """Pad to TPU-friendly shapes, fold static epilogue constants, run the kernel."""
    f32 = jnp.float32
    bf16 = jnp.bfloat16
    N, d_in = h.shape
    E = e.shape[0]
    d_out = params["wa"].shape[1]
    if d_in != d_out:
        residual = False  # mirrors the PyTorch module
    mask_zero_indeg = (d_in == d_out)   # zero-in-degree fallback only defined then

    dp = _round_up(d_in, 128)
    op = _round_up(d_out, 128)
    np_ = _round_up(N, 128)
    ep = _round_up(E, tile_e)
    n_tiles = ep // tile_e
    pad_e = ep - E

    def pad2(x, r, c, dtype=f32):
        x = jnp.asarray(x, f32)
        return jnp.pad(x, ((0, r - x.shape[0]), (0, c - x.shape[1]))).astype(dtype)

    h_p = pad2(h, np_, dp, bf16)        # bf16 residents: halves VMEM + full MXU rate
    e_p = pad2(e, ep, dp)               # f32 stream for residual accuracy; bf16 in-kernel

    src_i = jnp.pad(src.astype(jnp.int32), (0, pad_e), constant_values=-1)
    dst_i = jnp.pad(dst.astype(jnp.int32), (0, pad_e), constant_values=-1)
    src_col = src_i.reshape(ep, 1)
    dst_col = dst_i.reshape(ep, 1)
    dst_row = dst_i.reshape(1, ep)

    # relation coefficients: coeff[e, b] such that W_rel[etype[e]] = sum_b coeff*bases[b]
    if num_bases < num_rels:
        coeff = jax.nn.one_hot(etype, num_rels, dtype=f32) @ jnp.asarray(params["w_comp"], f32)
    else:
        coeff = jax.nn.one_hot(etype, num_bases, dtype=f32)
    coeff_p = jnp.pad(coeff, ((0, pad_e), (0, 0)))            # [ep, nb]
    coeff_t = coeff_p.T.reshape(num_bases, ep, 1)             # lane-0 per-basis layout

    # in-degree: static graph structure, hoisted out of the kernel
    indeg = jax.ops.segment_sum(jnp.ones((E,), f32), dst, num_segments=N)
    indeg_p = jnp.pad(indeg, (0, np_ - N)).reshape(np_, 1)

    wd_p = pad2(params["wd"], dp, op, bf16)
    we_p = pad2(params["we"], dp, op, bf16)
    wa_p = pad2(params["wa"], dp, op, bf16)
    wc_p = pad2(params["wc"], dp, op, bf16)
    bases_p = jnp.pad(jnp.asarray(params["bases"], f32),
                      ((0, 0), (0, dp - d_in), (0, op - d_out))).astype(bf16)
    # fused projection weight: one wide bf16 matmul -> [Dh | Rh_0..Rh_{nb-1} | Eh | Ah]
    w_all = jnp.concatenate([wd_p] + [bases_p[b] for b in range(num_bases)]
                            + [we_p, wa_p], axis=1)           # [dp, (3+nb)*op]

    ba_p = pad2(params["ba"], 1, op)
    ebias_p = pad2(params["bc"] + params["bd"] + params["be"], 1, op)

    # fold graph_norm scalar and eval-mode BN into one per-channel scale & shift
    ones = jnp.ones((1, d_out), f32)
    zeros = jnp.zeros((1, d_out), f32)
    hscale = ones * ((1.0 / float(N) ** 0.5) if graph_norm else 1.0)
    escale = ones * ((1.0 / float(E) ** 0.5) if graph_norm else 1.0)
    hshift, eshift = zeros, zeros
    if batch_norm:
        hscale = hscale * params["bnh_scale"]
        escale = escale * params["bne_scale"]
        hshift = jnp.asarray(params["bnh_shift"], f32)
        eshift = jnp.asarray(params["bne_shift"], f32)
    hscale_p, hshift_p = pad2(hscale, 1, op), pad2(hshift, 1, op)
    escale_p, eshift_p = pad2(escale, 1, op), pad2(eshift, 1, op)

    kernel = functools.partial(relg_kernel, residual=residual,
                               mask_zero_indeg=mask_zero_indeg)

    grid_spec = pltpu.PrefetchScalarGridSpec(
        num_scalar_prefetch=0,
        grid=(n_tiles,),
        in_specs=[
            pl.BlockSpec((np_, dp), lambda i: (0, 0)),                    # h (resident, bf16)
            pl.BlockSpec((tile_e, dp), lambda i: (i, 0)),                 # e tile (f32)
            pl.BlockSpec((tile_e, 1), lambda i: (i, 0)),                  # src ids col
            pl.BlockSpec((tile_e, 1), lambda i: (i, 0)),                  # dst ids col
            pl.BlockSpec((1, tile_e), lambda i: (0, i)),                  # dst ids row
            pl.BlockSpec((num_bases, tile_e, 1), lambda i: (0, i, 0)),    # coeff
            pl.BlockSpec((np_, 1), lambda i: (0, 0)),                     # in-degree
            pl.BlockSpec((dp, (3 + num_bases) * op), lambda i: (0, 0)),   # fused W_all
            pl.BlockSpec((dp, op), lambda i: (0, 0)),                     # wc
            pl.BlockSpec((1, op), lambda i: (0, 0)),                      # ba
            pl.BlockSpec((1, op), lambda i: (0, 0)),                      # ebias
            pl.BlockSpec((1, op), lambda i: (0, 0)),                      # hscale
            pl.BlockSpec((1, op), lambda i: (0, 0)),                      # hshift
            pl.BlockSpec((1, op), lambda i: (0, 0)),                      # escale
            pl.BlockSpec((1, op), lambda i: (0, 0)),                      # eshift
        ],
        out_specs=(
            pl.BlockSpec((np_, op), lambda i: (0, 0)),                    # h_out (acc)
            pl.BlockSpec((tile_e, op), lambda i: (i, 0)),                 # e_out tile
        ),
        scratch_shapes=[
            pltpu.VMEM((np_, (3 + num_bases) * op), bf16),  # [Dh | Rh_b | Eh | Ah]
            pltpu.VMEM((np_, 2 * op), f32),                 # fused [num | den] acc
        ],
    )

    h_out_p, e_out_p = pl.pallas_call(
        kernel,
        grid_spec=grid_spec,
        out_shape=(jax.ShapeDtypeStruct((np_, op), f32),
                   jax.ShapeDtypeStruct((ep, op), f32)),
        compiler_params=pltpu.CompilerParams(
            # edge-tile axis carries the num/den accumulator -> reduction ("arbitrary").
            dimension_semantics=("arbitrary",),
            # <= ~40 MiB keeps headroom on v7x's 64 MiB part; plenty on v5e/v6e.
            vmem_limit_bytes=40 * 1024 * 1024),
    )(h_p, e_p, src_col, dst_col, dst_row, coeff_t, indeg_p,
      w_all, wc_p, ba_p, ebias_p, hscale_p, hshift_p, escale_p, eshift_p)

    return h_out_p[:N, :d_out], e_out_p[:E, :d_out]


def relg_reference(h, e, src, dst, etype, p, *, graph_norm, batch_norm, residual):
    """Pure-JAX reference mirroring the PyTorch forward (eval mode)."""
    N = h.shape[0]
    E = e.shape[0]
    Ah = h @ p["wa"] + p["ba"]
    Dh = h @ p["wd"] + p["bd"]
    Eh = h @ p["we"] + p["be"]
    Ce = e @ p["wc"] + p["bc"]
    h_src = h[src]
    e_ij = Ce + Dh[src] + Eh[dst]
    r_ij = jnp.einsum("ed,edo->eo", h_src, p["wrel"][etype])
    sigma = jax.nn.sigmoid(e_ij)
    num = jax.ops.segment_sum(sigma * r_ij, dst, N)
    den = jax.ops.segment_sum(sigma, dst, N)
    h_agg = Ah + num / (den + 1e-6)
    indeg = jax.ops.segment_sum(jnp.ones((E,), jnp.float32), dst, N)
    h_new = jnp.where(indeg[:, None] > 0, h_agg, h)
    e_new = e_ij
    if graph_norm:
        h_new = h_new * (1.0 / (N ** 0.5))
        e_new = e_new * (1.0 / (E ** 0.5))
    if batch_norm:
        h_new = h_new * p["bnh_scale"] + p["bnh_shift"]
        e_new = e_new * p["bne_scale"] + p["bne_shift"]
    h_new = jnp.maximum(h_new, 0.0)
    e_new = jnp.maximum(e_new, 0.0)
    if residual:
        h_new = h + h_new
        e_new = e + e_new
    return h_new, e_new


def xavier_uniform(key, shape, gain):
    if len(shape) == 3:   # matches torch fan calc for [B, I, O]
        fan_in, fan_out = shape[1] * shape[2], shape[0] * shape[2]
    else:
        fan_in, fan_out = shape[0], shape[1]
    bound = gain * (6.0 / (fan_in + fan_out)) ** 0.5
    return jax.random.uniform(key, shape, jnp.float32, -bound, bound)


if __name__ == "__main__":
    # in_dim == out_dim so residual is active; E spans multiple edge tiles (tile_e=256)
    N, E, Din, Dout = 64, 300, 32, 32
    num_rels, num_bases = 5, 2
    gain = float(np.sqrt(2.0))  # calculate_gain('relu')

    key = jax.random.PRNGKey(0)
    ks = jax.random.split(key, 20)

    params = {
        # Linear weights stored pre-transposed as [in, out]; biases as [1, out]
        "wa": xavier_uniform(ks[0], (Din, Dout), 1.0), "ba": 0.1 * jax.random.normal(ks[1], (1, Dout)),
        "wc": xavier_uniform(ks[2], (Din, Dout), 1.0), "bc": 0.1 * jax.random.normal(ks[3], (1, Dout)),
        "wd": xavier_uniform(ks[4], (Din, Dout), 1.0), "bd": 0.1 * jax.random.normal(ks[5], (1, Dout)),
        "we": xavier_uniform(ks[6], (Din, Dout), 1.0), "be": 0.1 * jax.random.normal(ks[7], (1, Dout)),
    }
    bases = xavier_uniform(ks[8], (num_bases, Din, Dout), gain)
    w_comp = xavier_uniform(ks[9], (num_rels, num_bases), gain)
    params["bases"] = bases
    params["w_comp"] = w_comp
    # eval-mode BatchNorm1d (gamma=1, beta=0, running_mean=0, running_var=1, eps=1e-5)
    bn_scale = jnp.full((1, Dout), 1.0 / np.sqrt(1.0 + 1e-5), jnp.float32)
    bn_shift = jnp.zeros((1, Dout), jnp.float32)
    params["bnh_scale"], params["bnh_shift"] = bn_scale, bn_shift
    params["bne_scale"], params["bne_shift"] = bn_scale, bn_shift

    # graph: ring edges guarantee in-degree >= 1 everywhere, plus random edges
    src = jnp.concatenate([jnp.arange(N, dtype=jnp.int32),
                           jax.random.randint(ks[10], (E - N,), 0, N, jnp.int32)])
    dst = jnp.concatenate([(jnp.arange(N, dtype=jnp.int32) + 1) % N,
                           jax.random.randint(ks[11], (E - N,), 0, N, jnp.int32)])
    etype = jax.random.randint(ks[12], (E,), 0, num_rels, jnp.int32)

    h = jax.random.normal(ks[13], (N, Din), jnp.float32)
    e = jax.random.normal(ks[14], (E, Din), jnp.float32)

    h_out, e_out = relg_forward(h, e, src, dst, etype, params,
                                num_rels=num_rels, num_bases=num_bases,
                                graph_norm=True, batch_norm=True, residual=True,
                                tile_e=256)
    jax.block_until_ready((h_out, e_out))

    ref_params = dict(params)
    ref_params["wrel"] = (w_comp @ bases.reshape(num_bases, Din * Dout)).reshape(
        num_rels, Din, Dout)
    h_ref, e_ref = relg_reference(h, e, src, dst, etype, ref_params,
                                  graph_norm=True, batch_norm=True, residual=True)
    # bf16 operands throughout the MXU path (f32 accumulation) -> loosened tolerance
    np.testing.assert_allclose(np.asarray(h_out), np.asarray(h_ref), rtol=3e-2, atol=3e-2)
    np.testing.assert_allclose(np.asarray(e_out), np.asarray(e_ref), rtol=3e-2, atol=3e-2)

    print("KERNEL_OK")
</pallas_src>

<mosaic_0001>
module attributes {stable_mosaic.version = 11 : i64} {
  func.func @relg_kernel(%arg0: i32, %arg1: memref<128x128xbf16, #tpu.memory_space<vmem>>, %arg2: memref<256x128xf32, #tpu.memory_space<vmem>>, %arg3: memref<256x1xi32, #tpu.memory_space<vmem>>, %arg4: memref<256x1xi32, #tpu.memory_space<vmem>>, %arg5: memref<1x256xi32, #tpu.memory_space<vmem>>, %arg6: memref<2x256x1xf32, #tpu.memory_space<vmem>>, %arg7: memref<128x1xf32, #tpu.memory_space<vmem>>, %arg8: memref<128x640xbf16, #tpu.memory_space<vmem>>, %arg9: memref<128x128xbf16, #tpu.memory_space<vmem>>, %arg10: memref<1x128xf32, #tpu.memory_space<vmem>>, %arg11: memref<1x128xf32, #tpu.memory_space<vmem>>, %arg12: memref<1x128xf32, #tpu.memory_space<vmem>>, %arg13: memref<1x128xf32, #tpu.memory_space<vmem>>, %arg14: memref<1x128xf32, #tpu.memory_space<vmem>>, %arg15: memref<1x128xf32, #tpu.memory_space<vmem>>, %arg16: memref<128x128xf32, #tpu.memory_space<vmem>>, %arg17: memref<256x128xf32, #tpu.memory_space<vmem>>, %arg18: memref<128x640xbf16, #tpu.memory_space<vmem>>, %arg19: memref<128x256xf32, #tpu.memory_space<vmem>>) attributes {dimension_semantics = [#tpu.dimension_semantics<arbitrary>], iteration_bounds = array<i64: 2>, scalar_prefetch = 0 : i64, scratch_operands = 2 : i64, tpu.core_type = #tpu.core_type<tc>, window_params = [{pipeline_mode = #tpu.pipeline_mode<synchronous>, transform_indices = @transform_0, window_bounds = array<i64: 128, 128>}, {transform_indices = @transform_1, window_bounds = array<i64: 256, 128>}, {transform_indices = @transform_2, window_bounds = array<i64: 256, 1>}, {transform_indices = @transform_3, window_bounds = array<i64: 256, 1>}, {transform_indices = @transform_4, window_bounds = array<i64: 1, 256>}, {transform_indices = @transform_5, window_bounds = array<i64: 2, 256, 1>}, {pipeline_mode = #tpu.pipeline_mode<synchronous>, transform_indices = @transform_6, window_bounds = array<i64: 128, 1>}, {pipeline_mode = #tpu.pipeline_mode<synchronous>, transform_indices = @transform_7, window_bounds = array<i64: 128, 640>}, {pipeline_mode = #tpu.pipeline_mode<synchronous>, transform_indices = @transform_8, window_bounds = array<i64: 128, 128>}, {pipeline_mode = #tpu.pipeline_mode<synchronous>, transform_indices = @transform_9, window_bounds = array<i64: 1, 128>}, {pipeline_mode = #tpu.pipeline_mode<synchronous>, transform_indices = @transform_10, window_bounds = array<i64: 1, 128>}, {pipeline_mode = #tpu.pipeline_mode<synchronous>, transform_indices = @transform_11, window_bounds = array<i64: 1, 128>}, {pipeline_mode = #tpu.pipeline_mode<synchronous>, transform_indices = @transform_12, window_bounds = array<i64: 1, 128>}, {pipeline_mode = #tpu.pipeline_mode<synchronous>, transform_indices = @transform_13, window_bounds = array<i64: 1, 128>}, {pipeline_mode = #tpu.pipeline_mode<synchronous>, transform_indices = @transform_14, window_bounds = array<i64: 1, 128>}, {pipeline_mode = #tpu.pipeline_mode<synchronous>, transform_indices = @transform_15, window_bounds = array<i64: 128, 128>}, {transform_indices = @transform_16, window_bounds = array<i64: 256, 128>}]} {
    %c0_i32 = arith.constant 0 : i32
    %0 = arith.cmpi eq, %arg0, %c0_i32 : i32
    %1 = arith.extui %0 : i1 to i32
    %c0_i32_0 = arith.constant 0 : i32
    %2 = arith.cmpi ne, %1, %c0_i32_0 : i32
    scf.if %2 {
      %c0_38 = arith.constant 0 : index
      %c0_39 = arith.constant 0 : index
      %75 = vector.load %arg1[%c0_38, %c0_39] : memref<128x128xbf16, #tpu.memory_space<vmem>>, vector<128x128xbf16>
      %c0_40 = arith.constant 0 : index
      %c0_41 = arith.constant 0 : index
      %76 = vector.load %arg8[%c0_40, %c0_41] : memref<128x640xbf16, #tpu.memory_space<vmem>>, vector<128x640xbf16>
      %cst_42 = arith.constant dense<0.000000e+00> : vector<128x640xf32>
      %77 = tpu.matmul %75, %76, %cst_42 {dimension_numbers = #tpu.dot_dimension_numbers<[1], [0], [0], [1], [0, 0, 1, 1], [], []>} : vector<128x128xbf16>, vector<128x640xbf16>, vector<128x640xf32> -> vector<128x640xf32>
      %78 = arith.truncf %77 : vector<128x640xf32> to vector<128x640xbf16>
      %c0_43 = arith.constant 0 : index
      %c0_44 = arith.constant 0 : index
      %79 = vector.load %arg18[%c0_43, %c0_44] : memref<128x640xbf16, #tpu.memory_space<vmem>>, vector<128x640xbf16>
      tpu.vector_store %arg18[%c0_43, %c0_44], %78 {strides = array<i32>} : memref<128x640xbf16, #tpu.memory_space<vmem>>, vector<128x640xbf16>,
      %cst_45 = arith.constant 0.000000e+00 : f32
      %80 = vector.broadcast %cst_45 : f32 to vector<128x256xf32>
      %c0_46 = arith.constant 0 : index
      %c0_47 = arith.constant 0 : index
      %81 = vector.load %arg19[%c0_46, %c0_47] : memref<128x256xf32, #tpu.memory_space<vmem>>, vector<128x256xf32>
      tpu.vector_store %arg19[%c0_46, %c0_47], %80 {strides = array<i32>} : memref<128x256xf32, #tpu.memory_space<vmem>>, vector<128x256xf32>,
    } else {
    }
    %c0 = arith.constant 0 : index
    %c0_1 = arith.constant 0 : index
    %3 = vector.load %arg3[%c0, %c0_1] : memref<256x1xi32, #tpu.memory_space<vmem>>, vector<256x1xi32>
    %c0_2 = arith.constant 0 : index
    %c0_3 = arith.constant 0 : index
    %4 = vector.load %arg4[%c0_2, %c0_3] : memref<256x1xi32, #tpu.memory_space<vmem>>, vector<256x1xi32>
    %c0_4 = arith.constant 0 : index
    %c0_5 = arith.constant 0 : index
    %5 = vector.load %arg5[%c0_4, %c0_5] : memref<1x256xi32, #tpu.memory_space<vmem>>, vector<1x256xi32>
    %6 = tpu.iota {dimensions = array<i32: 1>} : vector<256x128xi32>
    %7 = tpu.iota {dimensions = array<i32: 0>} : vector<128x256xi32>
    %8 = vector.broadcast %3 : vector<256x1xi32> to vector<256x128xi32>
    %9 = arith.cmpi eq, %6, %8 : vector<256x128xi32>
    %10 = arith.extui %9 : vector<256x128xi1> to vector<256x128xi32>
    %11 = arith.sitofp %10 : vector<256x128xi32> to vector<256x128xf32>
    %12 = arith.truncf %11 : vector<256x128xf32> to vector<256x128xbf16>
    %13 = vector.broadcast %4 : vector<256x1xi32> to vector<256x128xi32>
    %14 = arith.cmpi eq, %6, %13 : vector<256x128xi32>
    %15 = arith.extui %14 : vector<256x128xi1> to vector<256x128xi32>
    %16 = arith.sitofp %15 : vector<256x128xi32> to vector<256x128xf32>
    %17 = arith.truncf %16 : vector<256x128xf32> to vector<256x128xbf16>
    %18 = vector.broadcast %5 : vector<1x256xi32> to vector<128x256xi32>
    %19 = arith.cmpi eq, %7, %18 : vector<128x256xi32>
    %20 = arith.extui %19 : vector<128x256xi1> to vector<128x256xi32>
    %21 = arith.sitofp %20 : vector<128x256xi32> to vector<128x256xf32>
    %22 = arith.truncf %21 : vector<128x256xf32> to vector<128x256xbf16>
    %c0_6 = arith.constant 0 : index
    %c0_7 = arith.constant 0 : index
    %23 = vector.load %arg18[%c0_6, %c0_7] : memref<128x640xbf16, #tpu.memory_space<vmem>>, vector<128x384xbf16>
    %cst = arith.constant dense<0.000000e+00> : vector<256x384xf32>
    %24 = tpu.matmul %12, %23, %cst {dimension_numbers = #tpu.dot_dimension_numbers<[1], [0], [0], [1], [0, 0, 1, 1], [], []>} : vector<256x128xbf16>, vector<128x384xbf16>, vector<256x384xf32> -> vector<256x384xf32>
    %c0_8 = arith.constant 0 : index
    %c384 = arith.constant 384 : index
    %25 = vector.load %arg18[%c0_8, %c384] : memref<128x640xbf16, #tpu.memory_space<vmem>>, vector<128x128xbf16>
    %cst_9 = arith.constant dense<0.000000e+00> : vector<256x128xf32>
    %26 = tpu.matmul %17, %25, %cst_9 {dimension_numbers = #tpu.dot_dimension_numbers<[1], [0], [0], [1], [0, 0, 1, 1], [], []>} : vector<256x128xbf16>, vector<128x128xbf16>, vector<256x128xf32> -> vector<256x128xf32>
    %c0_10 = arith.constant 0 : index
    %c0_11 = arith.constant 0 : index
    %27 = vector.load %arg2[%c0_10, %c0_11] : memref<256x128xf32, #tpu.memory_space<vmem>>, vector<256x128xf32>
    %28 = arith.truncf %27 : vector<256x128xf32> to vector<256x128xbf16>
    %c0_12 = arith.constant 0 : index
    %c0_13 = arith.constant 0 : index
    %29 = vector.load %arg9[%c0_12, %c0_13] : memref<128x128xbf16, #tpu.memory_space<vmem>>, vector<128x128xbf16>
    %cst_14 = arith.constant dense<0.000000e+00> : vector<256x128xf32>
    %30 = tpu.matmul %28, %29, %cst_14 {dimension_numbers = #tpu.dot_dimension_numbers<[1], [0], [0], [1], [0, 0, 1, 1], [], []>} : vector<256x128xbf16>, vector<128x128xbf16>, vector<256x128xf32> -> vector<256x128xf32>
    %31 = vector.extract_strided_slice %24 {offsets = [0, 0], sizes = [256, 128], strides = [1, 1]} : vector<256x384xf32> to vector<256x128xf32>
    %32 = arith.addf %30, %31 : vector<256x128xf32>
    %33 = arith.addf %32, %26 : vector<256x128xf32>
    %c0_15 = arith.constant 0 : index
    %c0_16 = arith.constant 0 : index
    %34 = vector.load %arg11[%c0_15, %c0_16] : memref<1x128xf32, #tpu.memory_space<vmem>>, vector<1x128xf32>
    %35 = vector.broadcast %34 : vector<1x128xf32> to vector<256x128xf32>
    %36 = arith.addf %33, %35 : vector<256x128xf32>
    %c0_17 = arith.constant 0 : index
    %c0_18 = arith.constant 0 : index
    %c0_19 = arith.constant 0 : index
    %37 = vector.load %arg6[%c0_17, %c0_18, %c0_19] : memref<2x256x1xf32, #tpu.memory_space<vmem>>, vector<1x256x1xf32>
    %38 = vector.shape_cast %37 : vector<1x256x1xf32> to vector<256x1xf32>
    %39 = vector.extract_strided_slice %24 {offsets = [0, 128], sizes = [256, 128], strides = [1, 1]} : vector<256x384xf32> to vector<256x128xf32>
    %40 = vector.broadcast %38 : vector<256x1xf32> to vector<256x128xf32>
    %41 = arith.mulf %40, %39 : vector<256x128xf32>
    %c1 = arith.constant 1 : index
    %c0_20 = arith.constant 0 : index
    %c0_21 = arith.constant 0 : index
    %42 = vector.load %arg6[%c1, %c0_20, %c0_21] : memref<2x256x1xf32, #tpu.memory_space<vmem>>, vector<1x256x1xf32>
    %43 = vector.shape_cast %42 : vector<1x256x1xf32> to vector<256x1xf32>
    %44 = vector.extract_strided_slice %24 {offsets = [0, 256], sizes = [256, 128], strides = [1, 1]} : vector<256x384xf32> to vector<256x128xf32>
    %45 = vector.broadcast %43 : vector<256x1xf32> to vector<256x128xf32>
    %46 = arith.mulf %45, %44 : vector<256x128xf32>
    %47 = arith.addf %41, %46 : vector<256x128xf32>
    %48 = arith.negf %36 : vector<256x128xf32>
    %49 = math.exp %48 : vector<256x128xf32>
    %cst_22 = arith.constant 1.000000e+00 : f32
    %50 = vector.broadcast %cst_22 : f32 to vector<256x128xf32>
    %51 = arith.addf %50, %49 : vector<256x128xf32>
    %52 = arith.divf %50, %51 : vector<256x128xf32>
    %53 = arith.mulf %52, %47 : vector<256x128xf32>
    %54 = arith.truncf %53 : vector<256x128xf32> to vector<256x128xbf16>
    %55 = arith.truncf %52 : vector<256x128xf32> to vector<256x128xbf16>
    %56 = tpu.concatenate %54, %55 in 1 : vector<256x128xbf16>, vector<256x128xbf16> -> vector<256x256xbf16>
    %c0_23 = arith.constant 0 : index
    %c0_24 = arith.constant 0 : index
    %57 = vector.load %arg19[%c0_23, %c0_24] : memref<128x256xf32, #tpu.memory_space<vmem>>, vector<128x256xf32>
    %cst_25 = arith.constant dense<0.000000e+00> : vector<128x256xf32>
    %58 = tpu.matmul %22, %56, %cst_25 {dimension_numbers = #tpu.dot_dimension_numbers<[1], [0], [0], [1], [0, 0, 1, 1], [], []>} : vector<128x256xbf16>, vector<256x256xbf16>, vector<128x256xf32> -> vector<128x256xf32>
    %59 = arith.addf %57, %58 : vector<128x256xf32>
    %c0_26 = arith.constant 0 : index
    %c0_27 = arith.constant 0 : index
    %60 = vector.load %arg19[%c0_26, %c0_27] : memref<128x256xf32, #tpu.memory_space<vmem>>, vector<128x256xf32>
    tpu.vector_store %arg19[%c0_26, %c0_27], %59 {strides = array<i32>} : memref<128x256xf32, #tpu.memory_space<vmem>>, vector<128x256xf32>,
    %c0_28 = arith.constant 0 : index
    %c0_29 = arith.constant 0 : index
    %61 = vector.load %arg14[%c0_28, %c0_29] : memref<1x128xf32, #tpu.memory_space<vmem>>, vector<1x128xf32>
    %62 = vector.broadcast %61 : vector<1x128xf32> to vector<256x128xf32>
    %63 = arith.mulf %36, %62 : vector<256x128xf32>
    %c0_30 = arith.constant 0 : index
    %c0_31 = arith.constant 0 : index
    %64 = vector.load %arg15[%c0_30, %c0_31] : memref<1x128xf32, #tpu.memory_space<vmem>>, vector<1x128xf32>
    %65 = vector.broadcast %64 : vector<1x128xf32> to vector<256x128xf32>
    %66 = arith.addf %63, %65 : vector<256x128xf32>
    %cst_32 = arith.constant 0.000000e+00 : f32
    %67 = vector.broadcast %cst_32 : f32 to vector<256x128xf32>
    %68 = arith.maximumf %66, %67 : vector<256x128xf32>
    %c0_33 = arith.constant 0 : index
    %c0_34 = arith.constant 0 : index
    %69 = vector.load %arg2[%c0_33, %c0_34] : memref<256x128xf32, #tpu.memory_space<vmem>>, vector<256x128xf32>
    %70 = arith.addf %69, %68 : vector<256x128xf32>
    %c0_35 = arith.constant 0 : index
    %c0_36 = arith.constant 0 : index
    %71 = vector.load %arg17[%c0_35, %c0_36] : memref<256x128xf32, #tpu.memory_space<vmem>>, vector<256x128xf32>
    tpu.vector_store %arg17[%c0_35, %c0_36], %70 {strides = array<i32>} : memref<256x128xf32, #tpu.memory_space<vmem>>, vector<256x128xf32>,
    %c1_i32 = arith.constant 1 : i32
    %72 = arith.cmpi eq, %arg0, %c1_i32 : i32
    %73 = arith.extui %72 : i1 to i32
    %c0_i32_37 = arith.constant 0 : i32
    %74 = arith.cmpi ne, %73, %c0_i32_37 : i32
    scf.if %74 {
      %c0_38 = arith.constant 0 : index
      %c512 = arith.constant 512 : index
      %75 = vector.load %arg18[%c0_38, %c512] : memref<128x640xbf16, #tpu.memory_space<vmem>>, vector<128x128xbf16>
      %76 = arith.extf %75 : vector<128x128xbf16> to vector<128x128xf32>
      %c0_39 = arith.constant 0 : index
      %c0_40 = arith.constant 0 : index
      %77 = vector.load %arg10[%c0_39, %c0_40] : memref<1x128xf32, #tpu.memory_space<vmem>>, vector<1x128xf32>
      %78 = vector.broadcast %77 : vector<1x128xf32> to vector<128x128xf32>
      %79 = arith.addf %76, %78 : vector<128x128xf32>
      %c0_41 = arith.constant 0 : index
      %c0_42 = arith.constant 0 : index
      %80 = vector.load %arg19[%c0_41, %c0_42] : memref<128x256xf32, #tpu.memory_space<vmem>>, vector<128x128xf32>
      %c0_43 = arith.constant 0 : index
      %c128 = arith.constant 128 : index
      %81 = vector.load %arg19[%c0_43, %c128] : memref<128x256xf32, #tpu.memory_space<vmem>>, vector<128x128xf32>
      %cst_44 = arith.constant 9.99999997E-7 : f32
      %82 = vector.broadcast %cst_44 : f32 to vector<128x128xf32>
      %83 = arith.addf %81, %82 : vector<128x128xf32>
      %84 = tpu.reciprocal %83 {approx = true} : vector<128x128xf32> -> vector<128x128xf32>
      %85 = arith.mulf %80, %84 : vector<128x128xf32>
      %86 = arith.addf %79, %85 : vector<128x128xf32>
      %c0_45 = arith.constant 0 : index
      %c0_46 = arith.constant 0 : index
      %87 = vector.load %arg7[%c0_45, %c0_46] : memref<128x1xf32, #tpu.memory_space<vmem>>, vector<128x1xf32>
      %cst_47 = arith.constant 0.000000e+00 : f32
      %88 = vector.broadcast %cst_47 : f32 to vector<128x1xf32>
      %89 = arith.cmpf ogt, %87, %88 : vector<128x1xf32>
      %c0_48 = arith.constant 0 : index
      %c0_49 = arith.constant 0 : index
      %90 = vector.load %arg1[%c0_48, %c0_49] : memref<128x128xbf16, #tpu.memory_space<vmem>>, vector<128x128xbf16>
      %91 = arith.extf %90 : vector<128x128xbf16> to vector<128x128xf32>
      %92 = vector.shape_cast %89 : vector<128x1xi1> to vector<128x1xi1>
      %93 = vector.broadcast %92 : vector<128x1xi1> to vector<128x128xi1>
      %94 = arith.select %93, %86, %91 : vector<128x128xi1>, vector<128x128xf32>
      %c0_50 = arith.constant 0 : index
      %c0_51 = arith.constant 0 : index
      %95 = vector.load %arg12[%c0_50, %c0_51] : memref<1x128xf32, #tpu.memory_space<vmem>>, vector<1x128xf32>
      %96 = vector.broadcast %95 : vector<1x128xf32> to vector<128x128xf32>
      %97 = arith.mulf %94, %96 : vector<128x128xf32>
      %c0_52 = arith.constant 0 : index
      %c0_53 = arith.constant 0 : index
      %98 = vector.load %arg13[%c0_52, %c0_53] : memref<1x128xf32, #tpu.memory_space<vmem>>, vector<1x128xf32>
      %99 = vector.broadcast %98 : vector<1x128xf32> to vector<128x128xf32>
      %100 = arith.addf %97, %99 : vector<128x128xf32>
      %cst_54 = arith.constant 0.000000e+00 : f32
      %101 = vector.broadcast %cst_54 : f32 to vector<128x128xf32>
      %102 = arith.maximumf %100, %101 : vector<128x128xf32>
      %c0_55 = arith.constant 0 : index
      %c0_56 = arith.constant 0 : index
      %103 = vector.load %arg1[%c0_55, %c0_56] : memref<128x128xbf16, #tpu.memory_space<vmem>>, vector<128x128xbf16>
      %104 = arith.extf %103 : vector<128x128xbf16> to vector<128x128xf32>
      %105 = arith.addf %104, %102 : vector<128x128xf32>
      %c0_57 = arith.constant 0 : index
      %c0_58 = arith.constant 0 : index
      %106 = vector.load %arg16[%c0_57, %c0_58] : memref<128x128xf32, #tpu.memory_space<vmem>>, vector<128x128xf32>
      tpu.vector_store %arg16[%c0_57, %c0_58], %105 {strides = array<i32>} : memref<128x128xf32, #tpu.memory_space<vmem>>, vector<128x128xf32>,
    } else {
    }
    return
  }
  func.func @transform_0(%arg0: i32) -> (i32, i32) {
    %c0_i32 = arith.constant 0 : i32
    %c0_i32_0 = arith.constant 0 : i32
    %c0_i32_1 = arith.constant 0 : i32
    return %c0_i32, %c0_i32_0 : i32, i32
  }
  func.func @transform_1(%arg0: i32) -> (i32, i32) {
    %c0_i32 = arith.constant 0 : i32
    %c0_i32_0 = arith.constant 0 : i32
    return %arg0, %c0_i32 : i32, i32
  }
  func.func @transform_2(%arg0: i32) -> (i32, i32) {
    %c0_i32 = arith.constant 0 : i32
    %c0_i32_0 = arith.constant 0 : i32
    return %arg0, %c0_i32 : i32, i32
  }
  func.func @transform_3(%arg0: i32) -> (i32, i32) {
    %c0_i32 = arith.constant 0 : i32
    %c0_i32_0 = arith.constant 0 : i32
    return %arg0, %c0_i32 : i32, i32
  }
  func.func @transform_4(%arg0: i32) -> (i32, i32) {
    %c0_i32 = arith.constant 0 : i32
    %c0_i32_0 = arith.constant 0 : i32
    return %c0_i32, %arg0 : i32, i32
  }
  func.func @transform_5(%arg0: i32) -> (i32, i32, i32) {
    %c0_i32 = arith.constant 0 : i32
    %c0_i32_0 = arith.constant 0 : i32
    %c0_i32_1 = arith.constant 0 : i32
    return %c0_i32, %arg0, %c0_i32_0 : i32, i32, i32
  }
  func.func @transform_6(%arg0: i32) -> (i32, i32) {
    %c0_i32 = arith.constant 0 : i32
    %c0_i32_0 = arith.constant 0 : i32
    %c0_i32_1 = arith.constant 0 : i32
    return %c0_i32, %c0_i32_0 : i32, i32
  }
  func.func @transform_7(%arg0: i32) -> (i32, i32) {
    %c0_i32 = arith.constant 0 : i32
    %c0_i32_0 = arith.constant 0 : i32
    %c0_i32_1 = arith.constant 0 : i32
    return %c0_i32, %c0_i32_0 : i32, i32
  }
  func.func @transform_8(%arg0: i32) -> (i32, i32) {
    %c0_i32 = arith.constant 0 : i32
    %c0_i32_0 = arith.constant 0 : i32
    %c0_i32_1 = arith.constant 0 : i32
    return %c0_i32, %c0_i32_0 : i32, i32
  }
  func.func @transform_9(%arg0: i32) -> (i32, i32) {
    %c0_i32 = arith.constant 0 : i32
    %c0_i32_0 = arith.constant 0 : i32
    %c0_i32_1 = arith.constant 0 : i32
    return %c0_i32, %c0_i32_0 : i32, i32
  }
  func.func @transform_10(%arg0: i32) -> (i32, i32) {
    %c0_i32 = arith.constant 0 : i32
    %c0_i32_0 = arith.constant 0 : i32
    %c0_i32_1 = arith.constant 0 : i32
    return %c0_i32, %c0_i32_0 : i32, i32
  }
  func.func @transform_11(%arg0: i32) -> (i32, i32) {
    %c0_i32 = arith.constant 0 : i32
    %c0_i32_0 = arith.constant 0 : i32
    %c0_i32_1 = arith.constant 0 : i32
    return %c0_i32, %c0_i32_0 : i32, i32
  }
  func.func @transform_12(%arg0: i32) -> (i32, i32) {
    %c0_i32 = arith.constant 0 : i32
    %c0_i32_0 = arith.constant 0 : i32
    %c0_i32_1 = arith.constant 0 : i32
    return %c0_i32, %c0_i32_0 : i32, i32
  }
  func.func @transform_13(%arg0: i32) -> (i32, i32) {
    %c0_i32 = arith.constant 0 : i32
    %c0_i32_0 = arith.constant 0 : i32
    %c0_i32_1 = arith.constant 0 : i32
    return %c0_i32, %c0_i32_0 : i32, i32
  }
  func.func @transform_14(%arg0: i32) -> (i32, i32) {
    %c0_i32 = arith.constant 0 : i32
    %c0_i32_0 = arith.constant 0 : i32
    %c0_i32_1 = arith.constant 0 : i32
    return %c0_i32, %c0_i32_0 : i32, i32
  }
  func.func @transform_15(%arg0: i32) -> (i32, i32) {
    %c0_i32 = arith.constant 0 : i32
    %c0_i32_0 = arith.constant 0 : i32
    %c0_i32_1 = arith.constant 0 : i32
    return %c0_i32, %c0_i32_0 : i32, i32
  }
  func.func @transform_16(%arg0: i32) -> (i32, i32) {
    %c0_i32 = arith.constant 0 : i32
    %c0_i32_0 = arith.constant 0 : i32
    return %arg0, %c0_i32 : i32, i32
  }
}

</mosaic_0001>

<llo_original>
// kernel: tpu_custom_call.1
$region0: #{tpu_custom_call.1}
  #allocation0 [shape = 'u32[]', space=smem, size = 0x4, offset = 0x4, fixed_abs, tag = 'smem constant byte address 0x4 - core index']
  #allocation1 [shape = 'u32[144,128]{1,0:T(1,128)}', space=vmem, size = 0x12000, scoped, tag = 'internal scratch']
  #allocation2 [shape = 'bf16[128,640]{1,0:T(8,128)(2,1)}', space=vmem, size = 0x28000, scoped, tag = 'scratch operand']
  #allocation3 [shape = 'f32[128,256]{1,0:T(8,128)}', space=vmem, size = 0x20000, scoped, tag = 'scratch operand']
  %s0 = inlined_call_operand.vmem [shape: bf16[128,128], index: 0, kind: input, shape index: {}]
  %s1 = inlined_call_operand.vmem [shape: f32[512,128], index: 1, kind: input, shape index: {}]
  %s2 = inlined_call_operand.vmem [shape: s32[512,1], index: 2, kind: input, shape index: {}]
  %s3 = inlined_call_operand.vmem [shape: s32[512,1], index: 3, kind: input, shape index: {}]
  %s4 = inlined_call_operand.vmem [shape: s32[1,512], index: 4, kind: input, shape index: {}]
  %s5 = inlined_call_operand.vmem [shape: f32[2,512,1], index: 5, kind: input, shape index: {}]
  %s6 = inlined_call_operand.vmem [shape: f32[128,1], index: 6, kind: input, shape index: {}]
  %s7 = inlined_call_operand.vmem [shape: bf16[128,640], index: 7, kind: input, shape index: {}]
  %s8 = inlined_call_operand.vmem [shape: bf16[128,128], index: 8, kind: input, shape index: {}]
  %s9 = inlined_call_operand.vmem [shape: f32[1,128], index: 9, kind: input, shape index: {}]
  %s10 = inlined_call_operand.vmem [shape: f32[1,128], index: 10, kind: input, shape index: {}]
  %s11 = inlined_call_operand.vmem [shape: f32[1,128], index: 11, kind: input, shape index: {}]
  %s12 = inlined_call_operand.vmem [shape: f32[1,128], index: 12, kind: input, shape index: {}]
  %s13 = inlined_call_operand.vmem [shape: f32[1,128], index: 13, kind: input, shape index: {}]
  %s14 = inlined_call_operand.vmem [shape: f32[1,128], index: 14, kind: input, shape index: {}]
  %s15 = inlined_call_operand.hbm [shape: f32[128,128], index: 15, kind: output, shape index: {0}]
  %s16 = inlined_call_operand.hbm [shape: f32[512,128], index: 16, kind: output, shape index: {1}]
  %17 = xla_tuple %s15, %s16
  %s18 = sld [smem:[#allocation0]]
  $region147: #{tpu_custom_call.1} parent=0
    _
  %s20 = ssub.s32 1, %s18
  %s21 = scalar_select 0, %s20, %s18
  $region1: #{tpu_custom_call.1} parent=0
    #allocation4 [shape = 'u8[524288]{0}', space=vmem, size = 0x80000, scoped, tag = 'input window, operand 5']
    #allocation5 [shape = 'u8[65536]{0}', space=vmem, size = 0x10000, scoped, tag = 'output window, operand 0, single buffered']
    #allocation6 [shape = 's32[2]{0}', space=sflag, size = 0x8, scoped, tag = 'scoped memory for tpu_custom_call.1']
    #allocation7 [shape = 'u8[262144]{0}', space=vmem, size = 0x40000, scoped, tag = 'output window, operand 1']
    #allocation8 [shape = 's32[2]{0}', space=sflag, size = 0x8, scoped, tag = 'scoped memory for tpu_custom_call.1']
    %22 = vsyncpa [#allocation6], 0
    %23 = vsyncpa [#allocation8], 0
    %s24 = scalar_lea.sflag [#allocation8], 1
    %25 = vsyncpa %s24, 0
    loop: start=0, step=1, limit=4
    $region2: #{tpu_custom_call.1} parent=1 // loop_pre_header
      _
    $region3: #{tpu_custom_call.1} parent=1 // loop_header
      %s27 = sphi 0, %s31
      %p28 = scmp.ge.s32.totalorder %s27, 4
      %s35 = sphi 0, %s35
      %s37 = sphi 0, %s35
      %s38 = sphi 0, %s37
      %s52 = sphi 0, %s38
      %s58 = sphi 0, %s60
      %s61 = sphi 0, %s58
      %s62 = sphi 0, %s61
      %s78 = sphi 0, %s62
      %s84 = sphi 0, %s86
      %s87 = sphi 0, %s84
      %s88 = sphi 0, %s87
      %s104 = sphi 0, %s88
      %s110 = sphi 0, %s112
      %s113 = sphi 0, %s110
      %s114 = sphi 0, %s113
      %s130 = sphi 0, %s114
      %s136 = sphi 0, %s138
      %s139 = sphi 0, %s136
      %s140 = sphi 0, %s139
      %s156 = sphi 0, %s140
      %s162 = sphi 0, %s164
      %s165 = sphi 0, %s162
      %s166 = sphi 0, %s165
      %s182 = sphi 0, %s166
      %s186 = sphi 0, %s186
      %s188 = sphi 0, %s186
      %s189 = sphi 0, %s188
      %s203 = sphi 0, %s189
      %s207 = sphi 0, %s207
      %s209 = sphi 0, %s207
      %s210 = sphi 0, %s209
      %s224 = sphi 0, %s210
      %s228 = sphi 0, %s228
      %s230 = sphi 0, %s228
      %s231 = sphi 0, %s230
      %s245 = sphi 0, %s231
      %s249 = sphi 0, %s249
      %s251 = sphi 0, %s249
      %s252 = sphi 0, %s251
      %s266 = sphi 0, %s252
      %s270 = sphi 0, %s270
      %s272 = sphi 0, %s270
      %s273 = sphi 0, %s272
      %s287 = sphi 0, %s273
      %s291 = sphi 0, %s291
      %s293 = sphi 0, %s291
      %s294 = sphi 0, %s293
      %s308 = sphi 0, %s294
      %s312 = sphi 0, %s312
      %s314 = sphi 0, %s312
      %s315 = sphi 0, %s314
      %s329 = sphi 0, %s315
      %s333 = sphi 0, %s333
      %s335 = sphi 0, %s333
      %s336 = sphi 0, %s335
      %s350 = sphi 0, %s336
      %s354 = sphi 0, %s354
      %s356 = sphi 0, %s354
      %s357 = sphi 0, %s356
      %s371 = sphi 0, %s357
      %s375 = sphi 0, %s375
      %s377 = sphi 0, %s375
      %s378 = sphi 0, %s377
      %s392 = sphi 0, %s378
      %s398 = sphi 0, %s400
      %s401 = sphi 0, %s398
      %s402 = sphi 0, %s401
      %s418 = sphi 0, %s402
    $region4: #{tpu_custom_call.1} parent=1 // loop_header_branch
      %30 = sbr.rel (%p28) target = $region8
    $region5: #{tpu_custom_call.1} parent=1 // loop_body
      %s32 = ssub.s32 %s27, 1
      %s33 = ssub.s32 %s27, 2
      %s34 = sadd.s32 %s27, 1
      %s36 = sadd.s32 %s35, 1
      %p39 = scmp.eq.s32.totalorder %s27, 1
      %p40 = scmp.ne.s32.totalorder %s35, %s37
      %p41 = scmp.eq.s32.totalorder %s27, 0
      %p42 = por %p40, %p41
      %p43 = scmp.ne.s32.totalorder %s35, %s37
      %p44 = scmp.eq.s32.totalorder %s32, 1
      %p45 = por %p43, %p44
      %p46 = scmp.ne.s32.totalorder %s37, %s38
      %p47 = scmp.eq.s32.totalorder %s32, 0
      %p48 = por %p46, %p47
      %p49 = scmp.ne.s32.totalorder %s37, %s38
      %p50 = scmp.eq.s32.totalorder %s33, 1
      %p51 = por %p49, %p50
      %p53 = scmp.ne.s32.totalorder %s38, %s52
      %p54 = scmp.eq.s32.totalorder %s33, 0
      %p55 = por %p53, %p54
      %s56 = ssub.s32 %s27, %s34
      %p57 = scmp.eq.s32.totalorder %s56, 0
      %s59 = sadd.s32 %s58, 1
      %s60 = scalar_select %p57, %s58, %s59
      %p63 = pneg %p57
      %p64 = scmp.eq.s32.totalorder %s27, 1
      %p65 = por %p63, %p64
      %p66 = scmp.ne.s32.totalorder %s58, %s61
      %p67 = scmp.eq.s32.totalorder %s27, 0
      %p68 = por %p66, %p67
      %p69 = scmp.ne.s32.totalorder %s58, %s61
      %p70 = scmp.eq.s32.totalorder %s32, 1
      %p71 = por %p69, %p70
      %p72 = scmp.ne.s32.totalorder %s61, %s62
      %p73 = scmp.eq.s32.totalorder %s32, 0
      %p74 = por %p72, %p73
      %p75 = scmp.ne.s32.totalorder %s61, %s62
      %p76 = scmp.eq.s32.totalorder %s33, 1
      %p77 = por %p75, %p76
      %p79 = scmp.ne.s32.totalorder %s62, %s78
      %p80 = scmp.eq.s32.totalorder %s33, 0
      %p81 = por %p79, %p80
      %s82 = ssub.s32 %s27, %s34
      %p83 = scmp.eq.s32.totalorder %s82, 0
      %s85 = sadd.s32 %s84, 1
      %s86 = scalar_select %p83, %s84, %s85
      %p89 = pneg %p83
      %p90 = scmp.eq.s32.totalorder %s27, 1
      %p91 = por %p89, %p90
      %p92 = scmp.ne.s32.totalorder %s84, %s87
      %p93 = scmp.eq.s32.totalorder %s27, 0
      %p94 = por %p92, %p93
      %p95 = scmp.ne.s32.totalorder %s84, %s87
      %p96 = scmp.eq.s32.totalorder %s32, 1
      %p97 = por %p95, %p96
      %p98 = scmp.ne.s32.totalorder %s87, %s88
      %p99 = scmp.eq.s32.totalorder %s32, 0
      %p100 = por %p98, %p99
      %p101 = scmp.ne.s32.totalorder %s87, %s88
      %p102 = scmp.eq.s32.totalorder %s33, 1
      %p103 = por %p101, %p102
      %p105 = scmp.ne.s32.totalorder %s88, %s104
      %p106 = scmp.eq.s32.totalorder %s33, 0
      %p107 = por %p105, %p106
      %s108 = ssub.s32 %s27, %s34
      %p109 = scmp.eq.s32.totalorder %s108, 0
      %s111 = sadd.s32 %s110, 1
      %s112 = scalar_select %p109, %s110, %s111
      %p115 = pneg %p109
      %p116 = scmp.eq.s32.totalorder %s27, 1
      %p117 = por %p115, %p116
      %p118 = scmp.ne.s32.totalorder %s110, %s113
      %p119 = scmp.eq.s32.totalorder %s27, 0
      %p120 = por %p118, %p119
      %p121 = scmp.ne.s32.totalorder %s110, %s113
      %p122 = scmp.eq.s32.totalorder %s32, 1
      %p123 = por %p121, %p122
      %p124 = scmp.ne.s32.totalorder %s113, %s114
      %p125 = scmp.eq.s32.totalorder %s32, 0
      %p126 = por %p124, %p125
      %p127 = scmp.ne.s32.totalorder %s113, %s114
      %p128 = scmp.eq.s32.totalorder %s33, 1
      %p129 = por %p127, %p128
      %p131 = scmp.ne.s32.totalorder %s114, %s130
      %p132 = scmp.eq.s32.totalorder %s33, 0
      %p133 = por %p131, %p132
      %s134 = ssub.s32 %s27, %s34
      %p135 = scmp.eq.s32.totalorder %s134, 0
      %s137 = sadd.s32 %s136, 1
      %s138 = scalar_select %p135, %s136, %s137
      %p141 = pneg %p135
      %p142 = scmp.eq.s32.totalorder %s27, 1
      %p143 = por %p141, %p142
      %p144 = scmp.ne.s32.totalorder %s136, %s139
      %p145 = scmp.eq.s32.totalorder %s27, 0
      %p146 = por %p144, %p145
      %p147 = scmp.ne.s32.totalorder %s136, %s139
      %p148 = scmp.eq.s32.totalorder %s32, 1
      %p149 = por %p147, %p148
      %p150 = scmp.ne.s32.totalorder %s139, %s140
      %p151 = scmp.eq.s32.totalorder %s32, 0
      %p152 = por %p150, %p151
      %p153 = scmp.ne.s32.totalorder %s139, %s140
      %p154 = scmp.eq.s32.totalorder %s33, 1
      %p155 = por %p153, %p154
      %p157 = scmp.ne.s32.totalorder %s140, %s156
      %p158 = scmp.eq.s32.totalorder %s33, 0
      %p159 = por %p157, %p158
      %s160 = ssub.s32 %s27, %s34
      %p161 = scmp.eq.s32.totalorder %s160, 0
      %s163 = sadd.s32 %s162, 1
      %s164 = scalar_select %p161, %s162, %s163
      %p167 = pneg %p161
      %p168 = scmp.eq.s32.totalorder %s27, 1
      %p169 = por %p167, %p168
      %p170 = scmp.ne.s32.totalorder %s162, %s165
      %p171 = scmp.eq.s32.totalorder %s27, 0
      %p172 = por %p170, %p171
      %p173 = scmp.ne.s32.totalorder %s162, %s165
      %p174 = scmp.eq.s32.totalorder %s32, 1
      %p175 = por %p173, %p174
      %p176 = scmp.ne.s32.totalorder %s165, %s166
      %p177 = scmp.eq.s32.totalorder %s32, 0
      %p178 = por %p176, %p177
      %p179 = scmp.ne.s32.totalorder %s165, %s166
      %p180 = scmp.eq.s32.totalorder %s33, 1
      %p181 = por %p179, %p180
      %p183 = scmp.ne.s32.totalorder %s166, %s182
      %p184 = scmp.eq.s32.totalorder %s33, 0
      %p185 = por %p183, %p184
      %s187 = sadd.s32 %s186, 1
      %p190 = scmp.eq.s32.totalorder %s27, 1
      %p191 = scmp.ne.s32.totalorder %s186, %s188
      %p192 = scmp.eq.s32.totalorder %s27, 0
      %p193 = por %p191, %p192
      %p194 = scmp.ne.s32.totalorder %s186, %s188
      %p195 = scmp.eq.s32.totalorder %s32, 1
      %p196 = por %p194, %p195
      %p197 = scmp.ne.s32.totalorder %s188, %s189
      %p198 = scmp.eq.s32.totalorder %s32, 0
      %p199 = por %p197, %p198
      %p200 = scmp.ne.s32.totalorder %s188, %s189
      %p201 = scmp.eq.s32.totalorder %s33, 1
      %p202 = por %p200, %p201
      %p204 = scmp.ne.s32.totalorder %s189, %s203
      %p205 = scmp.eq.s32.totalorder %s33, 0
      %p206 = por %p204, %p205
      %s208 = sadd.s32 %s207, 1
      %p211 = scmp.eq.s32.totalorder %s27, 1
      %p212 = scmp.ne.s32.totalorder %s207, %s209
      %p213 = scmp.eq.s32.totalorder %s27, 0
      %p214 = por %p212, %p213
      %p215 = scmp.ne.s32.totalorder %s207, %s209
      %p216 = scmp.eq.s32.totalorder %s32, 1
      %p217 = por %p215, %p216
      %p218 = scmp.ne.s32.totalorder %s209, %s210
      %p219 = scmp.eq.s32.totalorder %s32, 0
      %p220 = por %p218, %p219
      %p221 = scmp.ne.s32.totalorder %s209, %s210
      %p222 = scmp.eq.s32.totalorder %s33, 1
      %p223 = por %p221, %p222
      %p225 = scmp.ne.s32.totalorder %s210, %s224
      %p226 = scmp.eq.s32.totalorder %s33, 0
      %p227 = por %p225, %p226
      %s229 = sadd.s32 %s228, 1
      %p232 = scmp.eq.s32.totalorder %s27, 1
      %p233 = scmp.ne.s32.totalorder %s228, %s230
      %p234 = scmp.eq.s32.totalorder %s27, 0
      %p235 = por %p233, %p234
      %p236 = scmp.ne.s32.totalorder %s228, %s230
      %p237 = scmp.eq.s32.totalorder %s32, 1
      %p238 = por %p236, %p237
      %p239 = scmp.ne.s32.totalorder %s230, %s231
      %p240 = scmp.eq.s32.totalorder %s32, 0
      %p241 = por %p239, %p240
      %p242 = scmp.ne.s32.totalorder %s230, %s231
      %p243 = scmp.eq.s32.totalorder %s33, 1
      %p244 = por %p242, %p243
      %p246 = scmp.ne.s32.totalorder %s231, %s245
      %p247 = scmp.eq.s32.totalorder %s33, 0
      %p248 = por %p246, %p247
      %s250 = sadd.s32 %s249, 1
      %p253 = scmp.eq.s32.totalorder %s27, 1
      %p254 = scmp.ne.s32.totalorder %s249, %s251
      %p255 = scmp.eq.s32.totalorder %s27, 0
      %p256 = por %p254, %p255
      %p257 = scmp.ne.s32.totalorder %s249, %s251
      %p258 = scmp.eq.s32.totalorder %s32, 1
      %p259 = por %p257, %p258
      %p260 = scmp.ne.s32.totalorder %s251, %s252
      %p261 = scmp.eq.s32.totalorder %s32, 0
      %p262 = por %p260, %p261
      %p263 = scmp.ne.s32.totalorder %s251, %s252
      %p264 = scmp.eq.s32.totalorder %s33, 1
      %p265 = por %p263, %p264
      %p267 = scmp.ne.s32.totalorder %s252, %s266
      %p268 = scmp.eq.s32.totalorder %s33, 0
      %p269 = por %p267, %p268
      %s271 = sadd.s32 %s270, 1
      %p274 = scmp.eq.s32.totalorder %s27, 1
      %p275 = scmp.ne.s32.totalorder %s270, %s272
      %p276 = scmp.eq.s32.totalorder %s27, 0
      %p277 = por %p275, %p276
      %p278 = scmp.ne.s32.totalorder %s270, %s272
      %p279 = scmp.eq.s32.totalorder %s32, 1
      %p280 = por %p278, %p279
      %p281 = scmp.ne.s32.totalorder %s272, %s273
      %p282 = scmp.eq.s32.totalorder %s32, 0
      %p283 = por %p281, %p282
      %p284 = scmp.ne.s32.totalorder %s272, %s273
      %p285 = scmp.eq.s32.totalorder %s33, 1
      %p286 = por %p284, %p285
      %p288 = scmp.ne.s32.totalorder %s273, %s287
      %p289 = scmp.eq.s32.totalorder %s33, 0
      %p290 = por %p288, %p289
      %s292 = sadd.s32 %s291, 1
      %p295 = scmp.eq.s32.totalorder %s27, 1
      %p296 = scmp.ne.s32.totalorder %s291, %s293
      %p297 = scmp.eq.s32.totalorder %s27, 0
      %p298 = por %p296, %p297
      %p299 = scmp.ne.s32.totalorder %s291, %s293
      %p300 = scmp.eq.s32.totalorder %s32, 1
      %p301 = por %p299, %p300
      %p302 = scmp.ne.s32.totalorder %s293, %s294
      %p303 = scmp.eq.s32.totalorder %s32, 0
      %p304 = por %p302, %p303
      %p305 = scmp.ne.s32.totalorder %s293, %s294
      %p306 = scmp.eq.s32.totalorder %s33, 1
      %p307 = por %p305, %p306
      %p309 = scmp.ne.s32.totalorder %s294, %s308
      %p310 = scmp.eq.s32.totalorder %s33, 0
      %p311 = por %p309, %p310
      %s313 = sadd.s32 %s312, 1
      %p316 = scmp.eq.s32.totalorder %s27, 1
      %p317 = scmp.ne.s32.totalorder %s312, %s314
      %p318 = scmp.eq.s32.totalorder %s27, 0
      %p319 = por %p317, %p318
      %p320 = scmp.ne.s32.totalorder %s312, %s314
      %p321 = scmp.eq.s32.totalorder %s32, 1
      %p322 = por %p320, %p321
      %p323 = scmp.ne.s32.totalorder %s314, %s315
      %p324 = scmp.eq.s32.totalorder %s32, 0
      %p325 = por %p323, %p324
      %p326 = scmp.ne.s32.totalorder %s314, %s315
      %p327 = scmp.eq.s32.totalorder %s33, 1
      %p328 = por %p326, %p327
      %p330 = scmp.ne.s32.totalorder %s315, %s329
      %p331 = scmp.eq.s32.totalorder %s33, 0
      %p332 = por %p330, %p331
      %s334 = sadd.s32 %s333, 1
      %p337 = scmp.eq.s32.totalorder %s27, 1
      %p338 = scmp.ne.s32.totalorder %s333, %s335
      %p339 = scmp.eq.s32.totalorder %s27, 0
      %p340 = por %p338, %p339
      %p341 = scmp.ne.s32.totalorder %s333, %s335
      %p342 = scmp.eq.s32.totalorder %s32, 1
      %p343 = por %p341, %p342
      %p344 = scmp.ne.s32.totalorder %s335, %s336
      %p345 = scmp.eq.s32.totalorder %s32, 0
      %p346 = por %p344, %p345
      %p347 = scmp.ne.s32.totalorder %s335, %s336
      %p348 = scmp.eq.s32.totalorder %s33, 1
      %p349 = por %p347, %p348
      %p351 = scmp.ne.s32.totalorder %s336, %s350
      %p352 = scmp.eq.s32.totalorder %s33, 0
      %p353 = por %p351, %p352
      %s355 = sadd.s32 %s354, 1
      %p358 = scmp.eq.s32.totalorder %s27, 1
      %p359 = scmp.ne.s32.totalorder %s354, %s356
      %p360 = scmp.eq.s32.totalorder %s27, 0
      %p361 = por %p359, %p360
      %p362 = scmp.ne.s32.totalorder %s354, %s356
      %p363 = scmp.eq.s32.totalorder %s32, 1
      %p364 = por %p362, %p363
      %p365 = scmp.ne.s32.totalorder %s356, %s357
      %p366 = scmp.eq.s32.totalorder %s32, 0
      %p367 = por %p365, %p366
      %p368 = scmp.ne.s32.totalorder %s356, %s357
      %p369 = scmp.eq.s32.totalorder %s33, 1
      %p370 = por %p368, %p369
      %p372 = scmp.ne.s32.totalorder %s357, %s371
      %p373 = scmp.eq.s32.totalorder %s33, 0
      %p374 = por %p372, %p373
      %s376 = sadd.s32 %s375, 1
      %p379 = scmp.eq.s32.totalorder %s27, 1
      %p380 = scmp.ne.s32.totalorder %s375, %s377
      %p381 = scmp.eq.s32.totalorder %s27, 0
      %p382 = por %p380, %p381
      %p383 = scmp.ne.s32.totalorder %s375, %s377
      %p384 = scmp.eq.s32.totalorder %s32, 1
      %p385 = por %p383, %p384
      %p386 = scmp.ne.s32.totalorder %s377, %s378
      %p387 = scmp.eq.s32.totalorder %s32, 0
      %p388 = por %p386, %p387
      %p389 = scmp.ne.s32.totalorder %s377, %s378
      %p390 = scmp.eq.s32.totalorder %s33, 1
      %p391 = por %p389, %p390
      %p393 = scmp.ne.s32.totalorder %s378, %s392
      %p394 = scmp.eq.s32.totalorder %s33, 0
      %p395 = por %p393, %p394
      %s396 = ssub.s32 %s27, %s34
      %p397 = scmp.eq.s32.totalorder %s396, 0
      %s399 = sadd.s32 %s398, 1
      %s400 = scalar_select %p397, %s398, %s399
      %p403 = pneg %p397
      %p404 = scmp.eq.s32.totalorder %s27, 1
      %p405 = por %p403, %p404
      %p406 = scmp.ne.s32.totalorder %s398, %s401
      %p407 = scmp.eq.s32.totalorder %s27, 0
      %p408 = por %p406, %p407
      %p409 = scmp.ne.s32.totalorder %s398, %s401
      %p410 = scmp.eq.s32.totalorder %s32, 1
      %p411 = por %p409, %p410
      %p412 = scmp.ne.s32.totalorder %s401, %s402
      %p413 = scmp.eq.s32.totalorder %s32, 0
      %p414 = por %p412, %p413
      %p415 = scmp.ne.s32.totalorder %s401, %s402
      %p416 = scmp.eq.s32.totalorder %s33, 1
      %p417 = por %p415, %p416
      %p419 = scmp.ne.s32.totalorder %s402, %s418
      %p420 = scmp.eq.s32.totalorder %s33, 0
      %p421 = por %p419, %p420
      %p422 = scmp.le.s32.totalorder 1, %s27
      %p423 = scmp.lt.s32.totalorder %s27, 3
      %p424 = pnand %p422, %p423
      %p425 = pneg %p424
      // Predicated region
      $region9: #{tpu_custom_call.1} parent=5 // pred_check
        _
      $region10: #{tpu_custom_call.1} parent=5 // pred_check_branch
        %427 = sbr.rel (%p424) target = $region12
      $region11: #{tpu_custom_call.1} parent=5 // pred_region
        %s428 = ssub.s32 %s27, 1
        // Predicated region
        $region13: #{tpu_custom_call.1} parent=11 // pred_check
          %p429 = pneg %p48
        $region14: #{tpu_custom_call.1} parent=11 // pred_check_branch
          %431 = sbr.rel (%p429) target = $region16
        $region15: #{tpu_custom_call.1} parent=11 // pred_region
          _
        $region16: #{tpu_custom_call.1} parent=11 // pred_fallthru
          _
        // Predicated region
        $region17: #{tpu_custom_call.1} parent=11 // pred_check
          %p432 = pneg %p199
        $region18: #{tpu_custom_call.1} parent=11 // pred_check_branch
          %434 = sbr.rel (%p432) target = $region20
        $region19: #{tpu_custom_call.1} parent=11 // pred_region
          _
        $region20: #{tpu_custom_call.1} parent=11 // pred_fallthru
          _
        // Predicated region
        $region21: #{tpu_custom_call.1} parent=11 // pred_check
          %p435 = pneg %p220
        $region22: #{tpu_custom_call.1} parent=11 // pred_check_branch
          %437 = sbr.rel (%p435) target = $region24
        $region23: #{tpu_custom_call.1} parent=11 // pred_region
          _
        $region24: #{tpu_custom_call.1} parent=11 // pred_fallthru
          _
        // Predicated region
        $region25: #{tpu_custom_call.1} parent=11 // pred_check
          %p438 = pneg %p241
        $region26: #{tpu_custom_call.1} parent=11 // pred_check_branch
          %440 = sbr.rel (%p438) target = $region28
        $region27: #{tpu_custom_call.1} parent=11 // pred_region
          _
        $region28: #{tpu_custom_call.1} parent=11 // pred_fallthru
          _
        // Predicated region
        $region29: #{tpu_custom_call.1} parent=11 // pred_check
          %p441 = pneg %p262
        $region30: #{tpu_custom_call.1} parent=11 // pred_check_branch
          %443 = sbr.rel (%p441) target = $region32
        $region31: #{tpu_custom_call.1} parent=11 // pred_region
          _
        $region32: #{tpu_custom_call.1} parent=11 // pred_fallthru
          _
        // Predicated region
        $region33: #{tpu_custom_call.1} parent=11 // pred_check
          %p444 = pneg %p283
        $region34: #{tpu_custom_call.1} parent=11 // pred_check_branch
          %446 = sbr.rel (%p444) target = $region36
        $region35: #{tpu_custom_call.1} parent=11 // pred_region
          _
        $region36: #{tpu_custom_call.1} parent=11 // pred_fallthru
          _
        // Predicated region
        $region37: #{tpu_custom_call.1} parent=11 // pred_check
          %p447 = pneg %p304
        $region38: #{tpu_custom_call.1} parent=11 // pred_check_branch
          %449 = sbr.rel (%p447) target = $region40
        $region39: #{tpu_custom_call.1} parent=11 // pred_region
          _
        $region40: #{tpu_custom_call.1} parent=11 // pred_fallthru
          _
        // Predicated region
        $region41: #{tpu_custom_call.1} parent=11 // pred_check
          %p450 = pneg %p325
        $region42: #{tpu_custom_call.1} parent=11 // pred_check_branch
          %452 = sbr.rel (%p450) target = $region44
        $region43: #{tpu_custom_call.1} parent=11 // pred_region
          _
        $region44: #{tpu_custom_call.1} parent=11 // pred_fallthru
          _
        // Predicated region
        $region45: #{tpu_custom_call.1} parent=11 // pred_check
          %p453 = pneg %p346
        $region46: #{tpu_custom_call.1} parent=11 // pred_check_branch
          %455 = sbr.rel (%p453) target = $region48
        $region47: #{tpu_custom_call.1} parent=11 // pred_region
          _
        $region48: #{tpu_custom_call.1} parent=11 // pred_fallthru
          _
        // Predicated region
        $region49: #{tpu_custom_call.1} parent=11 // pred_check
          %p456 = pneg %p367
        $region50: #{tpu_custom_call.1} parent=11 // pred_check_branch
          %458 = sbr.rel (%p456) target = $region52
        $region51: #{tpu_custom_call.1} parent=11 // pred_region
          _
        $region52: #{tpu_custom_call.1} parent=11 // pred_fallthru
          _
      $region12: #{tpu_custom_call.1} parent=5 // pred_fallthru
        _
      %p459 = scmp.lt.s32.totalorder %s27, 2
      // Predicated region
      $region53: #{tpu_custom_call.1} parent=5 // pred_check
        %p460 = pneg %p459
      $region54: #{tpu_custom_call.1} parent=5 // pred_check_branch
        %462 = sbr.rel (%p460) target = $region56
      $region55: #{tpu_custom_call.1} parent=5 // pred_region
        // Predicated region
        $region57: #{tpu_custom_call.1} parent=55 // pred_check
          %p463 = pneg %p68
        $region58: #{tpu_custom_call.1} parent=55 // pred_check_branch
          %465 = sbr.rel (%p463) target = $region60
        $region59: #{tpu_custom_call.1} parent=55 // pred_region
          %s466 = smul.u32 32, %s27
          %p467 = scmp.lt.s32.totalorder %s466, 63
          %s468 = scalar_select %p467, %s466, 63
          %s469 = smul.addr %s468, 8
          %s470 = scalar_lea.vmem %s1, %s469
          %s471 = smul.u32 32, %s27
        $region60: #{tpu_custom_call.1} parent=55 // pred_fallthru
          _
        // Predicated region
        $region61: #{tpu_custom_call.1} parent=55 // pred_check
          %p472 = pneg %p94
        $region62: #{tpu_custom_call.1} parent=55 // pred_check_branch
          %474 = sbr.rel (%p472) target = $region64
        $region63: #{tpu_custom_call.1} parent=55 // pred_region
          %s475 = smul.u32 32, %s27
          %p476 = scmp.lt.s32.totalorder %s475, 63
          %s477 = scalar_select %p476, %s475, 63
          %s478 = smul.addr %s477, 8
          %s479 = scalar_lea.vmem %s2, %s478
          %s480 = smul.u32 32, %s27
        $region64: #{tpu_custom_call.1} parent=55 // pred_fallthru
          _
        // Predicated region
        $region65: #{tpu_custom_call.1} parent=55 // pred_check
          %p481 = pneg %p120
        $region66: #{tpu_custom_call.1} parent=55 // pred_check_branch
          %483 = sbr.rel (%p481) target = $region68
        $region67: #{tpu_custom_call.1} parent=55 // pred_region
          %s484 = smul.u32 32, %s27
          %p485 = scmp.lt.s32.totalorder %s484, 63
          %s486 = scalar_select %p485, %s484, 63
          %s487 = smul.addr %s486, 8
          %s488 = scalar_lea.vmem %s3, %s487
          %s489 = smul.u32 32, %s27
        $region68: #{tpu_custom_call.1} parent=55 // pred_fallthru
          _
        // Predicated region
        $region69: #{tpu_custom_call.1} parent=55 // pred_check
          %p490 = pneg %p146
        $region70: #{tpu_custom_call.1} parent=55 // pred_check_branch
          %492 = sbr.rel (%p490) target = $region72
        $region71: #{tpu_custom_call.1} parent=55 // pred_region
          %s493 = smul.u32 2, %s27
          %p494 = scmp.lt.s32.totalorder %s493, 3
          %s495 = scalar_select %p494, %s493, 3
          %s496 = scalar_lea.vmem %s4, %s495
          %s497 = smul.u32 2, %s27
        $region72: #{tpu_custom_call.1} parent=55 // pred_fallthru
          _
        // Predicated region
        $region73: #{tpu_custom_call.1} parent=55 // pred_check
          %p498 = pneg %p172
        $region74: #{tpu_custom_call.1} parent=55 // pred_check_branch
          %500 = sbr.rel (%p498) target = $region76
        $region75: #{tpu_custom_call.1} parent=55 // pred_region
          %s501 = sand.u32 %s162, 1
          %s502 = sand.u32 %s162, 1
          %s503 = smul.addr %s502, 512
          %s504 = scalar_lea.vmem [#allocation4], %s503
          %s505 = smul.u32 32, %s27
          %s506 = smul.addr %s505, 8
          %s507 = scalar_lea.vmem %s5, %s506
          // Predicated region
          $region77: #{tpu_custom_call.1} parent=75 // pred_check
            _
          $region78: #{tpu_custom_call.1} parent=75 // pred_check_branch
            %509 = sbr.rel (0) target = $region80
          $region79: #{tpu_custom_call.1} parent=75 // pred_region
            // Predicated region
            $region81: #{tpu_custom_call.1} parent=79 // pred_check
              _
            $region82: #{tpu_custom_call.1} parent=79 // pred_check_branch
              %511 = sbr.rel (0) target = $region84
            $region83: #{tpu_custom_call.1} parent=79 // pred_region
              // Predicated region
              $region96: #{tpu_custom_call.1} parent=83 // pred_check
                _
              $region97: #{tpu_custom_call.1} parent=83 // pred_check_branch
                %653 = sbr.rel (0) target = $region99
              $region98: #{tpu_custom_call.1} parent=83 // pred_region
                loop: start=0, step=1, limit=1
                $region100: #{tpu_custom_call.1} parent=98 // loop_pre_header
                  _
                $region101: #{tpu_custom_call.1} parent=98 // loop_header
                  %s655 = sphi 0, %s659
                  %p656 = scmp.ge.s32.totalorder %s655, 1
                  %s660 = sphi %s507, %s507
                  %s661 = sphi %s504, %s504
                $region102: #{tpu_custom_call.1} parent=98 // loop_header_branch
                  %658 = sbr.rel (%p656) target = $region106
                $region103: #{tpu_custom_call.1} parent=98 // loop_body
                  %v662 = vld [vmem:[%s660] sm:$0xff]
                  %663 = vst [vmem:[%s661] sm:$0xff] %v662
                  %v664 = vld [vmem:[%s660 + $0x8] sm:$0xff]
                  %665 = vst [vmem:[%s661 + $0x8] sm:$0xff] %v664
                  %v666 = vld [vmem:[%s660 + $0x10] sm:$0xff]
                  %667 = vst [vmem:[%s661 + $0x10] sm:$0xff] %v666
                  %v668 = vld [vmem:[%s660 + $0x18] sm:$0xff]
                  %669 = vst [vmem:[%s661 + $0x18] sm:$0xff] %v668
                  %v670 = vld [vmem:[%s660 + $0x20] sm:$0xff]
                  %671 = vst [vmem:[%s661 + $0x20] sm:$0xff] %v670
                  %v672 = vld [vmem:[%s660 + $0x28] sm:$0xff]
                  %673 = vst [vmem:[%s661 + $0x28] sm:$0xff] %v672
                  %v674 = vld [vmem:[%s660 + $0x30] sm:$0xff]
                  %675 = vst [vmem:[%s661 + $0x30] sm:$0xff] %v674
                  %v676 = vld [vmem:[%s660 + $0x38] sm:$0xff]
                  %677 = vst [vmem:[%s661 + $0x38] sm:$0xff] %v676
                  %v678 = vld [vmem:[%s660 + $0x40] sm:$0xff]
                  %679 = vst [vmem:[%s661 + $0x40] sm:$0xff] %v678
                  %v680 = vld [vmem:[%s660 + $0x48] sm:$0xff]
                  %681 = vst [vmem:[%s661 + $0x48] sm:$0xff] %v680
                  %v682 = vld [vmem:[%s660 + $0x50] sm:$0xff]
                  %683 = vst [vmem:[%s661 + $0x50] sm:$0xff] %v682
                  %v684 = vld [vmem:[%s660 + $0x58] sm:$0xff]
                  %685 = vst [vmem:[%s661 + $0x58] sm:$0xff] %v684
                  %v686 = vld [vmem:[%s660 + $0x60] sm:$0xff]
                  %687 = vst [vmem:[%s661 + $0x60] sm:$0xff] %v686
                  %v688 = vld [vmem:[%s660 + $0x68] sm:$0xff]
                  %689 = vst [vmem:[%s661 + $0x68] sm:$0xff] %v688
                  %v690 = vld [vmem:[%s660 + $0x70] sm:$0xff]
                  %691 = vst [vmem:[%s661 + $0x70] sm:$0xff] %v690
                  %v692 = vld [vmem:[%s660 + $0x78] sm:$0xff]
                  %693 = vst [vmem:[%s661 + $0x78] sm:$0xff] %v692
                  %v694 = vld [vmem:[%s660 + $0x80] sm:$0xff]
                  %695 = vst [vmem:[%s661 + $0x80] sm:$0xff] %v694
                  %v696 = vld [vmem:[%s660 + $0x88] sm:$0xff]
                  %697 = vst [vmem:[%s661 + $0x88] sm:$0xff] %v696
                  %v698 = vld [vmem:[%s660 + $0x90] sm:$0xff]
                  %699 = vst [vmem:[%s661 + $0x90] sm:$0xff] %v698
                  %v700 = vld [vmem:[%s660 + $0x98] sm:$0xff]
                  %701 = vst [vmem:[%s661 + $0x98] sm:$0xff] %v700
                  %v702 = vld [vmem:[%s660 + $0xa0] sm:$0xff]
                  %703 = vst [vmem:[%s661 + $0xa0] sm:$0xff] %v702
                  %v704 = vld [vmem:[%s660 + $0xa8] sm:$0xff]
                  %705 = vst [vmem:[%s661 + $0xa8] sm:$0xff] %v704
                  %v706 = vld [vmem:[%s660 + $0xb0] sm:$0xff]
                  %707 = vst [vmem:[%s661 + $0xb0] sm:$0xff] %v706
                  %v708 = vld [vmem:[%s660 + $0xb8] sm:$0xff]
                  %709 = vst [vmem:[%s661 + $0xb8] sm:$0xff] %v708
                  %v710 = vld [vmem:[%s660 + $0xc0] sm:$0xff]
                  %711 = vst [vmem:[%s661 + $0xc0] sm:$0xff] %v710
                  %v712 = vld [vmem:[%s660 + $0xc8] sm:$0xff]
                  %713 = vst [vmem:[%s661 + $0xc8] sm:$0xff] %v712
                  %v714 = vld [vmem:[%s660 + $0xd0] sm:$0xff]
                  %715 = vst [vmem:[%s661 + $0xd0] sm:$0xff] %v714
                  %v716 = vld [vmem:[%s660 + $0xd8] sm:$0xff]
                  %717 = vst [vmem:[%s661 + $0xd8] sm:$0xff] %v716
                  %v718 = vld [vmem:[%s660 + $0xe0] sm:$0xff]
                  %719 = vst [vmem:[%s661 + $0xe0] sm:$0xff] %v718
                  %v720 = vld [vmem:[%s660 + $0xe8] sm:$0xff]
                  %721 = vst [vmem:[%s661 + $0xe8] sm:$0xff] %v720
                  %v722 = vld [vmem:[%s660 + $0xf0] sm:$0xff]
                  %723 = vst [vmem:[%s661 + $0xf0] sm:$0xff] %v722
                  %v724 = vld [vmem:[%s660 + $0xf8] sm:$0xff]
                  %725 = vst [vmem:[%s661 + $0xf8] sm:$0xff] %v724
                  %v726 = vld [vmem:[%s660 + $0x200] sm:$0xff]
                  %727 = vst [vmem:[%s661 + $0x100] sm:$0xff] %v726
                  %v728 = vld [vmem:[%s660 + $0x208] sm:$0xff]
                  %729 = vst [vmem:[%s661 + $0x108] sm:$0xff] %v728
                  %v730 = vld [vmem:[%s660 + $0x210] sm:$0xff]
                  %731 = vst [vmem:[%s661 + $0x110] sm:$0xff] %v730
                  %v732 = vld [vmem:[%s660 + $0x218] sm:$0xff]
                  %733 = vst [vmem:[%s661 + $0x118] sm:$0xff] %v732
                  %v734 = vld [vmem:[%s660 + $0x220] sm:$0xff]
                  %735 = vst [vmem:[%s661 + $0x120] sm:$0xff] %v734
                  %v736 = vld [vmem:[%s660 + $0x228] sm:$0xff]
                  %737 = vst [vmem:[%s661 + $0x128] sm:$0xff] %v736
                  %v738 = vld [vmem:[%s660 + $0x230] sm:$0xff]
                  %739 = vst [vmem:[%s661 + $0x130] sm:$0xff] %v738
                  %v740 = vld [vmem:[%s660 + $0x238] sm:$0xff]
                  %741 = vst [vmem:[%s661 + $0x138] sm:$0xff] %v740
                  %v742 = vld [vmem:[%s660 + $0x240] sm:$0xff]
                  %743 = vst [vmem:[%s661 + $0x140] sm:$0xff] %v742
                  %v744 = vld [vmem:[%s660 + $0x248] sm:$0xff]
                  %745 = vst [vmem:[%s661 + $0x148] sm:$0xff] %v744
                  %v746 = vld [vmem:[%s660 + $0x250] sm:$0xff]
                  %747 = vst [vmem:[%s661 + $0x150] sm:$0xff] %v746
                  %v748 = vld [vmem:[%s660 + $0x258] sm:$0xff]
                  %749 = vst [vmem:[%s661 + $0x158] sm:$0xff] %v748
                  %v750 = vld [vmem:[%s660 + $0x260] sm:$0xff]
                  %751 = vst [vmem:[%s661 + $0x160] sm:$0xff] %v750
                  %v752 = vld [vmem:[%s660 + $0x268] sm:$0xff]
                  %753 = vst [vmem:[%s661 + $0x168] sm:$0xff] %v752
                  %v754 = vld [vmem:[%s660 + $0x270] sm:$0xff]
                  %755 = vst [vmem:[%s661 + $0x170] sm:$0xff] %v754
                  %v756 = vld [vmem:[%s660 + $0x278] sm:$0xff]
                  %757 = vst [vmem:[%s661 + $0x178] sm:$0xff] %v756
                  %v758 = vld [vmem:[%s660 + $0x280] sm:$0xff]
                  %759 = vst [vmem:[%s661 + $0x180] sm:$0xff] %v758
                  %v760 = vld [vmem:[%s660 + $0x288] sm:$0xff]
                  %761 = vst [vmem:[%s661 + $0x188] sm:$0xff] %v760
                  %v762 = vld [vmem:[%s660 + $0x290] sm:$0xff]
                  %763 = vst [vmem:[%s661 + $0x190] sm:$0xff] %v762
                  %v764 = vld [vmem:[%s660 + $0x298] sm:$0xff]
                  %765 = vst [vmem:[%s661 + $0x198] sm:$0xff] %v764
                  %v766 = vld [vmem:[%s660 + $0x2a0] sm:$0xff]
                  %767 = vst [vmem:[%s661 + $0x1a0] sm:$0xff] %v766
                  %v768 = vld [vmem:[%s660 + $0x2a8] sm:$0xff]
                  %769 = vst [vmem:[%s661 + $0x1a8] sm:$0xff] %v768
                  %v770 = vld [vmem:[%s660 + $0x2b0] sm:$0xff]
                  %771 = vst [vmem:[%s661 + $0x1b0] sm:$0xff] %v770
                  %v772 = vld [vmem:[%s660 + $0x2b8] sm:$0xff]
                  %773 = vst [vmem:[%s661 + $0x1b8] sm:$0xff] %v772
                  %v774 = vld [vmem:[%s660 + $0x2c0] sm:$0xff]
                  %775 = vst [vmem:[%s661 + $0x1c0] sm:$0xff] %v774
                  %v776 = vld [vmem:[%s660 + $0x2c8] sm:$0xff]
                  %777 = vst [vmem:[%s661 + $0x1c8] sm:$0xff] %v776
                  %v778 = vld [vmem:[%s660 + $0x2d0] sm:$0xff]
                  %779 = vst [vmem:[%s661 + $0x1d0] sm:$0xff] %v778
                  %v780 = vld [vmem:[%s660 + $0x2d8] sm:$0xff]
                  %781 = vst [vmem:[%s661 + $0x1d8] sm:$0xff] %v780
                  %v782 = vld [vmem:[%s660 + $0x2e0] sm:$0xff]
                  %783 = vst [vmem:[%s661 + $0x1e0] sm:$0xff] %v782
                  %v784 = vld [vmem:[%s660 + $0x2e8] sm:$0xff]
                  %785 = vst [vmem:[%s661 + $0x1e8] sm:$0xff] %v784
                  %v786 = vld [vmem:[%s660 + $0x2f0] sm:$0xff]
                  %787 = vst [vmem:[%s661 + $0x1f0] sm:$0xff] %v786
                  %v788 = vld [vmem:[%s660 + $0x2f8] sm:$0xff]
                  %789 = vst [vmem:[%s661 + $0x1f8] sm:$0xff] %v788
                $region104: #{tpu_custom_call.1} parent=98 // loop_footer
                  %s659 = sadd.s32 1, %s655
                $region105: #{tpu_custom_call.1} parent=98 // loop_footer_branch
                  %654 = sbr.rel target = $region101
                $region106: #{tpu_custom_call.1} parent=98 // loop_exit
                  _
              $region99: #{tpu_custom_call.1} parent=83 // pred_fallthru
                _
              // Predicated region
              $region107: #{tpu_custom_call.1} parent=83 // pred_check
                _
              $region108: #{tpu_custom_call.1} parent=83 // pred_check_branch
                %791 = sbr.rel target = $region110
              $region109: #{tpu_custom_call.1} parent=83 // pred_region
                _
              $region110: #{tpu_custom_call.1} parent=83 // pred_fallthru
                _
            $region84: #{tpu_custom_call.1} parent=79 // pred_fallthru
              _
            // Predicated region
            $region85: #{tpu_custom_call.1} parent=79 // pred_check
              _
            $region86: #{tpu_custom_call.1} parent=79 // pred_check_branch
              %513 = sbr.rel target = $region88
            $region87: #{tpu_custom_call.1} parent=79 // pred_region
              %s515 = ssub.s32 256, 1
              loop: start=0, step=1, limit=1
              $region89: #{tpu_custom_call.1} parent=87 // loop_pre_header
                _
              $region90: #{tpu_custom_call.1} parent=87 // loop_header
                %s517 = sphi 0, %s521
                %p518 = scmp.ge.s32.totalorder %s517, 1
                %s522 = sphi %s507, %s507
                %s523 = sphi %s504, %s504
              $region91: #{tpu_custom_call.1} parent=87 // loop_header_branch
                %520 = sbr.rel (%p518) target = $region95
              $region92: #{tpu_custom_call.1} parent=87 // loop_body
                %v524 = vld [vmem:[%s522] sm:%s515]
                %525 = vst [vmem:[%s523] sm:%s515] %v524
                %v526 = vld [vmem:[%s522 + $0x8] sm:%s515]
                %527 = vst [vmem:[%s523 + $0x8] sm:%s515] %v526
                %v528 = vld [vmem:[%s522 + $0x10] sm:%s515]
                %529 = vst [vmem:[%s523 + $0x10] sm:%s515] %v528
                %v530 = vld [vmem:[%s522 + $0x18] sm:%s515]
                %531 = vst [vmem:[%s523 + $0x18] sm:%s515] %v530
                %v532 = vld [vmem:[%s522 + $0x20] sm:%s515]
                %533 = vst [vmem:[%s523 + $0x20] sm:%s515] %v532
                %v534 = vld [vmem:[%s522 + $0x28] sm:%s515]
                %535 = vst [vmem:[%s523 + $0x28] sm:%s515] %v534
                %v536 = vld [vmem:[%s522 + $0x30] sm:%s515]
                %537 = vst [vmem:[%s523 + $0x30] sm:%s515] %v536
                %v538 = vld [vmem:[%s522 + $0x38] sm:%s515]
                %539 = vst [vmem:[%s523 + $0x38] sm:%s515] %v538
                %v540 = vld [vmem:[%s522 + $0x40] sm:%s515]
                %541 = vst [vmem:[%s523 + $0x40] sm:%s515] %v540
                %v542 = vld [vmem:[%s522 + $0x48] sm:%s515]
                %543 = vst [vmem:[%s523 + $0x48] sm:%s515] %v542
                %v544 = vld [vmem:[%s522 + $0x50] sm:%s515]
                %545 = vst [vmem:[%s523 + $0x50] sm:%s515] %v544
                %v546 = vld [vmem:[%s522 + $0x58] sm:%s515]
                %547 = vst [vmem:[%s523 + $0x58] sm:%s515] %v546
                %v548 = vld [vmem:[%s522 + $0x60] sm:%s515]
                %549 = vst [vmem:[%s523 + $0x60] sm:%s515] %v548
                %v550 = vld [vmem:[%s522 + $0x68] sm:%s515]
                %551 = vst [vmem:[%s523 + $0x68] sm:%s515] %v550
                %v552 = vld [vmem:[%s522 + $0x70] sm:%s515]
                %553 = vst [vmem:[%s523 + $0x70] sm:%s515] %v552
                %v554 = vld [vmem:[%s522 + $0x78] sm:%s515]
                %555 = vst [vmem:[%s523 + $0x78] sm:%s515] %v554
                %v556 = vld [vmem:[%s522 + $0x80] sm:%s515]
                %557 = vst [vmem:[%s523 + $0x80] sm:%s515] %v556
                %v558 = vld [vmem:[%s522 + $0x88] sm:%s515]
                %559 = vst [vmem:[%s523 + $0x88] sm:%s515] %v558
                %v560 = vld [vmem:[%s522 + $0x90] sm:%s515]
                %561 = vst [vmem:[%s523 + $0x90] sm:%s515] %v560
                %v562 = vld [vmem:[%s522 + $0x98] sm:%s515]
                %563 = vst [vmem:[%s523 + $0x98] sm:%s515] %v562
                %v564 = vld [vmem:[%s522 + $0xa0] sm:%s515]
                %565 = vst [vmem:[%s523 + $0xa0] sm:%s515] %v564
                %v566 = vld [vmem:[%s522 + $0xa8] sm:%s515]
                %567 = vst [vmem:[%s523 + $0xa8] sm:%s515] %v566
                %v568 = vld [vmem:[%s522 + $0xb0] sm:%s515]
                %569 = vst [vmem:[%s523 + $0xb0] sm:%s515] %v568
                %v570 = vld [vmem:[%s522 + $0xb8] sm:%s515]
                %571 = vst [vmem:[%s523 + $0xb8] sm:%s515] %v570
                %v572 = vld [vmem:[%s522 + $0xc0] sm:%s515]
                %573 = vst [vmem:[%s523 + $0xc0] sm:%s515] %v572
                %v574 = vld [vmem:[%s522 + $0xc8] sm:%s515]
                %575 = vst [vmem:[%s523 + $0xc8] sm:%s515] %v574
                %v576 = vld [vmem:[%s522 + $0xd0] sm:%s515]
                %577 = vst [vmem:[%s523 + $0xd0] sm:%s515] %v576
                %v578 = vld [vmem:[%s522 + $0xd8] sm:%s515]
                %579 = vst [vmem:[%s523 + $0xd8] sm:%s515] %v578
                %v580 = vld [vmem:[%s522 + $0xe0] sm:%s515]
                %581 = vst [vmem:[%s523 + $0xe0] sm:%s515] %v580
                %v582 = vld [vmem:[%s522 + $0xe8] sm:%s515]
                %583 = vst [vmem:[%s523 + $0xe8] sm:%s515] %v582
                %v584 = vld [vmem:[%s522 + $0xf0] sm:%s515]
                %585 = vst [vmem:[%s523 + $0xf0] sm:%s515] %v584
                %v586 = vld [vmem:[%s522 + $0xf8] sm:%s515]
                %587 = vst [vmem:[%s523 + $0xf8] sm:%s515] %v586
                %v588 = vld [vmem:[%s522 + $0x200] sm:%s515]
                %589 = vst [vmem:[%s523 + $0x100] sm:%s515] %v588
                %v590 = vld [vmem:[%s522 + $0x208] sm:%s515]
                %591 = vst [vmem:[%s523 + $0x108] sm:%s515] %v590
                %v592 = vld [vmem:[%s522 + $0x210] sm:%s515]
                %593 = vst [vmem:[%s523 + $0x110] sm:%s515] %v592
                %v594 = vld [vmem:[%s522 + $0x218] sm:%s515]
                %595 = vst [vmem:[%s523 + $0x118] sm:%s515] %v594
                %v596 = vld [vmem:[%s522 + $0x220] sm:%s515]
                %597 = vst [vmem:[%s523 + $0x120] sm:%s515] %v596
                %v598 = vld [vmem:[%s522 + $0x228] sm:%s515]
                %599 = vst [vmem:[%s523 + $0x128] sm:%s515] %v598
                %v600 = vld [vmem:[%s522 + $0x230] sm:%s515]
                %601 = vst [vmem:[%s523 + $0x130] sm:%s515] %v600
                %v602 = vld [vmem:[%s522 + $0x238] sm:%s515]
                %603 = vst [vmem:[%s523 + $0x138] sm:%s515] %v602
                %v604 = vld [vmem:[%s522 + $0x240] sm:%s515]
                %605 = vst [vmem:[%s523 + $0x140] sm:%s515] %v604
                %v606 = vld [vmem:[%s522 + $0x248] sm:%s515]
                %607 = vst [vmem:[%s523 + $0x148] sm:%s515] %v606
                %v608 = vld [vmem:[%s522 + $0x250] sm:%s515]
                %609 = vst [vmem:[%s523 + $0x150] sm:%s515] %v608
                %v610 = vld [vmem:[%s522 + $0x258] sm:%s515]
                %611 = vst [vmem:[%s523 + $0x158] sm:%s515] %v610
                %v612 = vld [vmem:[%s522 + $0x260] sm:%s515]
                %613 = vst [vmem:[%s523 + $0x160] sm:%s515] %v612
                %v614 = vld [vmem:[%s522 + $0x268] sm:%s515]
                %615 = vst [vmem:[%s523 + $0x168] sm:%s515] %v614
                %v616 = vld [vmem:[%s522 + $0x270] sm:%s515]
                %617 = vst [vmem:[%s523 + $0x170] sm:%s515] %v616
                %v618 = vld [vmem:[%s522 + $0x278] sm:%s515]
                %619 = vst [vmem:[%s523 + $0x178] sm:%s515] %v618
                %v620 = vld [vmem:[%s522 + $0x280] sm:%s515]
                %621 = vst [vmem:[%s523 + $0x180] sm:%s515] %v620
                %v622 = vld [vmem:[%s522 + $0x288] sm:%s515]
                %623 = vst [vmem:[%s523 + $0x188] sm:%s515] %v622
                %v624 = vld [vmem:[%s522 + $0x290] sm:%s515]
                %625 = vst [vmem:[%s523 + $0x190] sm:%s515] %v624
                %v626 = vld [vmem:[%s522 + $0x298] sm:%s515]
                %627 = vst [vmem:[%s523 + $0x198] sm:%s515] %v626
                %v628 = vld [vmem:[%s522 + $0x2a0] sm:%s515]
                %629 = vst [vmem:[%s523 + $0x1a0] sm:%s515] %v628
                %v630 = vld [vmem:[%s522 + $0x2a8] sm:%s515]
                %631 = vst [vmem:[%s523 + $0x1a8] sm:%s515] %v630
                %v632 = vld [vmem:[%s522 + $0x2b0] sm:%s515]
                %633 = vst [vmem:[%s523 + $0x1b0] sm:%s515] %v632
                %v634 = vld [vmem:[%s522 + $0x2b8] sm:%s515]
                %635 = vst [vmem:[%s523 + $0x1b8] sm:%s515] %v634
                %v636 = vld [vmem:[%s522 + $0x2c0] sm:%s515]
                %637 = vst [vmem:[%s523 + $0x1c0] sm:%s515] %v636
                %v638 = vld [vmem:[%s522 + $0x2c8] sm:%s515]
                %639 = vst [vmem:[%s523 + $0x1c8] sm:%s515] %v638
                %v640 = vld [vmem:[%s522 + $0x2d0] sm:%s515]
                %641 = vst [vmem:[%s523 + $0x1d0] sm:%s515] %v640
                %v642 = vld [vmem:[%s522 + $0x2d8] sm:%s515]
                %643 = vst [vmem:[%s523 + $0x1d8] sm:%s515] %v642
                %v644 = vld [vmem:[%s522 + $0x2e0] sm:%s515]
                %645 = vst [vmem:[%s523 + $0x1e0] sm:%s515] %v644
                %v646 = vld [vmem:[%s522 + $0x2e8] sm:%s515]
                %647 = vst [vmem:[%s523 + $0x1e8] sm:%s515] %v646
                %v648 = vld [vmem:[%s522 + $0x2f0] sm:%s515]
                %649 = vst [vmem:[%s523 + $0x1f0] sm:%s515] %v648
                %v650 = vld [vmem:[%s522 + $0x2f8] sm:%s515]
                %651 = vst [vmem:[%s523 + $0x1f8] sm:%s515] %v650
              $region93: #{tpu_custom_call.1} parent=87 // loop_footer
                %s521 = sadd.s32 1, %s517
              $region94: #{tpu_custom_call.1} parent=87 // loop_footer_branch
                %516 = sbr.rel target = $region90
              $region95: #{tpu_custom_call.1} parent=87 // loop_exit
                _
            $region88: #{tpu_custom_call.1} parent=79 // pred_fallthru
              _
          $region80: #{tpu_custom_call.1} parent=75 // pred_fallthru
            _
          %792 = vnop
        $region76: #{tpu_custom_call.1} parent=55 // pred_fallthru
          _
      $region56: #{tpu_custom_call.1} parent=5 // pred_fallthru
        _
      %p793 = scmp.le.s32.totalorder 1, %s27
      %p794 = scmp.lt.s32.totalorder %s27, 3
      %p795 = pnand %p793, %p794
      %p796 = pneg %p795
      // Predicated region
      $region111: #{tpu_custom_call.1} parent=5 // pred_check
        _
      $region112: #{tpu_custom_call.1} parent=5 // pred_check_branch
        %798 = sbr.rel (%p795) target = $region114
      $region113: #{tpu_custom_call.1} parent=5 // pred_region
        %s799 = ssub.s32 %s27, 1
        %s800 = sand.u32 %s165, 1
        %s801 = sand.u32 %s165, 1
        %s802 = smul.addr %s801, 512
        %s803 = scalar_lea.vmem [#allocation4], %s802
        // Predicated region
        $region115: #{tpu_custom_call.1} parent=113 // pred_check
          %p804 = pneg %p178
        $region116: #{tpu_custom_call.1} parent=113 // pred_check_branch
          %806 = sbr.rel (%p804) target = $region118
        $region117: #{tpu_custom_call.1} parent=113 // pred_region
          _
        $region118: #{tpu_custom_call.1} parent=113 // pred_fallthru
          _
        %p807 = pneg %p48
        %p808 = pneg %p45
        %s809 = smul.u32 32, %s32
        %p810 = scmp.lt.s32.totalorder %s809, 63
        %s811 = scalar_select %p810, %s809, 63
        %s812 = smul.addr %s811, 8
        %s813 = scalar_lea.vmem %s1, %s812
        %p814 = pneg %p74
        %p815 = pneg %p71
        %s816 = smul.u32 32, %s32
        %p817 = scmp.lt.s32.totalorder %s816, 63
        %s818 = scalar_select %p817, %s816, 63
        %s819 = smul.addr %s818, 8
        %s820 = scalar_lea.vmem %s2, %s819
        %p821 = pneg %p100
        %p822 = pneg %p97
        %s823 = smul.u32 32, %s32
        %p824 = scmp.lt.s32.totalorder %s823, 63
        %s825 = scalar_select %p824, %s823, 63
        %s826 = smul.addr %s825, 8
        %s827 = scalar_lea.vmem %s3, %s826
        %p828 = pneg %p126
        %p829 = pneg %p123
        %s830 = smul.u32 2, %s32
        %p831 = scmp.lt.s32.totalorder %s830, 3
        %s832 = scalar_select %p831, %s830, 3
        %s833 = scalar_lea.vmem %s4, %s832
        %p834 = pneg %p152
        %p835 = pneg %p149
        %s836 = sand.u32 %s165, 1
        %s837 = sand.u32 %s165, 1
        %s838 = smul.addr %s837, 512
        %s839 = scalar_lea.vmem [#allocation4], %s838
        %p840 = pneg %p178
        %p841 = pneg %p175
        %p842 = pneg %p199
        %p843 = pneg %p196
        %p844 = pneg %p220
        %p845 = pneg %p217
        %p846 = pneg %p241
        %p847 = pneg %p238
        %p848 = pneg %p262
        %p849 = pneg %p259
        %p850 = pneg %p283
        %p851 = pneg %p280
        %p852 = pneg %p304
        %p853 = pneg %p301
        %p854 = pneg %p325
        %p855 = pneg %p322
        %p856 = pneg %p346
        %p857 = pneg %p343
        %p858 = pneg %p367
        %p859 = pneg %p364
        %p860 = pneg %p388
        %p861 = pneg %p385
        %p862 = pneg %p414
        %p863 = pneg %p411
        %s864 = sand.u32 %s401, 1
        %s865 = scalar_lea.sflag [#allocation8], %s864
        %s866 = sand.u32 %s401, 1
        %s867 = smul.addr %s866, 256
        %s868 = scalar_lea.vmem [#allocation7], %s867
        %s869 = smul.u32 32, %s32
        %p870 = scmp.lt.s32.totalorder %s869, 63
        %s871 = scalar_select %p870, %s869, 63
        %s872 = smul.addr %s871, 8
        %s873 = scalar_lea.vmem %s1, %s872
        %s874 = smul.u32 32, %s32
        %s875 = smul.u32 32, %s32
        %p876 = scmp.lt.s32.totalorder %s875, 63
        %s877 = scalar_select %p876, %s875, 63
        %s878 = smul.addr %s877, 8
        %s879 = scalar_lea.vmem %s2, %s878
        %s880 = smul.u32 32, %s32
        %s881 = smul.u32 32, %s32
        %p882 = scmp.lt.s32.totalorder %s881, 63
        %s883 = scalar_select %p882, %s881, 63
        %s884 = smul.addr %s883, 8
        %s885 = scalar_lea.vmem %s3, %s884
        %s886 = smul.u32 32, %s32
        %s887 = smul.u32 2, %s32
        %p888 = scmp.lt.s32.totalorder %s887, 3
        %s889 = scalar_select %p888, %s887, 3
        %s890 = scalar_lea.vmem %s4, %s889
        %s891 = smul.u32 2, %s32
        %s892 = smul.u32 32, %s32
        %s893 = smul.u32 32, %s32
        %p895 = scmp.eq.s32.totalorder %s32, 0
        // Predicated region
        $region119: #{tpu_custom_call.1} parent=113 // pred_check
          %p896 = pneg %p895
        $region120: #{tpu_custom_call.1} parent=113 // pred_check_branch
          %898 = sbr.rel (%p896) target = $region122
        $region121: #{tpu_custom_call.1} parent=113 // pred_region
          %v899 = vld [vmem:[%s0] sm:$0xf]
          %v900 = vld [vmem:[%s0 + $0x4] sm:$0xf]
          %v901 = vld [vmem:[%s0 + $0x8] sm:$0xf]
          %v902 = vld [vmem:[%s0 + $0xc] sm:$0xf]
          %v903 = vld [vmem:[%s0 + $0x10] sm:$0xf]
          %v904 = vld [vmem:[%s0 + $0x14] sm:$0xf]
          %v905 = vld [vmem:[%s0 + $0x18] sm:$0xf]
          %v906 = vld [vmem:[%s0 + $0x1c] sm:$0xf]
          %v907 = vld [vmem:[%s0 + $0x20] sm:$0xf]
          %v908 = vld [vmem:[%s0 + $0x24] sm:$0xf]
          %v909 = vld [vmem:[%s0 + $0x28] sm:$0xf]
          %v910 = vld [vmem:[%s0 + $0x2c] sm:$0xf]
          %v911 = vld [vmem:[%s0 + $0x30] sm:$0xf]
          %v912 = vld [vmem:[%s0 + $0x34] sm:$0xf]
          %v913 = vld [vmem:[%s0 + $0x38] sm:$0xf]
          %v914 = vld [vmem:[%s0 + $0x3c] sm:$0xf]
          %v915 = vld [vmem:[%s7] sm:$0xff]
          %v916 = vld [vmem:[%s7 + $0x8] sm:$0xff]
          %v917 = vld [vmem:[%s7 + $0x10] sm:$0xf]
          %v918 = vld [vmem:[%s7 + $0x14] sm:$0xff]
          %v919 = vld [vmem:[%s7 + $0x1c] sm:$0xff]
          %v920 = vld [vmem:[%s7 + $0x24] sm:$0xf]
          %v921 = vld [vmem:[%s7 + $0x28] sm:$0xff]
          %v922 = vld [vmem:[%s7 + $0x30] sm:$0xff]
          %v923 = vld [vmem:[%s7 + $0x38] sm:$0xf]
          %v924 = vld [vmem:[%s7 + $0x3c] sm:$0xff]
          %v925 = vld [vmem:[%s7 + $0x44] sm:$0xff]
          %v926 = vld [vmem:[%s7 + $0x4c] sm:$0xf]
          %v927 = vld [vmem:[%s7 + $0x50] sm:$0xff]
          %v928 = vld [vmem:[%s7 + $0x58] sm:$0xff]
          %v929 = vld [vmem:[%s7 + $0x60] sm:$0xf]
          %v930 = vld [vmem:[%s7 + $0x64] sm:$0xff]
          %v931 = vld [vmem:[%s7 + $0x6c] sm:$0xff]
          %v932 = vld [vmem:[%s7 + $0x74] sm:$0xf]
          %v933 = vld [vmem:[%s7 + $0x78] sm:$0xff]
          %v934 = vld [vmem:[%s7 + $0x80] sm:$0xff]
          %v935 = vld [vmem:[%s7 + $0x88] sm:$0xf]
          %v936 = vld [vmem:[%s7 + $0x8c] sm:$0xff]
          %v937 = vld [vmem:[%s7 + $0x94] sm:$0xff]
          %v938 = vld [vmem:[%s7 + $0x9c] sm:$0xf]
          %v939 = vld [vmem:[%s7 + $0xa0] sm:$0xff]
          %v940 = vld [vmem:[%s7 + $0xa8] sm:$0xff]
          %v941 = vld [vmem:[%s7 + $0xb0] sm:$0xf]
          %v942 = vld [vmem:[%s7 + $0xb4] sm:$0xff]
          %v943 = vld [vmem:[%s7 + $0xbc] sm:$0xff]
          %v944 = vld [vmem:[%s7 + $0xc4] sm:$0xf]
          %v945 = vld [vmem:[%s7 + $0xc8] sm:$0xff]
          %v946 = vld [vmem:[%s7 + $0xd0] sm:$0xff]
          %v947 = vld [vmem:[%s7 + $0xd8] sm:$0xf]
          %v948 = vld [vmem:[%s7 + $0xdc] sm:$0xff]
          %v949 = vld [vmem:[%s7 + $0xe4] sm:$0xff]
          %v950 = vld [vmem:[%s7 + $0xec] sm:$0xf]
          %v951 = vld [vmem:[%s7 + $0xf0] sm:$0xff]
          %v952 = vld [vmem:[%s7 + $0xf8] sm:$0xff]
          %v953 = vld [vmem:[%s7 + $0x100] sm:$0xf]
          %v954 = vld [vmem:[%s7 + $0x104] sm:$0xff]
          %v955 = vld [vmem:[%s7 + $0x10c] sm:$0xff]
          %v956 = vld [vmem:[%s7 + $0x114] sm:$0xf]
          %v957 = vld [vmem:[%s7 + $0x118] sm:$0xff]
          %v958 = vld [vmem:[%s7 + $0x120] sm:$0xff]
          %v959 = vld [vmem:[%s7 + $0x128] sm:$0xf]
          %v960 = vld [vmem:[%s7 + $0x12c] sm:$0xff]
          %v961 = vld [vmem:[%s7 + $0x134] sm:$0xff]
          %v962 = vld [vmem:[%s7 + $0x13c] sm:$0xf]
          %v979 = vunpack.c.l.b16 %v899
          %v980 = vunpack.c.l.b16 %v900
          %v981 = vunpack.c.l.b16 %v901
          %v982 = vunpack.c.l.b16 %v902
          %v983 = vunpack.c.l.b16 %v903
          %v984 = vunpack.c.l.b16 %v904
          %v985 = vunpack.c.l.b16 %v905
          %v986 = vunpack.c.l.b16 %v906
          %v987 = vunpack.c.l.b16 %v907
          %v988 = vunpack.c.l.b16 %v908
          %v989 = vunpack.c.l.b16 %v909
          %v990 = vunpack.c.l.b16 %v910
          %v991 = vunpack.c.l.b16 %v911
          %v992 = vunpack.c.l.b16 %v912
          %v993 = vunpack.c.l.b16 %v913
          %v994 = vunpack.c.l.b16 %v914
          %v995 = vpack.c.b16 %v980, %v979
          %v996 = vpack.c.b16 %v982, %v981
          %v997 = vpack.c.b16 %v984, %v983
          %v998 = vpack.c.b16 %v986, %v985
          %v999 = vpack.c.b16 %v988, %v987
          %v1000 = vpack.c.b16 %v990, %v989
          %v1001 = vpack.c.b16 %v992, %v991
          %v1002 = vpack.c.b16 %v994, %v993
          %v1059 = vunpack.c.l.b16 %v915
          %v1060 = vunpack.c.h.b16 %v915
          %v1061 = vunpack.c.l.b16 %v916
          %v1062 = vunpack.c.h.b16 %v916
          %v1063 = vunpack.c.l.b16 %v917
          %v1064 = vunpack.c.l.b16 %v918
          %v1065 = vunpack.c.h.b16 %v918
          %v1066 = vunpack.c.l.b16 %v919
          %v1067 = vunpack.c.h.b16 %v919
          %v1068 = vunpack.c.l.b16 %v920
          %v1069 = vunpack.c.l.b16 %v921
          %v1070 = vunpack.c.h.b16 %v921
          %v1071 = vunpack.c.l.b16 %v922
          %v1072 = vunpack.c.h.b16 %v922
          %v1073 = vunpack.c.l.b16 %v923
          %v1074 = vunpack.c.l.b16 %v924
          %v1075 = vunpack.c.h.b16 %v924
          %v1076 = vunpack.c.l.b16 %v925
          %v1077 = vunpack.c.h.b16 %v925
          %v1078 = vunpack.c.l.b16 %v926
          %v1079 = vunpack.c.l.b16 %v927
          %v1080 = vunpack.c.h.b16 %v927
          %v1081 = vunpack.c.l.b16 %v928
          %v1082 = vunpack.c.h.b16 %v928
          %v1083 = vunpack.c.l.b16 %v929
          %v1084 = vunpack.c.l.b16 %v930
          %v1085 = vunpack.c.h.b16 %v930
          %v1086 = vunpack.c.l.b16 %v931
          %v1087 = vunpack.c.h.b16 %v931
          %v1088 = vunpack.c.l.b16 %v932
          %v1089 = vunpack.c.l.b16 %v933
          %v1090 = vunpack.c.h.b16 %v933
          %v1091 = vunpack.c.l.b16 %v934
          %v1092 = vunpack.c.h.b16 %v934
          %v1093 = vunpack.c.l.b16 %v935
          %v1094 = vunpack.c.l.b16 %v936
          %v1095 = vunpack.c.h.b16 %v936
          %v1096 = vunpack.c.l.b16 %v937
          %v1097 = vunpack.c.h.b16 %v937
          %v1098 = vunpack.c.l.b16 %v938
          %v1099 = vunpack.c.l.b16 %v939
          %v1100 = vunpack.c.h.b16 %v939
          %v1101 = vunpack.c.l.b16 %v940
          %v1102 = vunpack.c.h.b16 %v940
          %v1103 = vunpack.c.l.b16 %v941
          %v1104 = vunpack.c.l.b16 %v942
          %v1105 = vunpack.c.h.b16 %v942
          %v1106 = vunpack.c.l.b16 %v943
          %v1107 = vunpack.c.h.b16 %v943
          %v1108 = vunpack.c.l.b16 %v944
          %v1109 = vunpack.c.l.b16 %v945
          %v1110 = vunpack.c.h.b16 %v945
          %v1111 = vunpack.c.l.b16 %v946
          %v1112 = vunpack.c.h.b16 %v946
          %v1113 = vunpack.c.l.b16 %v947
          %v1114 = vunpack.c.l.b16 %v948
          %v1115 = vunpack.c.h.b16 %v948
          %v1116 = vunpack.c.l.b16 %v949
          %v1117 = vunpack.c.h.b16 %v949
          %v1118 = vunpack.c.l.b16 %v950
          %v1119 = vunpack.c.l.b16 %v951
          %v1120 = vunpack.c.h.b16 %v951
          %v1121 = vunpack.c.l.b16 %v952
          %v1122 = vunpack.c.h.b16 %v952
          %v1123 = vunpack.c.l.b16 %v953
          %v1124 = vunpack.c.l.b16 %v954
          %v1125 = vunpack.c.h.b16 %v954
          %v1126 = vunpack.c.l.b16 %v955
          %v1127 = vunpack.c.h.b16 %v955
          %v1128 = vunpack.c.l.b16 %v956
          %v1129 = vunpack.c.l.b16 %v957
          %v1130 = vunpack.c.h.b16 %v957
          %v1131 = vunpack.c.l.b16 %v958
          %v1132 = vunpack.c.h.b16 %v958
          %v1133 = vunpack.c.l.b16 %v959
          %v1134 = vunpack.c.l.b16 %v960
          %v1135 = vunpack.c.h.b16 %v960
          %v1136 = vunpack.c.l.b16 %v961
          %v1137 = vunpack.c.h.b16 %v961
          %v1138 = vunpack.c.l.b16 %v962
          %v1139 = vpack.c.b16 %v1064, %v1059
          %v1140 = vpack.c.b16 %v1065, %v1060
          %v1141 = vpack.c.b16 %v1066, %v1061
          %v1142 = vpack.c.b16 %v1067, %v1062
          %v1143 = vpack.c.b16 %v1068, %v1063
          %v1144 = vpack.c.b16 %v1074, %v1069
          %v1145 = vpack.c.b16 %v1075, %v1070
          %v1146 = vpack.c.b16 %v1076, %v1071
          %v1147 = vpack.c.b16 %v1077, %v1072
          %v1148 = vpack.c.b16 %v1078, %v1073
          %v1149 = vpack.c.b16 %v1084, %v1079
          %v1150 = vpack.c.b16 %v1085, %v1080
          %v1151 = vpack.c.b16 %v1086, %v1081
          %v1152 = vpack.c.b16 %v1087, %v1082
          %v1153 = vpack.c.b16 %v1088, %v1083
          %v1154 = vpack.c.b16 %v1094, %v1089
          %v1155 = vpack.c.b16 %v1095, %v1090
          %v1156 = vpack.c.b16 %v1096, %v1091
          %v1157 = vpack.c.b16 %v1097, %v1092
          %v1158 = vpack.c.b16 %v1098, %v1093
          %v1159 = vpack.c.b16 %v1104, %v1099
          %v1160 = vpack.c.b16 %v1105, %v1100
          %v1161 = vpack.c.b16 %v1106, %v1101
          %v1162 = vpack.c.b16 %v1107, %v1102
          %v1163 = vpack.c.b16 %v1108, %v1103
          %v1164 = vpack.c.b16 %v1114, %v1109
          %v1165 = vpack.c.b16 %v1115, %v1110
          %v1166 = vpack.c.b16 %v1116, %v1111
          %v1167 = vpack.c.b16 %v1117, %v1112
          %v1168 = vpack.c.b16 %v1118, %v1113
          %v1169 = vpack.c.b16 %v1124, %v1119
          %v1170 = vpack.c.b16 %v1125, %v1120
          %v1171 = vpack.c.b16 %v1126, %v1121
          %v1172 = vpack.c.b16 %v1127, %v1122
          %v1173 = vpack.c.b16 %v1128, %v1123
          %v1174 = vpack.c.b16 %v1134, %v1129
          %v1175 = vpack.c.b16 %v1135, %v1130
          %v1176 = vpack.c.b16 %v1136, %v1131
          %v1177 = vpack.c.b16 %v1137, %v1132
          %v1178 = vpack.c.b16 %v1138, %v1133
          %1219 = vmatprep.subr.bf16.mxu0 %v1175
          %1220 = vmatpush1.bf16.msra.mxu0 %v1174
          %1221 = vmatprep.subr.bf16.mxu0 %v1170
          %1222 = vmatpush1.bf16.msra.mxu0 %v1169
          %1223 = vmatprep.subr.bf16.mxu0 %v1165
          %1224 = vmatpush1.bf16.msra.mxu0 %v1164
          %1225 = vmatprep.subr.bf16.mxu0 %v1160
          %1226 = vmatpush1.bf16.msra.mxu0 %v1159
          %1227 = vmatprep.subr.bf16.mxu0 %v1155
          %1228 = vmatpush1.bf16.msra.mxu0 %v1154
          %1229 = vmatprep.subr.bf16.mxu0 %v1150
          %1230 = vmatpush1.bf16.msra.mxu0 %v1149
          %1231 = vmatprep.subr.bf16.mxu0 %v1145
          %1232 = vmatpush1.bf16.msra.mxu0 %v1144
          %1233 = vmatprep.subr.bf16.mxu0 %v1140
          %1234 = vmatpush1.bf16.msra.mxu0 %v1139
          %1235 = vmatprep.subr.bf16.mxu0 0
          %1236 = vmatpush2.bf16.msra.mxu0 0
          %1237 = vmatprep.subr.bf16.mxu0 0
          %1238 = vmatpush2.bf16.msra.mxu0 0
          %1239 = vmatprep.subr.bf16.mxu0 0
          %1240 = vmatpush2.bf16.msra.mxu0 0
          %1241 = vmatprep.subr.bf16.mxu0 0
          %1242 = vmatpush2.bf16.msra.mxu0 0
          %1243 = vmatprep.subr.bf16.mxu0 0
          %1244 = vmatpush2.bf16.msra.mxu0 0
          %1245 = vmatprep.subr.bf16.mxu0 0
          %1246 = vmatpush2.bf16.msra.mxu0 0
          %1247 = vmatprep.subr.bf16.mxu0 0
          %1248 = vmatpush2.bf16.msra.mxu0 0
          %1249 = vmatprep.subr.bf16.mxu0 0
          %1250 = vmatpush2.bf16.msra.mxu0 0
          %1251 = vmatprep.mubr.bf16.mxu0 0
          %1252 = vmatmul.mubr.bf16.gmra.mxu0 %v995
          %v1253 = vpop.f32.mrf.mxu0
          %v1254 = vadd.f32 0.0, %v1253
          %v1255 = vpop.f32.mrf.mxu0
          %v1256 = vadd.f32 0.0, %v1255
          %v1257 = vpop.f32.mrf.mxu0
          %v1258 = vadd.f32 0.0, %v1257
          %v1259 = vpop.f32.mrf.mxu0
          %v1260 = vadd.f32 0.0, %v1259
          %1261 = vmatprep.mubr.bf16.mxu0 0
          %1262 = vmatmul.mubr.bf16.gmra.mxu0 %v996
          %v1263 = vpop.f32.mrf.mxu0
          %v1264 = vadd.f32 0.0, %v1263
          %v1265 = vpop.f32.mrf.mxu0
          %v1266 = vadd.f32 0.0, %v1265
          %v1267 = vpop.f32.mrf.mxu0
          %v1268 = vadd.f32 0.0, %v1267
          %v1269 = vpop.f32.mrf.mxu0
          %v1270 = vadd.f32 0.0, %v1269
          %1271 = vmatprep.mubr.bf16.mxu0 0
          %1272 = vmatmul.mubr.bf16.gmra.mxu0 %v997
          %v1273 = vpop.f32.mrf.mxu0
          %v1274 = vadd.f32 0.0, %v1273
          %v1275 = vpop.f32.mrf.mxu0
          %v1276 = vadd.f32 0.0, %v1275
          %v1277 = vpop.f32.mrf.mxu0
          %v1278 = vadd.f32 0.0, %v1277
          %v1279 = vpop.f32.mrf.mxu0
          %v1280 = vadd.f32 0.0, %v1279
          %1281 = vmatprep.mubr.bf16.mxu0 0
          %1282 = vmatmul.mubr.bf16.gmra.mxu0 %v998
          %v1283 = vpop.f32.mrf.mxu0
          %v1284 = vadd.f32 0.0, %v1283
          %v1285 = vpop.f32.mrf.mxu0
          %v1286 = vadd.f32 0.0, %v1285
          %v1287 = vpop.f32.mrf.mxu0
          %v1288 = vadd.f32 0.0, %v1287
          %v1289 = vpop.f32.mrf.mxu0
          %v1290 = vadd.f32 0.0, %v1289
          %1291 = vmatprep.mubr.bf16.mxu0 0
          %1292 = vmatmul.mubr.bf16.gmra.mxu0 %v999
          %v1293 = vpop.f32.mrf.mxu0
          %v1294 = vadd.f32 0.0, %v1293
          %v1295 = vpop.f32.mrf.mxu0
          %v1296 = vadd.f32 0.0, %v1295
          %v1297 = vpop.f32.mrf.mxu0
          %v1298 = vadd.f32 0.0, %v1297
          %v1299 = vpop.f32.mrf.mxu0
          %v1300 = vadd.f32 0.0, %v1299
          %1301 = vmatprep.mubr.bf16.mxu0 0
          %1302 = vmatmul.mubr.bf16.gmra.mxu0 %v1000
          %v1303 = vpop.f32.mrf.mxu0
          %v1304 = vadd.f32 0.0, %v1303
          %v1305 = vpop.f32.mrf.mxu0
          %v1306 = vadd.f32 0.0, %v1305
          %v1307 = vpop.f32.mrf.mxu0
          %v1308 = vadd.f32 0.0, %v1307
          %v1309 = vpop.f32.mrf.mxu0
          %v1310 = vadd.f32 0.0, %v1309
          %1311 = vmatprep.mubr.bf16.mxu0 0
          %1312 = vmatmul.mubr.bf16.gmra.mxu0 %v1001
          %v1313 = vpop.f32.mrf.mxu0
          %v1314 = vadd.f32 0.0, %v1313
          %v1315 = vpop.f32.mrf.mxu0
          %v1316 = vadd.f32 0.0, %v1315
          %v1317 = vpop.f32.mrf.mxu0
          %v1318 = vadd.f32 0.0, %v1317
          %v1319 = vpop.f32.mrf.mxu0
          %v1320 = vadd.f32 0.0, %v1319
          %1321 = vmatprep.mubr.bf16.mxu0 0
          %1322 = vmatmul.mubr.bf16.gmra.mxu0 %v1002
          %v1323 = vpop.f32.mrf.mxu0
          %v1324 = vadd.f32 0.0, %v1323
          %v1325 = vpop.f32.mrf.mxu0
          %v1326 = vadd.f32 0.0, %v1325
          %v1327 = vpop.f32.mrf.mxu0
          %v1328 = vadd.f32 0.0, %v1327
          %v1329 = vpop.f32.mrf.mxu0
          %v1330 = vadd.f32 0.0, %v1329
          %1331 = vdwg.mxu0
          %1332 = vmatprep.subr.bf16.mxu0 %v1177
          %1333 = vmatpush1.bf16.msra.mxu0 %v1176
          %1334 = vmatprep.subr.bf16.mxu0 %v1172
          %1335 = vmatpush1.bf16.msra.mxu0 %v1171
          %1336 = vmatprep.subr.bf16.mxu0 %v1167
          %1337 = vmatpush1.bf16.msra.mxu0 %v1166
          %1338 = vmatprep.subr.bf16.mxu0 %v1162
          %1339 = vmatpush1.bf16.msra.mxu0 %v1161
          %1340 = vmatprep.subr.bf16.mxu0 %v1157
          %1341 = vmatpush1.bf16.msra.mxu0 %v1156
          %1342 = vmatprep.subr.bf16.mxu0 %v1152
          %1343 = vmatpush1.bf16.msra.mxu0 %v1151
          %1344 = vmatprep.subr.bf16.mxu0 %v1147
          %1345 = vmatpush1.bf16.msra.mxu0 %v1146
          %1346 = vmatprep.subr.bf16.mxu0 %v1142
          %1347 = vmatpush1.bf16.msra.mxu0 %v1141
          %1348 = vmatprep.subr.bf16.mxu0 0
          %1349 = vmatpush2.bf16.msra.mxu0 0
          %1350 = vmatprep.subr.bf16.mxu0 0
          %1351 = vmatpush2.bf16.msra.mxu0 0
          %1352 = vmatprep.subr.bf16.mxu0 0
          %1353 = vmatpush2.bf16.msra.mxu0 0
          %1354 = vmatprep.subr.bf16.mxu0 0
          %1355 = vmatpush2.bf16.msra.mxu0 0
          %1356 = vmatprep.subr.bf16.mxu0 0
          %1357 = vmatpush2.bf16.msra.mxu0 0
          %1358 = vmatprep.subr.bf16.mxu0 0
          %1359 = vmatpush2.bf16.msra.mxu0 0
          %1360 = vmatprep.subr.bf16.mxu0 0
          %1361 = vmatpush2.bf16.msra.mxu0 0
          %1362 = vmatprep.subr.bf16.mxu0 0
          %1363 = vmatpush2.bf16.msra.mxu0 0
          %1364 = vmatprep.mubr.bf16.mxu0 0
          %1365 = vmatmul.mubr.bf16.gmra.mxu0 %v995
          %v1366 = vpop.f32.mrf.mxu0
          %v1367 = vadd.f32 0.0, %v1366
          %v1368 = vpop.f32.mrf.mxu0
          %v1369 = vadd.f32 0.0, %v1368
          %v1370 = vpop.f32.mrf.mxu0
          %v1371 = vadd.f32 0.0, %v1370
          %v1372 = vpop.f32.mrf.mxu0
          %v1373 = vadd.f32 0.0, %v1372
          %1374 = vmatprep.mubr.bf16.mxu0 0
          %1375 = vmatmul.mubr.bf16.gmra.mxu0 %v996
          %v1376 = vpop.f32.mrf.mxu0
          %v1377 = vadd.f32 0.0, %v1376
          %v1378 = vpop.f32.mrf.mxu0
          %v1379 = vadd.f32 0.0, %v1378
          %v1380 = vpop.f32.mrf.mxu0
          %v1381 = vadd.f32 0.0, %v1380
          %v1382 = vpop.f32.mrf.mxu0
          %v1383 = vadd.f32 0.0, %v1382
          %1384 = vmatprep.mubr.bf16.mxu0 0
          %1385 = vmatmul.mubr.bf16.gmra.mxu0 %v997
          %v1386 = vpop.f32.mrf.mxu0
          %v1387 = vadd.f32 0.0, %v1386
          %v1388 = vpop.f32.mrf.mxu0
          %v1389 = vadd.f32 0.0, %v1388
          %v1390 = vpop.f32.mrf.mxu0
          %v1391 = vadd.f32 0.0, %v1390
          %v1392 = vpop.f32.mrf.mxu0
          %v1393 = vadd.f32 0.0, %v1392
          %1394 = vmatprep.mubr.bf16.mxu0 0
          %1395 = vmatmul.mubr.bf16.gmra.mxu0 %v998
          %v1396 = vpop.f32.mrf.mxu0
          %v1397 = vadd.f32 0.0, %v1396
          %v1398 = vpop.f32.mrf.mxu0
          %v1399 = vadd.f32 0.0, %v1398
          %v1400 = vpop.f32.mrf.mxu0
          %v1401 = vadd.f32 0.0, %v1400
          %v1402 = vpop.f32.mrf.mxu0
          %v1403 = vadd.f32 0.0, %v1402
          %1404 = vmatprep.mubr.bf16.mxu0 0
          %1405 = vmatmul.mubr.bf16.gmra.mxu0 %v999
          %v1406 = vpop.f32.mrf.mxu0
          %v1407 = vadd.f32 0.0, %v1406
          %v1408 = vpop.f32.mrf.mxu0
          %v1409 = vadd.f32 0.0, %v1408
          %v1410 = vpop.f32.mrf.mxu0
          %v1411 = vadd.f32 0.0, %v1410
          %v1412 = vpop.f32.mrf.mxu0
          %v1413 = vadd.f32 0.0, %v1412
          %1414 = vmatprep.mubr.bf16.mxu0 0
          %1415 = vmatmul.mubr.bf16.gmra.mxu0 %v1000
          %v1416 = vpop.f32.mrf.mxu0
          %v1417 = vadd.f32 0.0, %v1416
          %v1418 = vpop.f32.mrf.mxu0
          %v1419 = vadd.f32 0.0, %v1418
          %v1420 = vpop.f32.mrf.mxu0
          %v1421 = vadd.f32 0.0, %v1420
          %v1422 = vpop.f32.mrf.mxu0
          %v1423 = vadd.f32 0.0, %v1422
          %1424 = vmatprep.mubr.bf16.mxu0 0
          %1425 = vmatmul.mubr.bf16.gmra.mxu0 %v1001
          %v1426 = vpop.f32.mrf.mxu0
          %v1427 = vadd.f32 0.0, %v1426
          %v1428 = vpop.f32.mrf.mxu0
          %v1429 = vadd.f32 0.0, %v1428
          %v1430 = vpop.f32.mrf.mxu0
          %v1431 = vadd.f32 0.0, %v1430
          %v1432 = vpop.f32.mrf.mxu0
          %v1433 = vadd.f32 0.0, %v1432
          %1434 = vmatprep.mubr.bf16.mxu0 0
          %1435 = vmatmul.mubr.bf16.gmra.mxu0 %v1002
          %v1436 = vpop.f32.mrf.mxu0
          %v1437 = vadd.f32 0.0, %v1436
          %v1438 = vpop.f32.mrf.mxu0
          %v1439 = vadd.f32 0.0, %v1438
          %v1440 = vpop.f32.mrf.mxu0
          %v1441 = vadd.f32 0.0, %v1440
          %v1442 = vpop.f32.mrf.mxu0
          %v1443 = vadd.f32 0.0, %v1442
          %1444 = vdwg.mxu0
          %1445 = vmatprep.subr.bf16.mxu0 0
          %1446 = vmatpush1.bf16.msra.mxu0 %v1178
          %1447 = vmatprep.subr.bf16.mxu0 0
          %1448 = vmatpush1.bf16.msra.mxu0 %v1173
          %1449 = vmatprep.subr.bf16.mxu0 0
          %1450 = vmatpush1.bf16.msra.mxu0 %v1168
          %1451 = vmatprep.subr.bf16.mxu0 0
          %1452 = vmatpush1.bf16.msra.mxu0 %v1163
          %1453 = vmatprep.subr.bf16.mxu0 0
          %1454 = vmatpush1.bf16.msra.mxu0 %v1158
          %1455 = vmatprep.subr.bf16.mxu0 0
          %1456 = vmatpush1.bf16.msra.mxu0 %v1153
          %1457 = vmatprep.subr.bf16.mxu0 0
          %1458 = vmatpush1.bf16.msra.mxu0 %v1148
          %1459 = vmatprep.subr.bf16.mxu0 0
          %1460 = vmatpush1.bf16.msra.mxu0 %v1143
          %1461 = vmatprep.subr.bf16.mxu0 0
          %1462 = vmatpush2.bf16.msra.mxu0 0
          %1463 = vmatprep.subr.bf16.mxu0 0
          %1464 = vmatpush2.bf16.msra.mxu0 0
          %1465 = vmatprep.subr.bf16.mxu0 0
          %1466 = vmatpush2.bf16.msra.mxu0 0
          %1467 = vmatprep.subr.bf16.mxu0 0
          %1468 = vmatpush2.bf16.msra.mxu0 0
          %1469 = vmatprep.subr.bf16.mxu0 0
          %1470 = vmatpush2.bf16.msra.mxu0 0
          %1471 = vmatprep.subr.bf16.mxu0 0
          %1472 = vmatpush2.bf16.msra.mxu0 0
          %1473 = vmatprep.subr.bf16.mxu0 0
          %1474 = vmatpush2.bf16.msra.mxu0 0
          %1475 = vmatprep.subr.bf16.mxu0 0
          %1476 = vmatpush2.bf16.msra.mxu0 0
          %1477 = vmatprep.mubr.bf16.mxu0 0
          %1478 = vmatmul.mubr.bf16.gmra.mxu0 %v995
          %v1479 = vpop.f32.mrf.mxu0
          %v1480 = vadd.f32 0.0, %v1479
          %v1481 = vpop.f32.mrf.mxu0
          %v1482 = vpop.f32.mrf.mxu0
          %v1483 = vadd.f32 0.0, %v1482
          %v1484 = vpop.f32.mrf.mxu0
          %1485 = vmatprep.mubr.bf16.mxu0 0
          %1486 = vmatmul.mubr.bf16.gmra.mxu0 %v996
          %v1487 = vpop.f32.mrf.mxu0
          %v1488 = vadd.f32 0.0, %v1487
          %v1489 = vpop.f32.mrf.mxu0
          %v1490 = vpop.f32.mrf.mxu0
          %v1491 = vadd.f32 0.0, %v1490
          %v1492 = vpop.f32.mrf.mxu0
          %1493 = vmatprep.mubr.bf16.mxu0 0
          %1494 = vmatmul.mubr.bf16.gmra.mxu0 %v997
          %v1495 = vpop.f32.mrf.mxu0
          %v1496 = vadd.f32 0.0, %v1495
          %v1497 = vpop.f32.mrf.mxu0
          %v1498 = vpop.f32.mrf.mxu0
          %v1499 = vadd.f32 0.0, %v1498
          %v1500 = vpop.f32.mrf.mxu0
          %1501 = vmatprep.mubr.bf16.mxu0 0
          %1502 = vmatmul.mubr.bf16.gmra.mxu0 %v998
          %v1503 = vpop.f32.mrf.mxu0
          %v1504 = vadd.f32 0.0, %v1503
          %v1505 = vpop.f32.mrf.mxu0
          %v1506 = vpop.f32.mrf.mxu0
          %v1507 = vadd.f32 0.0, %v1506
          %v1508 = vpop.f32.mrf.mxu0
          %1509 = vmatprep.mubr.bf16.mxu0 0
          %1510 = vmatmul.mubr.bf16.gmra.mxu0 %v999
          %v1511 = vpop.f32.mrf.mxu0
          %v1512 = vadd.f32 0.0, %v1511
          %v1513 = vpop.f32.mrf.mxu0
          %v1514 = vpop.f32.mrf.mxu0
          %v1515 = vadd.f32 0.0, %v1514
          %v1516 = vpop.f32.mrf.mxu0
          %1517 = vmatprep.mubr.bf16.mxu0 0
          %1518 = vmatmul.mubr.bf16.gmra.mxu0 %v1000
          %v1519 = vpop.f32.mrf.mxu0
          %v1520 = vadd.f32 0.0, %v1519
          %v1521 = vpop.f32.mrf.mxu0
          %v1522 = vpop.f32.mrf.mxu0
          %v1523 = vadd.f32 0.0, %v1522
          %v1524 = vpop.f32.mrf.mxu0
          %1525 = vmatprep.mubr.bf16.mxu0 0
          %1526 = vmatmul.mubr.bf16.gmra.mxu0 %v1001
          %v1527 = vpop.f32.mrf.mxu0
          %v1528 = vadd.f32 0.0, %v1527
          %v1529 = vpop.f32.mrf.mxu0
          %v1530 = vpop.f32.mrf.mxu0
          %v1531 = vadd.f32 0.0, %v1530
          %v1532 = vpop.f32.mrf.mxu0
          %1533 = vmatprep.mubr.bf16.mxu0 0
          %1534 = vmatmul.mubr.bf16.gmra.mxu0 %v1002
          %v1535 = vpop.f32.mrf.mxu0
          %v1536 = vadd.f32 0.0, %v1535
          %v1537 = vpop.f32.mrf.mxu0
          %v1538 = vpop.f32.mrf.mxu0
          %v1539 = vadd.f32 0.0, %v1538
          %v1540 = vpop.f32.mrf.mxu0
          %1541 = vdwg.mxu0
          %v1542 = vpack.c.bf16 %v1258, %v1254
          %v1543 = vpack.c.bf16 %v1260, %v1256
          %v1544 = vpack.c.bf16 %v1371, %v1367
          %v1545 = vpack.c.bf16 %v1373, %v1369
          %v1546 = vpack.c.bf16 %v1483, %v1480
          %v1547 = vpack.c.bf16 %v1268, %v1264
          %v1548 = vpack.c.bf16 %v1270, %v1266
          %v1549 = vpack.c.bf16 %v1381, %v1377
          %v1550 = vpack.c.bf16 %v1383, %v1379
          %v1551 = vpack.c.bf16 %v1491, %v1488
          %v1552 = vpack.c.bf16 %v1278, %v1274
          %v1553 = vpack.c.bf16 %v1280, %v1276
          %v1554 = vpack.c.bf16 %v1391, %v1387
          %v1555 = vpack.c.bf16 %v1393, %v1389
          %v1556 = vpack.c.bf16 %v1499, %v1496
          %v1557 = vpack.c.bf16 %v1288, %v1284
          %v1558 = vpack.c.bf16 %v1290, %v1286
          %v1559 = vpack.c.bf16 %v1401, %v1397
          %v1560 = vpack.c.bf16 %v1403, %v1399
          %v1561 = vpack.c.bf16 %v1507, %v1504
          %v1562 = vpack.c.bf16 %v1298, %v1294
          %v1563 = vpack.c.bf16 %v1300, %v1296
          %v1564 = vpack.c.bf16 %v1411, %v1407
          %v1565 = vpack.c.bf16 %v1413, %v1409
          %v1566 = vpack.c.bf16 %v1515, %v1512
          %v1567 = vpack.c.bf16 %v1308, %v1304
          %v1568 = vpack.c.bf16 %v1310, %v1306
          %v1569 = vpack.c.bf16 %v1421, %v1417
          %v1570 = vpack.c.bf16 %v1423, %v1419
          %v1571 = vpack.c.bf16 %v1523, %v1520
          %v1572 = vpack.c.bf16 %v1318, %v1314
          %v1573 = vpack.c.bf16 %v1320, %v1316
          %v1574 = vpack.c.bf16 %v1431, %v1427
          %v1575 = vpack.c.bf16 %v1433, %v1429
          %v1576 = vpack.c.bf16 %v1531, %v1528
          %v1577 = vpack.c.bf16 %v1328, %v1324
          %v1578 = vpack.c.bf16 %v1330, %v1326
          %v1579 = vpack.c.bf16 %v1441, %v1437
          %v1580 = vpack.c.bf16 %v1443, %v1439
          %v1581 = vpack.c.bf16 %v1539, %v1536
          %v1622 = vunpack.c.l.b16 %v1542
          %v1623 = vunpack.c.l.b16 %v1543
          %v1624 = vunpack.c.l.b16 %v1544
          %v1625 = vunpack.c.l.b16 %v1545
          %v1626 = vunpack.c.l.b16 %v1546
          %v1627 = vunpack.c.h.b16 %v1542
          %v1628 = vunpack.c.h.b16 %v1543
          %v1629 = vunpack.c.h.b16 %v1544
          %v1630 = vunpack.c.h.b16 %v1545
          %v1631 = vunpack.c.h.b16 %v1546
          %v1632 = vunpack.c.l.b16 %v1547
          %v1633 = vunpack.c.l.b16 %v1548
          %v1634 = vunpack.c.l.b16 %v1549
          %v1635 = vunpack.c.l.b16 %v1550
          %v1636 = vunpack.c.l.b16 %v1551
          %v1637 = vunpack.c.h.b16 %v1547
          %v1638 = vunpack.c.h.b16 %v1548
          %v1639 = vunpack.c.h.b16 %v1549
          %v1640 = vunpack.c.h.b16 %v1550
          %v1641 = vunpack.c.h.b16 %v1551
          %v1642 = vunpack.c.l.b16 %v1552
          %v1643 = vunpack.c.l.b16 %v1553
          %v1644 = vunpack.c.l.b16 %v1554
          %v1645 = vunpack.c.l.b16 %v1555
          %v1646 = vunpack.c.l.b16 %v1556
          %v1647 = vunpack.c.h.b16 %v1552
          %v1648 = vunpack.c.h.b16 %v1553
          %v1649 = vunpack.c.h.b16 %v1554
          %v1650 = vunpack.c.h.b16 %v1555
          %v1651 = vunpack.c.h.b16 %v1556
          %v1652 = vunpack.c.l.b16 %v1557
          %v1653 = vunpack.c.l.b16 %v1558
          %v1654 = vunpack.c.l.b16 %v1559
          %v1655 = vunpack.c.l.b16 %v1560
          %v1656 = vunpack.c.l.b16 %v1561
          %v1657 = vunpack.c.h.b16 %v1557
          %v1658 = vunpack.c.h.b16 %v1558
          %v1659 = vunpack.c.h.b16 %v1559
          %v1660 = vunpack.c.h.b16 %v1560
          %v1661 = vunpack.c.h.b16 %v1561
          %v1662 = vunpack.c.l.b16 %v1562
          %v1663 = vunpack.c.l.b16 %v1563
          %v1664 = vunpack.c.l.b16 %v1564
          %v1665 = vunpack.c.l.b16 %v1565
          %v1666 = vunpack.c.l.b16 %v1566
          %v1667 = vunpack.c.h.b16 %v1562
          %v1668 = vunpack.c.h.b16 %v1563
          %v1669 = vunpack.c.h.b16 %v1564
          %v1670 = vunpack.c.h.b16 %v1565
          %v1671 = vunpack.c.h.b16 %v1566
          %v1672 = vunpack.c.l.b16 %v1567
          %v1673 = vunpack.c.l.b16 %v1568
          %v1674 = vunpack.c.l.b16 %v1569
          %v1675 = vunpack.c.l.b16 %v1570
          %v1676 = vunpack.c.l.b16 %v1571
          %v1677 = vunpack.c.h.b16 %v1567
          %v1678 = vunpack.c.h.b16 %v1568
          %v1679 = vunpack.c.h.b16 %v1569
          %v1680 = vunpack.c.h.b16 %v1570
          %v1681 = vunpack.c.h.b16 %v1571
          %v1682 = vunpack.c.l.b16 %v1572
          %v1683 = vunpack.c.l.b16 %v1573
          %v1684 = vunpack.c.l.b16 %v1574
          %v1685 = vunpack.c.l.b16 %v1575
          %v1686 = vunpack.c.l.b16 %v1576
          %v1687 = vunpack.c.h.b16 %v1572
          %v1688 = vunpack.c.h.b16 %v1573
          %v1689 = vunpack.c.h.b16 %v1574
          %v1690 = vunpack.c.h.b16 %v1575
          %v1691 = vunpack.c.h.b16 %v1576
          %v1692 = vunpack.c.l.b16 %v1577
          %v1693 = vunpack.c.l.b16 %v1578
          %v1694 = vunpack.c.l.b16 %v1579
          %v1695 = vunpack.c.l.b16 %v1580
          %v1696 = vunpack.c.l.b16 %v1581
          %v1697 = vunpack.c.h.b16 %v1577
          %v1698 = vunpack.c.h.b16 %v1578
          %v1699 = vunpack.c.h.b16 %v1579
          %v1700 = vunpack.c.h.b16 %v1580
          %v1701 = vunpack.c.h.b16 %v1581
          %v1702 = vpack.c.b16 %v1623, %v1622
          %v1703 = vpack.c.b16 %v1625, %v1624
          %v1704 = vpack.c.b16 %v1626, %v1626
          %v1705 = vpack.c.b16 %v1628, %v1627
          %v1706 = vpack.c.b16 %v1630, %v1629
          %v1707 = vpack.c.b16 %v1631, %v1631
          %v1708 = vpack.c.b16 %v1633, %v1632
          %v1709 = vpack.c.b16 %v1635, %v1634
          %v1710 = vpack.c.b16 %v1636, %v1636
          %v1711 = vpack.c.b16 %v1638, %v1637
          %v1712 = vpack.c.b16 %v1640, %v1639
          %v1713 = vpack.c.b16 %v1641, %v1641
          %v1714 = vpack.c.b16 %v1643, %v1642
          %v1715 = vpack.c.b16 %v1645, %v1644
          %v1716 = vpack.c.b16 %v1646, %v1646
          %v1717 = vpack.c.b16 %v1648, %v1647
          %v1718 = vpack.c.b16 %v1650, %v1649
          %v1719 = vpack.c.b16 %v1651, %v1651
          %v1720 = vpack.c.b16 %v1653, %v1652
          %v1721 = vpack.c.b16 %v1655, %v1654
          %v1722 = vpack.c.b16 %v1656, %v1656
          %v1723 = vpack.c.b16 %v1658, %v1657
          %v1724 = vpack.c.b16 %v1660, %v1659
          %v1725 = vpack.c.b16 %v1661, %v1661
          %v1726 = vpack.c.b16 %v1663, %v1662
          %v1727 = vpack.c.b16 %v1665, %v1664
          %v1728 = vpack.c.b16 %v1666, %v1666
          %v1729 = vpack.c.b16 %v1668, %v1667
          %v1730 = vpack.c.b16 %v1670, %v1669
          %v1731 = vpack.c.b16 %v1671, %v1671
          %v1732 = vpack.c.b16 %v1673, %v1672
          %v1733 = vpack.c.b16 %v1675, %v1674
          %v1734 = vpack.c.b16 %v1676, %v1676
          %v1735 = vpack.c.b16 %v1678, %v1677
          %v1736 = vpack.c.b16 %v1680, %v1679
          %v1737 = vpack.c.b16 %v1681, %v1681
          %v1738 = vpack.c.b16 %v1683, %v1682
          %v1739 = vpack.c.b16 %v1685, %v1684
          %v1740 = vpack.c.b16 %v1686, %v1686
          %v1741 = vpack.c.b16 %v1688, %v1687
          %v1742 = vpack.c.b16 %v1690, %v1689
          %v1743 = vpack.c.b16 %v1691, %v1691
          %v1744 = vpack.c.b16 %v1693, %v1692
          %v1745 = vpack.c.b16 %v1695, %v1694
          %v1746 = vpack.c.b16 %v1696, %v1696
          %v1747 = vpack.c.b16 %v1698, %v1697
          %v1748 = vpack.c.b16 %v1700, %v1699
          %v1749 = vpack.c.b16 %v1701, %v1701
          %1798 = vst [vmem:[#allocation2] sm:$0xff] %v1702
          %1799 = vst [vmem:[#allocation2 + $0x8] sm:$0xff] %v1703
          %1800 = vst [vmem:[#allocation2 + $0x10] sm:$0xf] %v1704
          %1801 = vst [vmem:[#allocation2 + $0x14] sm:$0xff] %v1705
          %1802 = vst [vmem:[#allocation2 + $0x1c] sm:$0xff] %v1706
          %1803 = vst [vmem:[#allocation2 + $0x24] sm:$0xf] %v1707
          %1804 = vst [vmem:[#allocation2 + $0x28] sm:$0xff] %v1708
          %1805 = vst [vmem:[#allocation2 + $0x30] sm:$0xff] %v1709
          %1806 = vst [vmem:[#allocation2 + $0x38] sm:$0xf] %v1710
          %1807 = vst [vmem:[#allocation2 + $0x3c] sm:$0xff] %v1711
          %1808 = vst [vmem:[#allocation2 + $0x44] sm:$0xff] %v1712
          %1809 = vst [vmem:[#allocation2 + $0x4c] sm:$0xf] %v1713
          %1810 = vst [vmem:[#allocation2 + $0x50] sm:$0xff] %v1714
          %1811 = vst [vmem:[#allocation2 + $0x58] sm:$0xff] %v1715
          %1812 = vst [vmem:[#allocation2 + $0x60] sm:$0xf] %v1716
          %1813 = vst [vmem:[#allocation2 + $0x64] sm:$0xff] %v1717
          %1814 = vst [vmem:[#allocation2 + $0x6c] sm:$0xff] %v1718
          %1815 = vst [vmem:[#allocation2 + $0x74] sm:$0xf] %v1719
          %1816 = vst [vmem:[#allocation2 + $0x78] sm:$0xff] %v1720
          %1817 = vst [vmem:[#allocation2 + $0x80] sm:$0xff] %v1721
          %1818 = vst [vmem:[#allocation2 + $0x88] sm:$0xf] %v1722
          %1819 = vst [vmem:[#allocation2 + $0x8c] sm:$0xff] %v1723
          %1820 = vst [vmem:[#allocation2 + $0x94] sm:$0xff] %v1724
          %1821 = vst [vmem:[#allocation2 + $0x9c] sm:$0xf] %v1725
          %1822 = vst [vmem:[#allocation2 + $0xa0] sm:$0xff] %v1726
          %1823 = vst [vmem:[#allocation2 + $0xa8] sm:$0xff] %v1727
          %1824 = vst [vmem:[#allocation2 + $0xb0] sm:$0xf] %v1728
          %1825 = vst [vmem:[#allocation2 + $0xb4] sm:$0xff] %v1729
          %1826 = vst [vmem:[#allocation2 + $0xbc] sm:$0xff] %v1730
          %1827 = vst [vmem:[#allocation2 + $0xc4] sm:$0xf] %v1731
          %1828 = vst [vmem:[#allocation2 + $0xc8] sm:$0xff] %v1732
          %1829 = vst [vmem:[#allocation2 + $0xd0] sm:$0xff] %v1733
          %1830 = vst [vmem:[#allocation2 + $0xd8] sm:$0xf] %v1734
          %1831 = vst [vmem:[#allocation2 + $0xdc] sm:$0xff] %v1735
          %1832 = vst [vmem:[#allocation2 + $0xe4] sm:$0xff] %v1736
          %1833 = vst [vmem:[#allocation2 + $0xec] sm:$0xf] %v1737
          %1834 = vst [vmem:[#allocation2 + $0xf0] sm:$0xff] %v1738
          %1835 = vst [vmem:[#allocation2 + $0xf8] sm:$0xff] %v1739
          %1836 = vst [vmem:[#allocation2 + $0x100] sm:$0xf] %v1740
          %1837 = vst [vmem:[#allocation2 + $0x104] sm:$0xff] %v1741
          %1838 = vst [vmem:[#allocation2 + $0x10c] sm:$0xff] %v1742
          %1839 = vst [vmem:[#allocation2 + $0x114] sm:$0xf] %v1743
          %1840 = vst [vmem:[#allocation2 + $0x118] sm:$0xff] %v1744
          %1841 = vst [vmem:[#allocation2 + $0x120] sm:$0xff] %v1745
          %1842 = vst [vmem:[#allocation2 + $0x128] sm:$0xf] %v1746
          %1843 = vst [vmem:[#allocation2 + $0x12c] sm:$0xff] %v1747
          %1844 = vst [vmem:[#allocation2 + $0x134] sm:$0xff] %v1748
          %1845 = vst [vmem:[#allocation2 + $0x13c] sm:$0xf] %v1749
          %1846 = vst [vmem:[#allocation3] sm:$0xff] 0.0
          %1847 = vst [vmem:[#allocation3 + $0x8] sm:$0xff] 0.0
          %1848 = vst [vmem:[#allocation3 + $0x10] sm:$0xff] 0.0
          %1849 = vst [vmem:[#allocation3 + $0x18] sm:$0xff] 0.0
          %1850 = vst [vmem:[#allocation3 + $0x20] sm:$0xff] 0.0
          %1851 = vst [vmem:[#allocation3 + $0x28] sm:$0xff] 0.0
          %1852 = vst [vmem:[#allocation3 + $0x30] sm:$0xff] 0.0
          %1853 = vst [vmem:[#allocation3 + $0x38] sm:$0xff] 0.0
          %1854 = vst [vmem:[#allocation3 + $0x40] sm:$0xff] 0.0
          %1855 = vst [vmem:[#allocation3 + $0x48] sm:$0xff] 0.0
          %1856 = vst [vmem:[#allocation3 + $0x50] sm:$0xff] 0.0
          %1857 = vst [vmem:[#allocation3 + $0x58] sm:$0xff] 0.0
          %1858 = vst [vmem:[#allocation3 + $0x60] sm:$0xff] 0.0
          %1859 = vst [vmem:[#allocation3 + $0x68] sm:$0xff] 0.0
          %1860 = vst [vmem:[#allocation3 + $0x70] sm:$0xff] 0.0
          %1861 = vst [vmem:[#allocation3 + $0x78] sm:$0xff] 0.0
          %1862 = vst [vmem:[#allocation3 + $0x80] sm:$0xff] 0.0
          %1863 = vst [vmem:[#allocation3 + $0x88] sm:$0xff] 0.0
          %1864 = vst [vmem:[#allocation3 + $0x90] sm:$0xff] 0.0
          %1865 = vst [vmem:[#allocation3 + $0x98] sm:$0xff] 0.0
          %1866 = vst [vmem:[#allocation3 + $0xa0] sm:$0xff] 0.0
          %1867 = vst [vmem:[#allocation3 + $0xa8] sm:$0xff] 0.0
          %1868 = vst [vmem:[#allocation3 + $0xb0] sm:$0xff] 0.0
          %1869 = vst [vmem:[#allocation3 + $0xb8] sm:$0xff] 0.0
          %1870 = vst [vmem:[#allocation3 + $0xc0] sm:$0xff] 0.0
          %1871 = vst [vmem:[#allocation3 + $0xc8] sm:$0xff] 0.0
          %1872 = vst [vmem:[#allocation3 + $0xd0] sm:$0xff] 0.0
          %1873 = vst [vmem:[#allocation3 + $0xd8] sm:$0xff] 0.0
          %1874 = vst [vmem:[#allocation3 + $0xe0] sm:$0xff] 0.0
          %1875 = vst [vmem:[#allocation3 + $0xe8] sm:$0xff] 0.0
          %1876 = vst [vmem:[#allocation3 + $0xf0] sm:$0xff] 0.0
          %1877 = vst [vmem:[#allocation3 + $0xf8] sm:$0xff] 0.0
        $region122: #{tpu_custom_call.1} parent=113 // pred_fallthru
          _
        %v1878 = vld [vmem:[%s879] sm:$0xff]
        %v1879 = vld [vmem:[%s879 + $0x8] sm:$0xff]
        %v1880 = vld [vmem:[%s879 + $0x10] sm:$0xff]
        %v1881 = vld [vmem:[%s879 + $0x18] sm:$0xff]
        %v1882 = vld [vmem:[%s879 + $0x20] sm:$0xff]
        %v1883 = vld [vmem:[%s879 + $0x28] sm:$0xff]
        %v1884 = vld [vmem:[%s879 + $0x30] sm:$0xff]
        %v1885 = vld [vmem:[%s879 + $0x38] sm:$0xff]
        %v1886 = vld [vmem:[%s879 + $0x40] sm:$0xff]
        %v1887 = vld [vmem:[%s879 + $0x48] sm:$0xff]
        %v1888 = vld [vmem:[%s879 + $0x50] sm:$0xff]
        %v1889 = vld [vmem:[%s879 + $0x58] sm:$0xff]
        %v1890 = vld [vmem:[%s879 + $0x60] sm:$0xff]
        %v1891 = vld [vmem:[%s879 + $0x68] sm:$0xff]
        %v1892 = vld [vmem:[%s879 + $0x70] sm:$0xff]
        %v1893 = vld [vmem:[%s879 + $0x78] sm:$0xff]
        %v1894 = vld [vmem:[%s879 + $0x80] sm:$0xff]
        %v1895 = vld [vmem:[%s879 + $0x88] sm:$0xff]
        %v1896 = vld [vmem:[%s879 + $0x90] sm:$0xff]
        %v1897 = vld [vmem:[%s879 + $0x98] sm:$0xff]
        %v1898 = vld [vmem:[%s879 + $0xa0] sm:$0xff]
        %v1899 = vld [vmem:[%s879 + $0xa8] sm:$0xff]
        %v1900 = vld [vmem:[%s879 + $0xb0] sm:$0xff]
        %v1901 = vld [vmem:[%s879 + $0xb8] sm:$0xff]
        %v1902 = vld [vmem:[%s879 + $0xc0] sm:$0xff]
        %v1903 = vld [vmem:[%s879 + $0xc8] sm:$0xff]
        %v1904 = vld [vmem:[%s879 + $0xd0] sm:$0xff]
        %v1905 = vld [vmem:[%s879 + $0xd8] sm:$0xff]
        %v1906 = vld [vmem:[%s879 + $0xe0] sm:$0xff]
        %v1907 = vld [vmem:[%s879 + $0xe8] sm:$0xff]
        %v1908 = vld [vmem:[%s879 + $0xf0] sm:$0xff]
        %v1909 = vld [vmem:[%s879 + $0xf8] sm:$0xff]
        %v1910 = vld [vmem:[%s885] sm:$0xff]
        %v1911 = vld [vmem:[%s885 + $0x8] sm:$0xff]
        %v1912 = vld [vmem:[%s885 + $0x10] sm:$0xff]
        %v1913 = vld [vmem:[%s885 + $0x18] sm:$0xff]
        %v1914 = vld [vmem:[%s885 + $0x20] sm:$0xff]
        %v1915 = vld [vmem:[%s885 + $0x28] sm:$0xff]
        %v1916 = vld [vmem:[%s885 + $0x30] sm:$0xff]
        %v1917 = vld [vmem:[%s885 + $0x38] sm:$0xff]
        %v1918 = vld [vmem:[%s885 + $0x40] sm:$0xff]
        %v1919 = vld [vmem:[%s885 + $0x48] sm:$0xff]
        %v1920 = vld [vmem:[%s885 + $0x50] sm:$0xff]
        %v1921 = vld [vmem:[%s885 + $0x58] sm:$0xff]
        %v1922 = vld [vmem:[%s885 + $0x60] sm:$0xff]
        %v1923 = vld [vmem:[%s885 + $0x68] sm:$0xff]
        %v1924 = vld [vmem:[%s885 + $0x70] sm:$0xff]
        %v1925 = vld [vmem:[%s885 + $0x78] sm:$0xff]
        %v1926 = vld [vmem:[%s885 + $0x80] sm:$0xff]
        %v1927 = vld [vmem:[%s885 + $0x88] sm:$0xff]
        %v1928 = vld [vmem:[%s885 + $0x90] sm:$0xff]
        %v1929 = vld [vmem:[%s885 + $0x98] sm:$0xff]
        %v1930 = vld [vmem:[%s885 + $0xa0] sm:$0xff]
        %v1931 = vld [vmem:[%s885 + $0xa8] sm:$0xff]
        %v1932 = vld [vmem:[%s885 + $0xb0] sm:$0xff]
        %v1933 = vld [vmem:[%s885 + $0xb8] sm:$0xff]
        %v1934 = vld [vmem:[%s885 + $0xc0] sm:$0xff]
        %v1935 = vld [vmem:[%s885 + $0xc8] sm:$0xff]
        %v1936 = vld [vmem:[%s885 + $0xd0] sm:$0xff]
        %v1937 = vld [vmem:[%s885 + $0xd8] sm:$0xff]
        %v1938 = vld [vmem:[%s885 + $0xe0] sm:$0xff]
        %v1939 = vld [vmem:[%s885 + $0xe8] sm:$0xff]
        %v1940 = vld [vmem:[%s885 + $0xf0] sm:$0xff]
        %v1941 = vld [vmem:[%s885 + $0xf8] sm:$0xff]
        %v1942 = vld [vmem:[%s890] sm:$0x3]
        %v1943 = vlaneseq
        %v1944 = vand.u32 %v1943, 127
        %v1945 = vlaneseq
        %v1946 = vshrl.u32 %v1945, 7
        %v1947 = vadd.s32 %v1946, 8
        %v1948 = vadd.s32 %v1946, 16
        %v1949 = vadd.s32 %v1946, 24
        %v1950 = vadd.s32 %v1946, 32
        %v1951 = vadd.s32 %v1946, 40
        %v1952 = vadd.s32 %v1946, 48
        %v1953 = vadd.s32 %v1946, 56
        %v1954 = vadd.s32 %v1946, 64
        %v1955 = vadd.s32 %v1946, 72
        %v1956 = vadd.s32 %v1946, 80
        %v1957 = vadd.s32 %v1946, 88
        %v1958 = vadd.s32 %v1946, 96
        %v1959 = vadd.s32 %v1946, 104
        %v1960 = vadd.s32 %v1946, 112
        %v1961 = vadd.s32 %v1946, 120
        %1962 = vset.pattern.permute.xlu0 0
        %1963 = vperm.xlu0 %1962, %v1878
        %v1964 = vpop.permute.xlu0 %1963
        %1965 = vset.pattern.permute.xlu0 0
        %1966 = vperm.xlu0 %1965, %v1879
        %v1967 = vpop.permute.xlu0 %1966
        %1968 = vset.pattern.permute.xlu0 0
        %1969 = vperm.xlu0 %1968, %v1880
        %v1970 = vpop.permute.xlu0 %1969
        %1971 = vset.pattern.permute.xlu0 0
        %1972 = vperm.xlu0 %1971, %v1881
        %v1973 = vpop.permute.xlu0 %1972
        %1974 = vset.pattern.permute.xlu0 0
        %1975 = vperm.xlu0 %1974, %v1882
        %v1976 = vpop.permute.xlu0 %1975
        %1977 = vset.pattern.permute.xlu0 0
        %1978 = vperm.xlu0 %1977, %v1883
        %v1979 = vpop.permute.xlu0 %1978
        %1980 = vset.pattern.permute.xlu0 0
        %1981 = vperm.xlu0 %1980, %v1884
        %v1982 = vpop.permute.xlu0 %1981
        %1983 = vset.pattern.permute.xlu0 0
        %1984 = vperm.xlu0 %1983, %v1885
        %v1985 = vpop.permute.xlu0 %1984
        %1986 = vset.pattern.permute.xlu0 0
        %1987 = vperm.xlu0 %1986, %v1886
        %v1988 = vpop.permute.xlu0 %1987
        %1989 = vset.pattern.permute.xlu0 0
        %1990 = vperm.xlu0 %1989, %v1887
        %v1991 = vpop.permute.xlu0 %1990
        %1992 = vset.pattern.permute.xlu0 0
        %1993 = vperm.xlu0 %1992, %v1888
        %v1994 = vpop.permute.xlu0 %1993
        %1995 = vset.pattern.permute.xlu0 0
        %1996 = vperm.xlu0 %1995, %v1889
        %v1997 = vpop.permute.xlu0 %1996
        %1998 = vset.pattern.permute.xlu0 0
        %1999 = vperm.xlu0 %1998, %v1890
        %v2000 = vpop.permute.xlu0 %1999
        %2001 = vset.pattern.permute.xlu0 0
        %2002 = vperm.xlu0 %2001, %v1891
        %v2003 = vpop.permute.xlu0 %2002
        %2004 = vset.pattern.permute.xlu0 0
        %2005 = vperm.xlu0 %2004, %v1892
        %v2006 = vpop.permute.xlu0 %2005
        %2007 = vset.pattern.permute.xlu0 0
        %2008 = vperm.xlu0 %2007, %v1893
        %v2009 = vpop.permute.xlu0 %2008
        %2010 = vset.pattern.permute.xlu0 0
        %2011 = vperm.xlu0 %2010, %v1894
        %v2012 = vpop.permute.xlu0 %2011
        %2013 = vset.pattern.permute.xlu0 0
        %2014 = vperm.xlu0 %2013, %v1895
        %v2015 = vpop.permute.xlu0 %2014
        %2016 = vset.pattern.permute.xlu0 0
        %2017 = vperm.xlu0 %2016, %v1896
        %v2018 = vpop.permute.xlu0 %2017
        %2019 = vset.pattern.permute.xlu0 0
        %2020 = vperm.xlu0 %2019, %v1897
        %v2021 = vpop.permute.xlu0 %2020
        %2022 = vset.pattern.permute.xlu0 0
        %2023 = vperm.xlu0 %2022, %v1898
        %v2024 = vpop.permute.xlu0 %2023
        %2025 = vset.pattern.permute.xlu0 0
        %2026 = vperm.xlu0 %2025, %v1899
        %v2027 = vpop.permute.xlu0 %2026
        %2028 = vset.pattern.permute.xlu0 0
        %2029 = vperm.xlu0 %2028, %v1900
        %v2030 = vpop.permute.xlu0 %2029
        %2031 = vset.pattern.permute.xlu0 0
        %2032 = vperm.xlu0 %2031, %v1901
        %v2033 = vpop.permute.xlu0 %2032
        %2034 = vset.pattern.permute.xlu0 0
        %2035 = vperm.xlu0 %2034, %v1902
        %v2036 = vpop.permute.xlu0 %2035
        %2037 = vset.pattern.permute.xlu0 0
        %2038 = vperm.xlu0 %2037, %v1903
        %v2039 = vpop.permute.xlu0 %2038
        %2040 = vset.pattern.permute.xlu0 0
        %2041 = vperm.xlu0 %2040, %v1904
        %v2042 = vpop.permute.xlu0 %2041
        %2043 = vset.pattern.permute.xlu0 0
        %2044 = vperm.xlu0 %2043, %v1905
        %v2045 = vpop.permute.xlu0 %2044
        %2046 = vset.pattern.permute.xlu0 0
        %2047 = vperm.xlu0 %2046, %v1906
        %v2048 = vpop.permute.xlu0 %2047
        %2049 = vset.pattern.permute.xlu0 0
        %2050 = vperm.xlu0 %2049, %v1907
        %v2051 = vpop.permute.xlu0 %2050
        %2052 = vset.pattern.permute.xlu0 0
        %2053 = vperm.xlu0 %2052, %v1908
        %v2054 = vpop.permute.xlu0 %2053
        %2055 = vset.pattern.permute.xlu0 0
        %2056 = vperm.xlu0 %2055, %v1909
        %v2057 = vpop.permute.xlu0 %2056
        %vm2058 = vcmp.eq.s32.totalorder %v1944, %v1964
        %vm2059 = vcmp.eq.s32.totalorder %v1944, %v1967
        %vm2060 = vcmp.eq.s32.totalorder %v1944, %v1970
        %vm2061 = vcmp.eq.s32.totalorder %v1944, %v1973
        %vm2062 = vcmp.eq.s32.totalorder %v1944, %v1976
        %vm2063 = vcmp.eq.s32.totalorder %v1944, %v1979
        %vm2064 = vcmp.eq.s32.totalorder %v1944, %v1982
        %vm2065 = vcmp.eq.s32.totalorder %v1944, %v1985
        %vm2066 = vcmp.eq.s32.totalorder %v1944, %v1988
        %vm2067 = vcmp.eq.s32.totalorder %v1944, %v1991
        %vm2068 = vcmp.eq.s32.totalorder %v1944, %v1994
        %vm2069 = vcmp.eq.s32.totalorder %v1944, %v1997
        %vm2070 = vcmp.eq.s32.totalorder %v1944, %v2000
        %vm2071 = vcmp.eq.s32.totalorder %v1944, %v2003
        %vm2072 = vcmp.eq.s32.totalorder %v1944, %v2006
        %vm2073 = vcmp.eq.s32.totalorder %v1944, %v2009
        %vm2074 = vcmp.eq.s32.totalorder %v1944, %v2012
        %vm2075 = vcmp.eq.s32.totalorder %v1944, %v2015
        %vm2076 = vcmp.eq.s32.totalorder %v1944, %v2018
        %vm2077 = vcmp.eq.s32.totalorder %v1944, %v2021
        %vm2078 = vcmp.eq.s32.totalorder %v1944, %v2024
        %vm2079 = vcmp.eq.s32.totalorder %v1944, %v2027
        %vm2080 = vcmp.eq.s32.totalorder %v1944, %v2030
        %vm2081 = vcmp.eq.s32.totalorder %v1944, %v2033
        %vm2082 = vcmp.eq.s32.totalorder %v1944, %v2036
        %vm2083 = vcmp.eq.s32.totalorder %v1944, %v2039
        %vm2084 = vcmp.eq.s32.totalorder %v1944, %v2042
        %vm2085 = vcmp.eq.s32.totalorder %v1944, %v2045
        %vm2086 = vcmp.eq.s32.totalorder %v1944, %v2048
        %vm2087 = vcmp.eq.s32.totalorder %v1944, %v2051
        %vm2088 = vcmp.eq.s32.totalorder %v1944, %v2054
        %vm2089 = vcmp.eq.s32.totalorder %v1944, %v2057
        %v2090 = vsel %vm2058, 1, 0
        %v2091 = vsel %vm2059, 1, 0
        %v2092 = vsel %vm2060, 1, 0
        %v2093 = vsel %vm2061, 1, 0
        %v2094 = vsel %vm2062, 1, 0
        %v2095 = vsel %vm2063, 1, 0
        %v2096 = vsel %vm2064, 1, 0
        %v2097 = vsel %vm2065, 1, 0
        %v2098 = vsel %vm2066, 1, 0
        %v2099 = vsel %vm2067, 1, 0
        %v2100 = vsel %vm2068, 1, 0
        %v2101 = vsel %vm2069, 1, 0
        %v2102 = vsel %vm2070, 1, 0
        %v2103 = vsel %vm2071, 1, 0
        %v2104 = vsel %vm2072, 1, 0
        %v2105 = vsel %vm2073, 1, 0
        %v2106 = vsel %vm2074, 1, 0
        %v2107 = vsel %vm2075, 1, 0
        %v2108 = vsel %vm2076, 1, 0
        %v2109 = vsel %vm2077, 1, 0
        %v2110 = vsel %vm2078, 1, 0
        %v2111 = vsel %vm2079, 1, 0
        %v2112 = vsel %vm2080, 1, 0
        %v2113 = vsel %vm2081, 1, 0
        %v2114 = vsel %vm2082, 1, 0
        %v2115 = vsel %vm2083, 1, 0
        %v2116 = vsel %vm2084, 1, 0
        %v2117 = vsel %vm2085, 1, 0
        %v2118 = vsel %vm2086, 1, 0
        %v2119 = vsel %vm2087, 1, 0
        %v2120 = vsel %vm2088, 1, 0
        %v2121 = vsel %vm2089, 1, 0
        %v2122 = vcvt.s32.f32 %v2090
        %v2123 = vcvt.s32.f32 %v2091
        %v2124 = vcvt.s32.f32 %v2092
        %v2125 = vcvt.s32.f32 %v2093
        %v2126 = vcvt.s32.f32 %v2094
        %v2127 = vcvt.s32.f32 %v2095
        %v2128 = vcvt.s32.f32 %v2096
        %v2129 = vcvt.s32.f32 %v2097
        %v2130 = vcvt.s32.f32 %v2098
        %v2131 = vcvt.s32.f32 %v2099
        %v2132 = vcvt.s32.f32 %v2100
        %v2133 = vcvt.s32.f32 %v2101
        %v2134 = vcvt.s32.f32 %v2102
        %v2135 = vcvt.s32.f32 %v2103
        %v2136 = vcvt.s32.f32 %v2104
        %v2137 = vcvt.s32.f32 %v2105
        %v2138 = vcvt.s32.f32 %v2106
        %v2139 = vcvt.s32.f32 %v2107
        %v2140 = vcvt.s32.f32 %v2108
        %v2141 = vcvt.s32.f32 %v2109
        %v2142 = vcvt.s32.f32 %v2110
        %v2143 = vcvt.s32.f32 %v2111
        %v2144 = vcvt.s32.f32 %v2112
        %v2145 = vcvt.s32.f32 %v2113
        %v2146 = vcvt.s32.f32 %v2114
        %v2147 = vcvt.s32.f32 %v2115
        %v2148 = vcvt.s32.f32 %v2116
        %v2149 = vcvt.s32.f32 %v2117
        %v2150 = vcvt.s32.f32 %v2118
        %v2151 = vcvt.s32.f32 %v2119
        %v2152 = vcvt.s32.f32 %v2120
        %v2153 = vcvt.s32.f32 %v2121
        %v2154 = vpack.c.bf16 %v2123, %v2122
        %v2155 = vpack.c.bf16 %v2125, %v2124
        %v2156 = vpack.c.bf16 %v2127, %v2126
        %v2157 = vpack.c.bf16 %v2129, %v2128
        %v2158 = vpack.c.bf16 %v2131, %v2130
        %v2159 = vpack.c.bf16 %v2133, %v2132
        %v2160 = vpack.c.bf16 %v2135, %v2134
        %v2161 = vpack.c.bf16 %v2137, %v2136
        %v2162 = vpack.c.bf16 %v2139, %v2138
        %v2163 = vpack.c.bf16 %v2141, %v2140
        %v2164 = vpack.c.bf16 %v2143, %v2142
        %v2165 = vpack.c.bf16 %v2145, %v2144
        %v2166 = vpack.c.bf16 %v2147, %v2146
        %v2167 = vpack.c.bf16 %v2149, %v2148
        %v2168 = vpack.c.bf16 %v2151, %v2150
        %v2169 = vpack.c.bf16 %v2153, %v2152
        %2170 = vset.pattern.permute.xlu0 0
        %2171 = vperm.xlu0 %2170, %v1910
        %v2172 = vpop.permute.xlu0 %2171
        %2173 = vset.pattern.permute.xlu0 0
        %2174 = vperm.xlu0 %2173, %v1911
        %v2175 = vpop.permute.xlu0 %2174
        %2176 = vset.pattern.permute.xlu0 0
        %2177 = vperm.xlu0 %2176, %v1912
        %v2178 = vpop.permute.xlu0 %2177
        %2179 = vset.pattern.permute.xlu0 0
        %2180 = vperm.xlu0 %2179, %v1913
        %v2181 = vpop.permute.xlu0 %2180
        %2182 = vset.pattern.permute.xlu0 0
        %2183 = vperm.xlu0 %2182, %v1914
        %v2184 = vpop.permute.xlu0 %2183
        %2185 = vset.pattern.permute.xlu0 0
        %2186 = vperm.xlu0 %2185, %v1915
        %v2187 = vpop.permute.xlu0 %2186
        %2188 = vset.pattern.permute.xlu0 0
        %2189 = vperm.xlu0 %2188, %v1916
        %v2190 = vpop.permute.xlu0 %2189
        %2191 = vset.pattern.permute.xlu0 0
        %2192 = vperm.xlu0 %2191, %v1917
        %v2193 = vpop.permute.xlu0 %2192
        %2194 = vset.pattern.permute.xlu0 0
        %2195 = vperm.xlu0 %2194, %v1918
        %v2196 = vpop.permute.xlu0 %2195
        %2197 = vset.pattern.permute.xlu0 0
        %2198 = vperm.xlu0 %2197, %v1919
        %v2199 = vpop.permute.xlu0 %2198
        %2200 = vset.pattern.permute.xlu0 0
        %2201 = vperm.xlu0 %2200, %v1920
        %v2202 = vpop.permute.xlu0 %2201
        %2203 = vset.pattern.permute.xlu0 0
        %2204 = vperm.xlu0 %2203, %v1921
        %v2205 = vpop.permute.xlu0 %2204
        %2206 = vset.pattern.permute.xlu0 0
        %2207 = vperm.xlu0 %2206, %v1922
        %v2208 = vpop.permute.xlu0 %2207
        %2209 = vset.pattern.permute.xlu0 0
        %2210 = vperm.xlu0 %2209, %v1923
        %v2211 = vpop.permute.xlu0 %2210
        %2212 = vset.pattern.permute.xlu0 0
        %2213 = vperm.xlu0 %2212, %v1924
        %v2214 = vpop.permute.xlu0 %2213
        %2215 = vset.pattern.permute.xlu0 0
        %2216 = vperm.xlu0 %2215, %v1925
        %v2217 = vpop.permute.xlu0 %2216
        %2218 = vset.pattern.permute.xlu0 0
        %2219 = vperm.xlu0 %2218, %v1926
        %v2220 = vpop.permute.xlu0 %2219
        %2221 = vset.pattern.permute.xlu0 0
        %2222 = vperm.xlu0 %2221, %v1927
        %v2223 = vpop.permute.xlu0 %2222
        %2224 = vset.pattern.permute.xlu0 0
        %2225 = vperm.xlu0 %2224, %v1928
        %v2226 = vpop.permute.xlu0 %2225
        %2227 = vset.pattern.permute.xlu0 0
        %2228 = vperm.xlu0 %2227, %v1929
        %v2229 = vpop.permute.xlu0 %2228
        %2230 = vset.pattern.permute.xlu0 0
        %2231 = vperm.xlu0 %2230, %v1930
        %v2232 = vpop.permute.xlu0 %2231
        %2233 = vset.pattern.permute.xlu0 0
        %2234 = vperm.xlu0 %2233, %v1931
        %v2235 = vpop.permute.xlu0 %2234
        %2236 = vset.pattern.permute.xlu0 0
        %2237 = vperm.xlu0 %2236, %v1932
        %v2238 = vpop.permute.xlu0 %2237
        %2239 = vset.pattern.permute.xlu0 0
        %2240 = vperm.xlu0 %2239, %v1933
        %v2241 = vpop.permute.xlu0 %2240
        %2242 = vset.pattern.permute.xlu0 0
        %2243 = vperm.xlu0 %2242, %v1934
        %v2244 = vpop.permute.xlu0 %2243
        %2245 = vset.pattern.permute.xlu0 0
        %2246 = vperm.xlu0 %2245, %v1935
        %v2247 = vpop.permute.xlu0 %2246
        %2248 = vset.pattern.permute.xlu0 0
        %2249 = vperm.xlu0 %2248, %v1936
        %v2250 = vpop.permute.xlu0 %2249
        %2251 = vset.pattern.permute.xlu0 0
        %2252 = vperm.xlu0 %2251, %v1937
        %v2253 = vpop.permute.xlu0 %2252
        %2254 = vset.pattern.permute.xlu0 0
        %2255 = vperm.xlu0 %2254, %v1938
        %v2256 = vpop.permute.xlu0 %2255
        %2257 = vset.pattern.permute.xlu0 0
        %2258 = vperm.xlu0 %2257, %v1939
        %v2259 = vpop.permute.xlu0 %2258
        %2260 = vset.pattern.permute.xlu0 0
        %2261 = vperm.xlu0 %2260, %v1940
        %v2262 = vpop.permute.xlu0 %2261
        %2263 = vset.pattern.permute.xlu0 0
        %2264 = vperm.xlu0 %2263, %v1941
        %v2265 = vpop.permute.xlu0 %2264
        %vm2266 = vcmp.eq.s32.totalorder %v1944, %v2172
        %vm2267 = vcmp.eq.s32.totalorder %v1944, %v2175
        %vm2268 = vcmp.eq.s32.totalorder %v1944, %v2178
        %vm2269 = vcmp.eq.s32.totalorder %v1944, %v2181
        %vm2270 = vcmp.eq.s32.totalorder %v1944, %v2184
        %vm2271 = vcmp.eq.s32.totalorder %v1944, %v2187
        %vm2272 = vcmp.eq.s32.totalorder %v1944, %v2190
        %vm2273 = vcmp.eq.s32.totalorder %v1944, %v2193
        %vm2274 = vcmp.eq.s32.totalorder %v1944, %v2196
        %vm2275 = vcmp.eq.s32.totalorder %v1944, %v2199
        %vm2276 = vcmp.eq.s32.totalorder %v1944, %v2202
        %vm2277 = vcmp.eq.s32.totalorder %v1944, %v2205
        %vm2278 = vcmp.eq.s32.totalorder %v1944, %v2208
        %vm2279 = vcmp.eq.s32.totalorder %v1944, %v2211
        %vm2280 = vcmp.eq.s32.totalorder %v1944, %v2214
        %vm2281 = vcmp.eq.s32.totalorder %v1944, %v2217
        %vm2282 = vcmp.eq.s32.totalorder %v1944, %v2220
        %vm2283 = vcmp.eq.s32.totalorder %v1944, %v2223
        %vm2284 = vcmp.eq.s32.totalorder %v1944, %v2226
        %vm2285 = vcmp.eq.s32.totalorder %v1944, %v2229
        %vm2286 = vcmp.eq.s32.totalorder %v1944, %v2232
        %vm2287 = vcmp.eq.s32.totalorder %v1944, %v2235
        %vm2288 = vcmp.eq.s32.totalorder %v1944, %v2238
        %vm2289 = vcmp.eq.s32.totalorder %v1944, %v2241
        %vm2290 = vcmp.eq.s32.totalorder %v1944, %v2244
        %vm2291 = vcmp.eq.s32.totalorder %v1944, %v2247
        %vm2292 = vcmp.eq.s32.totalorder %v1944, %v2250
        %vm2293 = vcmp.eq.s32.totalorder %v1944, %v2253
        %vm2294 = vcmp.eq.s32.totalorder %v1944, %v2256
        %vm2295 = vcmp.eq.s32.totalorder %v1944, %v2259
        %vm2296 = vcmp.eq.s32.totalorder %v1944, %v2262
        %vm2297 = vcmp.eq.s32.totalorder %v1944, %v2265
        %v2298 = vsel %vm2266, 1, 0
        %v2299 = vsel %vm2267, 1, 0
        %v2300 = vsel %vm2268, 1, 0
        %v2301 = vsel %vm2269, 1, 0
        %v2302 = vsel %vm2270, 1, 0
        %v2303 = vsel %vm2271, 1, 0
        %v2304 = vsel %vm2272, 1, 0
        %v2305 = vsel %vm2273, 1, 0
        %v2306 = vsel %vm2274, 1, 0
        %v2307 = vsel %vm2275, 1, 0
        %v2308 = vsel %vm2276, 1, 0
        %v2309 = vsel %vm2277, 1, 0
        %v2310 = vsel %vm2278, 1, 0
        %v2311 = vsel %vm2279, 1, 0
        %v2312 = vsel %vm2280, 1, 0
        %v2313 = vsel %vm2281, 1, 0
        %v2314 = vsel %vm2282, 1, 0
        %v2315 = vsel %vm2283, 1, 0
        %v2316 = vsel %vm2284, 1, 0
        %v2317 = vsel %vm2285, 1, 0
        %v2318 = vsel %vm2286, 1, 0
        %v2319 = vsel %vm2287, 1, 0
        %v2320 = vsel %vm2288, 1, 0
        %v2321 = vsel %vm2289, 1, 0
        %v2322 = vsel %vm2290, 1, 0
        %v2323 = vsel %vm2291, 1, 0
        %v2324 = vsel %vm2292, 1, 0
        %v2325 = vsel %vm2293, 1, 0
        %v2326 = vsel %vm2294, 1, 0
        %v2327 = vsel %vm2295, 1, 0
        %v2328 = vsel %vm2296, 1, 0
        %v2329 = vsel %vm2297, 1, 0
        %v2330 = vcvt.s32.f32 %v2298
        %v2331 = vcvt.s32.f32 %v2299
        %v2332 = vcvt.s32.f32 %v2300
        %v2333 = vcvt.s32.f32 %v2301
        %v2334 = vcvt.s32.f32 %v2302
        %v2335 = vcvt.s32.f32 %v2303
        %v2336 = vcvt.s32.f32 %v2304
        %v2337 = vcvt.s32.f32 %v2305
        %v2338 = vcvt.s32.f32 %v2306
        %v2339 = vcvt.s32.f32 %v2307
        %v2340 = vcvt.s32.f32 %v2308
        %v2341 = vcvt.s32.f32 %v2309
        %v2342 = vcvt.s32.f32 %v2310
        %v2343 = vcvt.s32.f32 %v2311
        %v2344 = vcvt.s32.f32 %v2312
        %v2345 = vcvt.s32.f32 %v2313
        %v2346 = vcvt.s32.f32 %v2314
        %v2347 = vcvt.s32.f32 %v2315
        %v2348 = vcvt.s32.f32 %v2316
        %v2349 = vcvt.s32.f32 %v2317
        %v2350 = vcvt.s32.f32 %v2318
        %v2351 = vcvt.s32.f32 %v2319
        %v2352 = vcvt.s32.f32 %v2320
        %v2353 = vcvt.s32.f32 %v2321
        %v2354 = vcvt.s32.f32 %v2322
        %v2355 = vcvt.s32.f32 %v2323
        %v2356 = vcvt.s32.f32 %v2324
        %v2357 = vcvt.s32.f32 %v2325
        %v2358 = vcvt.s32.f32 %v2326
        %v2359 = vcvt.s32.f32 %v2327
        %v2360 = vcvt.s32.f32 %v2328
        %v2361 = vcvt.s32.f32 %v2329
        %v2362 = vpack.c.bf16 %v2331, %v2330
        %v2363 = vpack.c.bf16 %v2333, %v2332
        %v2364 = vpack.c.bf16 %v2335, %v2334
        %v2365 = vpack.c.bf16 %v2337, %v2336
        %v2366 = vpack.c.bf16 %v2339, %v2338
        %v2367 = vpack.c.bf16 %v2341, %v2340
        %v2368 = vpack.c.bf16 %v2343, %v2342
        %v2369 = vpack.c.bf16 %v2345, %v2344
        %v2370 = vpack.c.bf16 %v2347, %v2346
        %v2371 = vpack.c.bf16 %v2349, %v2348
        %v2372 = vpack.c.bf16 %v2351, %v2350
        %v2373 = vpack.c.bf16 %v2353, %v2352
        %v2374 = vpack.c.bf16 %v2355, %v2354
        %v2375 = vpack.c.bf16 %v2357, %v2356
        %v2376 = vpack.c.bf16 %v2359, %v2358
        %v2377 = vpack.c.bf16 %v2361, %v2360
        %v2378 = vlaneseq
        %v2379 = vshrl.u32 %v2378, 7
        %v2380 = vsub.s32 0, %v2379
        %v2381 = vrot.slane %v1942, %v2380
        %v2382 = vlaneseq
        %v2383 = vshrl.u32 %v2382, 7
        %v2384 = vsub.s32 1, %v2383
        %v2385 = vrot.slane %v1942, %v2384
        %vm2386 = vcmp.eq.s32.totalorder %v1946, %v2381
        %vm2387 = vcmp.eq.s32.totalorder %v1946, %v2385
        %vm2388 = vcmp.eq.s32.totalorder %v1947, %v2381
        %vm2389 = vcmp.eq.s32.totalorder %v1947, %v2385
        %vm2390 = vcmp.eq.s32.totalorder %v1948, %v2381
        %vm2391 = vcmp.eq.s32.totalorder %v1948, %v2385
        %vm2392 = vcmp.eq.s32.totalorder %v1949, %v2381
        %vm2393 = vcmp.eq.s32.totalorder %v1949, %v2385
        %vm2394 = vcmp.eq.s32.totalorder %v1950, %v2381
        %vm2395 = vcmp.eq.s32.totalorder %v1950, %v2385
        %vm2396 = vcmp.eq.s32.totalorder %v1951, %v2381
        %vm2397 = vcmp.eq.s32.totalorder %v1951, %v2385
        %vm2398 = vcmp.eq.s32.totalorder %v1952, %v2381
        %vm2399 = vcmp.eq.s32.totalorder %v1952, %v2385
        %vm2400 = vcmp.eq.s32.totalorder %v1953, %v2381
        %vm2401 = vcmp.eq.s32.totalorder %v1953, %v2385
        %vm2402 = vcmp.eq.s32.totalorder %v1954, %v2381
        %vm2403 = vcmp.eq.s32.totalorder %v1954, %v2385
        %vm2404 = vcmp.eq.s32.totalorder %v1955, %v2381
        %vm2405 = vcmp.eq.s32.totalorder %v1955, %v2385
        %vm2406 = vcmp.eq.s32.totalorder %v1956, %v2381
        %vm2407 = vcmp.eq.s32.totalorder %v1956, %v2385
        %vm2408 = vcmp.eq.s32.totalorder %v1957, %v2381
        %vm2409 = vcmp.eq.s32.totalorder %v1957, %v2385
        %vm2410 = vcmp.eq.s32.totalorder %v1958, %v2381
        %vm2411 = vcmp.eq.s32.totalorder %v1958, %v2385
        %vm2412 = vcmp.eq.s32.totalorder %v1959, %v2381
        %vm2413 = vcmp.eq.s32.totalorder %v1959, %v2385
        %vm2414 = vcmp.eq.s32.totalorder %v1960, %v2381
        %vm2415 = vcmp.eq.s32.totalorder %v1960, %v2385
        %vm2416 = vcmp.eq.s32.totalorder %v1961, %v2381
        %vm2417 = vcmp.eq.s32.totalorder %v1961, %v2385
        %v2418 = vsel %vm2386, 1, 0
        %v2419 = vsel %vm2387, 1, 0
        %v2420 = vsel %vm2388, 1, 0
        %v2421 = vsel %vm2389, 1, 0
        %v2422 = vsel %vm2390, 1, 0
        %v2423 = vsel %vm2391, 1, 0
        %v2424 = vsel %vm2392, 1, 0
        %v2425 = vsel %vm2393, 1, 0
        %v2426 = vsel %vm2394, 1, 0
        %v2427 = vsel %vm2395, 1, 0
        %v2428 = vsel %vm2396, 1, 0
        %v2429 = vsel %vm2397, 1, 0
        %v2430 = vsel %vm2398, 1, 0
        %v2431 = vsel %vm2399, 1, 0
        %v2432 = vsel %vm2400, 1, 0
        %v2433 = vsel %vm2401, 1, 0
        %v2434 = vsel %vm2402, 1, 0
        %v2435 = vsel %vm2403, 1, 0
        %v2436 = vsel %vm2404, 1, 0
        %v2437 = vsel %vm2405, 1, 0
        %v2438 = vsel %vm2406, 1, 0
        %v2439 = vsel %vm2407, 1, 0
        %v2440 = vsel %vm2408, 1, 0
        %v2441 = vsel %vm2409, 1, 0
        %v2442 = vsel %vm2410, 1, 0
        %v2443 = vsel %vm2411, 1, 0
        %v2444 = vsel %vm2412, 1, 0
        %v2445 = vsel %vm2413, 1, 0
        %v2446 = vsel %vm2414, 1, 0
        %v2447 = vsel %vm2415, 1, 0
        %v2448 = vsel %vm2416, 1, 0
        %v2449 = vsel %vm2417, 1, 0
        %v2450 = vcvt.s32.f32 %v2418
        %v2451 = vcvt.s32.f32 %v2419
        %v2452 = vcvt.s32.f32 %v2420
        %v2453 = vcvt.s32.f32 %v2421
        %v2454 = vcvt.s32.f32 %v2422
        %v2455 = vcvt.s32.f32 %v2423
        %v2456 = vcvt.s32.f32 %v2424
        %v2457 = vcvt.s32.f32 %v2425
        %v2458 = vcvt.s32.f32 %v2426
        %v2459 = vcvt.s32.f32 %v2427
        %v2460 = vcvt.s32.f32 %v2428
        %v2461 = vcvt.s32.f32 %v2429
        %v2462 = vcvt.s32.f32 %v2430
        %v2463 = vcvt.s32.f32 %v2431
        %v2464 = vcvt.s32.f32 %v2432
        %v2465 = vcvt.s32.f32 %v2433
        %v2466 = vcvt.s32.f32 %v2434
        %v2467 = vcvt.s32.f32 %v2435
        %v2468 = vcvt.s32.f32 %v2436
        %v2469 = vcvt.s32.f32 %v2437
        %v2470 = vcvt.s32.f32 %v2438
        %v2471 = vcvt.s32.f32 %v2439
        %v2472 = vcvt.s32.f32 %v2440
        %v2473 = vcvt.s32.f32 %v2441
        %v2474 = vcvt.s32.f32 %v2442
        %v2475 = vcvt.s32.f32 %v2443
        %v2476 = vcvt.s32.f32 %v2444
        %v2477 = vcvt.s32.f32 %v2445
        %v2478 = vcvt.s32.f32 %v2446
        %v2479 = vcvt.s32.f32 %v2447
        %v2480 = vcvt.s32.f32 %v2448
        %v2481 = vcvt.s32.f32 %v2449
        %v2482 = vpack.c.bf16 %v2452, %v2450
        %v2483 = vpack.c.bf16 %v2453, %v2451
        %v2484 = vpack.c.bf16 %v2456, %v2454
        %v2485 = vpack.c.bf16 %v2457, %v2455
        %v2486 = vpack.c.bf16 %v2460, %v2458
        %v2487 = vpack.c.bf16 %v2461, %v2459
        %v2488 = vpack.c.bf16 %v2464, %v2462
        %v2489 = vpack.c.bf16 %v2465, %v2463
        %v2490 = vpack.c.bf16 %v2468, %v2466
        %v2491 = vpack.c.bf16 %v2469, %v2467
        %v2492 = vpack.c.bf16 %v2472, %v2470
        %v2493 = vpack.c.bf16 %v2473, %v2471
        %v2494 = vpack.c.bf16 %v2476, %v2474
        %v2495 = vpack.c.bf16 %v2477, %v2475
        %v2496 = vpack.c.bf16 %v2480, %v2478
        %v2497 = vpack.c.bf16 %v2481, %v2479
        %v2498 = vld [vmem:[#allocation2] sm:$0xff]
        %v2499 = vld [vmem:[#allocation2 + $0x8] sm:$0xf]
        %v2500 = vld [vmem:[#allocation2 + $0x14] sm:$0xff]
        %v2501 = vld [vmem:[#allocation2 + $0x1c] sm:$0xf]
        %v2502 = vld [vmem:[#allocation2 + $0x28] sm:$0xff]
        %v2503 = vld [vmem:[#allocation2 + $0x30] sm:$0xf]
        %v2504 = vld [vmem:[#allocation2 + $0x3c] sm:$0xff]
        %v2505 = vld [vmem:[#allocation2 + $0x44] sm:$0xf]
        %v2506 = vld [vmem:[#allocation2 + $0x50] sm:$0xff]
        %v2507 = vld [vmem:[#allocation2 + $0x58] sm:$0xf]
        %v2508 = vld [vmem:[#allocation2 + $0x64] sm:$0xff]
        %v2509 = vld [vmem:[#allocation2 + $0x6c] sm:$0xf]
        %v2510 = vld [vmem:[#allocation2 + $0x78] sm:$0xff]
        %v2511 = vld [vmem:[#allocation2 + $0x80] sm:$0xf]
        %v2512 = vld [vmem:[#allocation2 + $0x8c] sm:$0xff]
        %v2513 = vld [vmem:[#allocation2 + $0x94] sm:$0xf]
        %v2514 = vld [vmem:[#allocation2 + $0xa0] sm:$0xff]
        %v2515 = vld [vmem:[#allocation2 + $0xa8] sm:$0xf]
        %v2516 = vld [vmem:[#allocation2 + $0xb4] sm:$0xff]
        %v2517 = vld [vmem:[#allocation2 + $0xbc] sm:$0xf]
        %v2518 = vld [vmem:[#allocation2 + $0xc8] sm:$0xff]
        %v2519 = vld [vmem:[#allocation2 + $0xd0] sm:$0xf]
        %v2520 = vld [vmem:[#allocation2 + $0xdc] sm:$0xff]
        %v2521 = vld [vmem:[#allocation2 + $0xe4] sm:$0xf]
        %v2522 = vld [vmem:[#allocation2 + $0xf0] sm:$0xff]
        %v2523 = vld [vmem:[#allocation2 + $0xf8] sm:$0xf]
        %v2524 = vld [vmem:[#allocation2 + $0x104] sm:$0xff]
        %v2525 = vld [vmem:[#allocation2 + $0x10c] sm:$0xf]
        %v2526 = vld [vmem:[#allocation2 + $0x118] sm:$0xff]
        %v2527 = vld [vmem:[#allocation2 + $0x120] sm:$0xf]
        %v2528 = vld [vmem:[#allocation2 + $0x12c] sm:$0xff]
        %v2529 = vld [vmem:[#allocation2 + $0x134] sm:$0xf]
        %v2562 = vunpack.c.l.b16 %v2498
        %v2563 = vunpack.c.h.b16 %v2498
        %v2564 = vunpack.c.l.b16 %v2499
        %v2565 = vunpack.c.l.b16 %v2500
        %v2566 = vunpack.c.h.b16 %v2500
        %v2567 = vunpack.c.l.b16 %v2501
        %v2568 = vunpack.c.l.b16 %v2502
        %v2569 = vunpack.c.h.b16 %v2502
        %v2570 = vunpack.c.l.b16 %v2503
        %v2571 = vunpack.c.l.b16 %v2504
        %v2572 = vunpack.c.h.b16 %v2504
        %v2573 = vunpack.c.l.b16 %v2505
        %v2574 = vunpack.c.l.b16 %v2506
        %v2575 = vunpack.c.h.b16 %v2506
        %v2576 = vunpack.c.l.b16 %v2507
        %v2577 = vunpack.c.l.b16 %v2508
        %v2578 = vunpack.c.h.b16 %v2508
        %v2579 = vunpack.c.l.b16 %v2509
        %v2580 = vunpack.c.l.b16 %v2510
        %v2581 = vunpack.c.h.b16 %v2510
        %v2582 = vunpack.c.l.b16 %v2511
        %v2583 = vunpack.c.l.b16 %v2512
        %v2584 = vunpack.c.h.b16 %v2512
        %v2585 = vunpack.c.l.b16 %v2513
        %v2586 = vunpack.c.l.b16 %v2514
        %v2587 = vunpack.c.h.b16 %v2514
        %v2588 = vunpack.c.l.b16 %v2515
        %v2589 = vunpack.c.l.b16 %v2516
        %v2590 = vunpack.c.h.b16 %v2516
        %v2591 = vunpack.c.l.b16 %v2517
        %v2592 = vunpack.c.l.b16 %v2518
        %v2593 = vunpack.c.h.b16 %v2518
        %v2594 = vunpack.c.l.b16 %v2519
        %v2595 = vunpack.c.l.b16 %v2520
        %v2596 = vunpack.c.h.b16 %v2520
        %v2597 = vunpack.c.l.b16 %v2521
        %v2598 = vunpack.c.l.b16 %v2522
        %v2599 = vunpack.c.h.b16 %v2522
        %v2600 = vunpack.c.l.b16 %v2523
        %v2601 = vunpack.c.l.b16 %v2524
        %v2602 = vunpack.c.h.b16 %v2524
        %v2603 = vunpack.c.l.b16 %v2525
        %v2604 = vunpack.c.l.b16 %v2526
        %v2605 = vunpack.c.h.b16 %v2526
        %v2606 = vunpack.c.l.b16 %v2527
        %v2607 = vunpack.c.l.b16 %v2528
        %v2608 = vunpack.c.h.b16 %v2528
        %v2609 = vunpack.c.l.b16 %v2529
        %v2610 = vpack.c.b16 %v2565, %v2562
        %v2611 = vpack.c.b16 %v2566, %v2563
        %v2612 = vpack.c.b16 %v2567, %v2564
        %v2613 = vpack.c.b16 %v2571, %v2568
        %v2614 = vpack.c.b16 %v2572, %v2569
        %v2615 = vpack.c.b16 %v2573, %v2570
        %v2616 = vpack.c.b16 %v2577, %v2574
        %v2617 = vpack.c.b16 %v2578, %v2575
        %v2618 = vpack.c.b16 %v2579, %v2576
        %v2619 = vpack.c.b16 %v2583, %v2580
        %v2620 = vpack.c.b16 %v2584, %v2581
        %v2621 = vpack.c.b16 %v2585, %v2582
        %v2622 = vpack.c.b16 %v2589, %v2586
        %v2623 = vpack.c.b16 %v2590, %v2587
        %v2624 = vpack.c.b16 %v2591, %v2588
        %v2625 = vpack.c.b16 %v2595, %v2592
        %v2626 = vpack.c.b16 %v2596, %v2593
        %v2627 = vpack.c.b16 %v2597, %v2594
        %v2628 = vpack.c.b16 %v2601, %v2598
        %v2629 = vpack.c.b16 %v2602, %v2599
        %v2630 = vpack.c.b16 %v2603, %v2600
        %v2631 = vpack.c.b16 %v2607, %v2604
        %v2632 = vpack.c.b16 %v2608, %v2605
        %v2633 = vpack.c.b16 %v2609, %v2606
        %2658 = vmatprep.subr.bf16.mxu0 %v2632
        %2659 = vmatpush1.bf16.msra.mxu0 %v2631
        %2660 = vmatprep.subr.bf16.mxu0 %v2629
        %2661 = vmatpush1.bf16.msra.mxu0 %v2628
        %2662 = vmatprep.subr.bf16.mxu0 %v2626
        %2663 = vmatpush1.bf16.msra.mxu0 %v2625
        %2664 = vmatprep.subr.bf16.mxu0 %v2623
        %2665 = vmatpush1.bf16.msra.mxu0 %v2622
        %2666 = vmatprep.subr.bf16.mxu0 %v2620
        %2667 = vmatpush1.bf16.msra.mxu0 %v2619
        %2668 = vmatprep.subr.bf16.mxu0 %v2617
        %2669 = vmatpush1.bf16.msra.mxu0 %v2616
        %2670 = vmatprep.subr.bf16.mxu0 %v2614
        %2671 = vmatpush1.bf16.msra.mxu0 %v2613
        %2672 = vmatprep.subr.bf16.mxu0 %v2611
        %2673 = vmatpush1.bf16.msra.mxu0 %v2610
        %2674 = vmatprep.subr.bf16.mxu0 0
        %2675 = vmatpush2.bf16.msra.mxu0 0
        %2676 = vmatprep.subr.bf16.mxu0 0
        %2677 = vmatpush2.bf16.msra.mxu0 0
        %2678 = vmatprep.subr.bf16.mxu0 0
        %2679 = vmatpush2.bf16.msra.mxu0 0
        %2680 = vmatprep.subr.bf16.mxu0 0
        %2681 = vmatpush2.bf16.msra.mxu0 0
        %2682 = vmatprep.subr.bf16.mxu0 0
        %2683 = vmatpush2.bf16.msra.mxu0 0
        %2684 = vmatprep.subr.bf16.mxu0 0
        %2685 = vmatpush2.bf16.msra.mxu0 0
        %2686 = vmatprep.subr.bf16.mxu0 0
        %2687 = vmatpush2.bf16.msra.mxu0 0
        %2688 = vmatprep.subr.bf16.mxu0 0
        %2689 = vmatpush2.bf16.msra.mxu0 0
        %2690 = vmatprep.mubr.bf16.mxu0 0
        %2691 = vmatmul.mubr.bf16.gmra.mxu0 %v2154
        %v2692 = vpop.f32.mrf.mxu0
        %v2693 = vadd.f32 0.0, %v2692
        %v2694 = vpop.f32.mrf.mxu0
        %v2695 = vadd.f32 0.0, %v2694
        %v2696 = vpop.f32.mrf.mxu0
        %v2697 = vadd.f32 0.0, %v2696
        %v2698 = vpop.f32.mrf.mxu0
        %v2699 = vadd.f32 0.0, %v2698
        %2700 = vmatprep.mubr.bf16.mxu0 0
        %2701 = vmatmul.mubr.bf16.gmra.mxu0 %v2155
        %v2702 = vpop.f32.mrf.mxu0
        %v2703 = vadd.f32 0.0, %v2702
        %v2704 = vpop.f32.mrf.mxu0
        %v2705 = vadd.f32 0.0, %v2704
        %v2706 = vpop.f32.mrf.mxu0
        %v2707 = vadd.f32 0.0, %v2706
        %v2708 = vpop.f32.mrf.mxu0
        %v2709 = vadd.f32 0.0, %v2708
        %2710 = vmatprep.mubr.bf16.mxu0 0
        %2711 = vmatmul.mubr.bf16.gmra.mxu0 %v2156
        %v2712 = vpop.f32.mrf.mxu0
        %v2713 = vadd.f32 0.0, %v2712
        %v2714 = vpop.f32.mrf.mxu0
        %v2715 = vadd.f32 0.0, %v2714
        %v2716 = vpop.f32.mrf.mxu0
        %v2717 = vadd.f32 0.0, %v2716
        %v2718 = vpop.f32.mrf.mxu0
        %v2719 = vadd.f32 0.0, %v2718
        %2720 = vmatprep.mubr.bf16.mxu0 0
        %2721 = vmatmul.mubr.bf16.gmra.mxu0 %v2157
        %v2722 = vpop.f32.mrf.mxu0
        %v2723 = vadd.f32 0.0, %v2722
        %v2724 = vpop.f32.mrf.mxu0
        %v2725 = vadd.f32 0.0, %v2724
        %v2726 = vpop.f32.mrf.mxu0
        %v2727 = vadd.f32 0.0, %v2726
        %v2728 = vpop.f32.mrf.mxu0
        %v2729 = vadd.f32 0.0, %v2728
        %2730 = vmatprep.mubr.bf16.mxu0 0
        %2731 = vmatmul.mubr.bf16.gmra.mxu0 %v2158
        %v2732 = vpop.f32.mrf.mxu0
        %v2733 = vadd.f32 0.0, %v2732
        %v2734 = vpop.f32.mrf.mxu0
        %v2735 = vadd.f32 0.0, %v2734
        %v2736 = vpop.f32.mrf.mxu0
        %v2737 = vadd.f32 0.0, %v2736
        %v2738 = vpop.f32.mrf.mxu0
        %v2739 = vadd.f32 0.0, %v2738
        %2740 = vmatprep.mubr.bf16.mxu0 0
        %2741 = vmatmul.mubr.bf16.gmra.mxu0 %v2159
        %v2742 = vpop.f32.mrf.mxu0
        %v2743 = vadd.f32 0.0, %v2742
        %v2744 = vpop.f32.mrf.mxu0
        %v2745 = vadd.f32 0.0, %v2744
        %v2746 = vpop.f32.mrf.mxu0
        %v2747 = vadd.f32 0.0, %v2746
        %v2748 = vpop.f32.mrf.mxu0
        %v2749 = vadd.f32 0.0, %v2748
        %2750 = vmatprep.mubr.bf16.mxu0 0
        %2751 = vmatmul.mubr.bf16.gmra.mxu0 %v2160
        %v2752 = vpop.f32.mrf.mxu0
        %v2753 = vadd.f32 0.0, %v2752
        %v2754 = vpop.f32.mrf.mxu0
        %v2755 = vadd.f32 0.0, %v2754
        %v2756 = vpop.f32.mrf.mxu0
        %v2757 = vadd.f32 0.0, %v2756
        %v2758 = vpop.f32.mrf.mxu0
        %v2759 = vadd.f32 0.0, %v2758
        %2760 = vmatprep.mubr.bf16.mxu0 0
        %2761 = vmatmul.mubr.bf16.gmra.mxu0 %v2161
        %v2762 = vpop.f32.mrf.mxu0
        %v2763 = vadd.f32 0.0, %v2762
        %v2764 = vpop.f32.mrf.mxu0
        %v2765 = vadd.f32 0.0, %v2764
        %v2766 = vpop.f32.mrf.mxu0
        %v2767 = vadd.f32 0.0, %v2766
        %v2768 = vpop.f32.mrf.mxu0
        %v2769 = vadd.f32 0.0, %v2768
        %2770 = vmatprep.mubr.bf16.mxu0 0
        %2771 = vmatmul.mubr.bf16.gmra.mxu0 %v2162
        %v2772 = vpop.f32.mrf.mxu0
        %v2773 = vadd.f32 0.0, %v2772
        %v2774 = vpop.f32.mrf.mxu0
        %v2775 = vadd.f32 0.0, %v2774
        %v2776 = vpop.f32.mrf.mxu0
        %v2777 = vadd.f32 0.0, %v2776
        %v2778 = vpop.f32.mrf.mxu0
        %v2779 = vadd.f32 0.0, %v2778
        %2780 = vmatprep.mubr.bf16.mxu0 0
        %2781 = vmatmul.mubr.bf16.gmra.mxu0 %v2163
        %v2782 = vpop.f32.mrf.mxu0
        %v2783 = vadd.f32 0.0, %v2782
        %v2784 = vpop.f32.mrf.mxu0
        %v2785 = vadd.f32 0.0, %v2784
        %v2786 = vpop.f32.mrf.mxu0
        %v2787 = vadd.f32 0.0, %v2786
        %v2788 = vpop.f32.mrf.mxu0
        %v2789 = vadd.f32 0.0, %v2788
        %2790 = vmatprep.mubr.bf16.mxu0 0
        %2791 = vmatmul.mubr.bf16.gmra.mxu0 %v2164
        %v2792 = vpop.f32.mrf.mxu0
        %v2793 = vadd.f32 0.0, %v2792
        %v2794 = vpop.f32.mrf.mxu0
        %v2795 = vadd.f32 0.0, %v2794
        %v2796 = vpop.f32.mrf.mxu0
        %v2797 = vadd.f32 0.0, %v2796
        %v2798 = vpop.f32.mrf.mxu0
        %v2799 = vadd.f32 0.0, %v2798
        %2800 = vmatprep.mubr.bf16.mxu0 0
        %2801 = vmatmul.mubr.bf16.gmra.mxu0 %v2165
        %v2802 = vpop.f32.mrf.mxu0
        %v2803 = vadd.f32 0.0, %v2802
        %v2804 = vpop.f32.mrf.mxu0
        %v2805 = vadd.f32 0.0, %v2804
        %v2806 = vpop.f32.mrf.mxu0
        %v2807 = vadd.f32 0.0, %v2806
        %v2808 = vpop.f32.mrf.mxu0
        %v2809 = vadd.f32 0.0, %v2808
        %2810 = vmatprep.mubr.bf16.mxu0 0
        %2811 = vmatmul.mubr.bf16.gmra.mxu0 %v2166
        %v2812 = vpop.f32.mrf.mxu0
        %v2813 = vadd.f32 0.0, %v2812
        %v2814 = vpop.f32.mrf.mxu0
        %v2815 = vadd.f32 0.0, %v2814
        %v2816 = vpop.f32.mrf.mxu0
        %v2817 = vadd.f32 0.0, %v2816
        %v2818 = vpop.f32.mrf.mxu0
        %v2819 = vadd.f32 0.0, %v2818
        %2820 = vmatprep.mubr.bf16.mxu0 0
        %2821 = vmatmul.mubr.bf16.gmra.mxu0 %v2167
        %v2822 = vpop.f32.mrf.mxu0
        %v2823 = vadd.f32 0.0, %v2822
        %v2824 = vpop.f32.mrf.mxu0
        %v2825 = vadd.f32 0.0, %v2824
        %v2826 = vpop.f32.mrf.mxu0
        %v2827 = vadd.f32 0.0, %v2826
        %v2828 = vpop.f32.mrf.mxu0
        %v2829 = vadd.f32 0.0, %v2828
        %2830 = vmatprep.mubr.bf16.mxu0 0
        %2831 = vmatmul.mubr.bf16.gmra.mxu0 %v2168
        %v2832 = vpop.f32.mrf.mxu0
        %v2833 = vadd.f32 0.0, %v2832
        %v2834 = vpop.f32.mrf.mxu0
        %v2835 = vadd.f32 0.0, %v2834
        %v2836 = vpop.f32.mrf.mxu0
        %v2837 = vadd.f32 0.0, %v2836
        %v2838 = vpop.f32.mrf.mxu0
        %v2839 = vadd.f32 0.0, %v2838
        %2840 = vmatprep.mubr.bf16.mxu0 0
        %2841 = vmatmul.mubr.bf16.gmra.mxu0 %v2169
        %v2842 = vpop.f32.mrf.mxu0
        %v2843 = vadd.f32 0.0, %v2842
        %v2844 = vpop.f32.mrf.mxu0
        %v2845 = vadd.f32 0.0, %v2844
        %v2846 = vpop.f32.mrf.mxu0
        %v2847 = vadd.f32 0.0, %v2846
        %v2848 = vpop.f32.mrf.mxu0
        %v2849 = vadd.f32 0.0, %v2848
        %2850 = vdwg.mxu0
        %2851 = vmatprep.subr.bf16.mxu0 0
        %2852 = vmatpush1.bf16.msra.mxu0 %v2633
        %2853 = vmatprep.subr.bf16.mxu0 0
        %2854 = vmatpush1.bf16.msra.mxu0 %v2630
        %2855 = vmatprep.subr.bf16.mxu0 0
        %2856 = vmatpush1.bf16.msra.mxu0 %v2627
        %2857 = vmatprep.subr.bf16.mxu0 0
        %2858 = vmatpush1.bf16.msra.mxu0 %v2624
        %2859 = vmatprep.subr.bf16.mxu0 0
        %2860 = vmatpush1.bf16.msra.mxu0 %v2621
        %2861 = vmatprep.subr.bf16.mxu0 0
        %2862 = vmatpush1.bf16.msra.mxu0 %v2618
        %2863 = vmatprep.subr.bf16.mxu0 0
        %2864 = vmatpush1.bf16.msra.mxu0 %v2615
        %2865 = vmatprep.subr.bf16.mxu0 0
        %2866 = vmatpush1.bf16.msra.mxu0 %v2612
        %2867 = vmatprep.subr.bf16.mxu0 0
        %2868 = vmatpush2.bf16.msra.mxu0 0
        %2869 = vmatprep.subr.bf16.mxu0 0
        %2870 = vmatpush2.bf16.msra.mxu0 0
        %2871 = vmatprep.subr.bf16.mxu0 0
        %2872 = vmatpush2.bf16.msra.mxu0 0
        %2873 = vmatprep.subr.bf16.mxu0 0
        %2874 = vmatpush2.bf16.msra.mxu0 0
        %2875 = vmatprep.subr.bf16.mxu0 0
        %2876 = vmatpush2.bf16.msra.mxu0 0
        %2877 = vmatprep.subr.bf16.mxu0 0
        %2878 = vmatpush2.bf16.msra.mxu0 0
        %2879 = vmatprep.subr.bf16.mxu0 0
        %2880 = vmatpush2.bf16.msra.mxu0 0
        %2881 = vmatprep.subr.bf16.mxu0 0
        %2882 = vmatpush2.bf16.msra.mxu0 0
        %2883 = vmatprep.mubr.bf16.mxu0 0
        %2884 = vmatmul.mubr.bf16.gmra.mxu0 %v2154
        %v2885 = vpop.f32.mrf.mxu0
        %v2886 = vadd.f32 0.0, %v2885
        %v2887 = vpop.f32.mrf.mxu0
        %v2888 = vpop.f32.mrf.mxu0
        %v2889 = vadd.f32 0.0, %v2888
        %v2890 = vpop.f32.mrf.mxu0
        %2891 = vmatprep.mubr.bf16.mxu0 0
        %2892 = vmatmul.mubr.bf16.gmra.mxu0 %v2155
        %v2893 = vpop.f32.mrf.mxu0
        %v2894 = vadd.f32 0.0, %v2893
        %v2895 = vpop.f32.mrf.mxu0
        %v2896 = vpop.f32.mrf.mxu0
        %v2897 = vadd.f32 0.0, %v2896
        %v2898 = vpop.f32.mrf.mxu0
        %2899 = vmatprep.mubr.bf16.mxu0 0
        %2900 = vmatmul.mubr.bf16.gmra.mxu0 %v2156
        %v2901 = vpop.f32.mrf.mxu0
        %v2902 = vadd.f32 0.0, %v2901
        %v2903 = vpop.f32.mrf.mxu0
        %v2904 = vpop.f32.mrf.mxu0
        %v2905 = vadd.f32 0.0, %v2904
        %v2906 = vpop.f32.mrf.mxu0
        %2907 = vmatprep.mubr.bf16.mxu0 0
        %2908 = vmatmul.mubr.bf16.gmra.mxu0 %v2157
        %v2909 = vpop.f32.mrf.mxu0
        %v2910 = vadd.f32 0.0, %v2909
        %v2911 = vpop.f32.mrf.mxu0
        %v2912 = vpop.f32.mrf.mxu0
        %v2913 = vadd.f32 0.0, %v2912
        %v2914 = vpop.f32.mrf.mxu0
        %2915 = vmatprep.mubr.bf16.mxu0 0
        %2916 = vmatmul.mubr.bf16.gmra.mxu0 %v2158
        %v2917 = vpop.f32.mrf.mxu0
        %v2918 = vadd.f32 0.0, %v2917
        %v2919 = vpop.f32.mrf.mxu0
        %v2920 = vpop.f32.mrf.mxu0
        %v2921 = vadd.f32 0.0, %v2920
        %v2922 = vpop.f32.mrf.mxu0
        %2923 = vmatprep.mubr.bf16.mxu0 0
        %2924 = vmatmul.mubr.bf16.gmra.mxu0 %v2159
        %v2925 = vpop.f32.mrf.mxu0
        %v2926 = vadd.f32 0.0, %v2925
        %v2927 = vpop.f32.mrf.mxu0
        %v2928 = vpop.f32.mrf.mxu0
        %v2929 = vadd.f32 0.0, %v2928
        %v2930 = vpop.f32.mrf.mxu0
        %2931 = vmatprep.mubr.bf16.mxu0 0
        %2932 = vmatmul.mubr.bf16.gmra.mxu0 %v2160
        %v2933 = vpop.f32.mrf.mxu0
        %v2934 = vadd.f32 0.0, %v2933
        %v2935 = vpop.f32.mrf.mxu0
        %v2936 = vpop.f32.mrf.mxu0
        %v2937 = vadd.f32 0.0, %v2936
        %v2938 = vpop.f32.mrf.mxu0
        %2939 = vmatprep.mubr.bf16.mxu0 0
        %2940 = vmatmul.mubr.bf16.gmra.mxu0 %v2161
        %v2941 = vpop.f32.mrf.mxu0
        %v2942 = vadd.f32 0.0, %v2941
        %v2943 = vpop.f32.mrf.mxu0
        %v2944 = vpop.f32.mrf.mxu0
        %v2945 = vadd.f32 0.0, %v2944
        %v2946 = vpop.f32.mrf.mxu0
        %2947 = vmatprep.mubr.bf16.mxu0 0
        %2948 = vmatmul.mubr.bf16.gmra.mxu0 %v2162
        %v2949 = vpop.f32.mrf.mxu0
        %v2950 = vadd.f32 0.0, %v2949
        %v2951 = vpop.f32.mrf.mxu0
        %v2952 = vpop.f32.mrf.mxu0
        %v2953 = vadd.f32 0.0, %v2952
        %v2954 = vpop.f32.mrf.mxu0
        %2955 = vmatprep.mubr.bf16.mxu0 0
        %2956 = vmatmul.mubr.bf16.gmra.mxu0 %v2163
        %v2957 = vpop.f32.mrf.mxu0
        %v2958 = vadd.f32 0.0, %v2957
        %v2959 = vpop.f32.mrf.mxu0
        %v2960 = vpop.f32.mrf.mxu0
        %v2961 = vadd.f32 0.0, %v2960
        %v2962 = vpop.f32.mrf.mxu0
        %2963 = vmatprep.mubr.bf16.mxu0 0
        %2964 = vmatmul.mubr.bf16.gmra.mxu0 %v2164
        %v2965 = vpop.f32.mrf.mxu0
        %v2966 = vadd.f32 0.0, %v2965
        %v2967 = vpop.f32.mrf.mxu0
        %v2968 = vpop.f32.mrf.mxu0
        %v2969 = vadd.f32 0.0, %v2968
        %v2970 = vpop.f32.mrf.mxu0
        %2971 = vmatprep.mubr.bf16.mxu0 0
        %2972 = vmatmul.mubr.bf16.gmra.mxu0 %v2165
        %v2973 = vpop.f32.mrf.mxu0
        %v2974 = vadd.f32 0.0, %v2973
        %v2975 = vpop.f32.mrf.mxu0
        %v2976 = vpop.f32.mrf.mxu0
        %v2977 = vadd.f32 0.0, %v2976
        %v2978 = vpop.f32.mrf.mxu0
        %2979 = vmatprep.mubr.bf16.mxu0 0
        %2980 = vmatmul.mubr.bf16.gmra.mxu0 %v2166
        %v2981 = vpop.f32.mrf.mxu0
        %v2982 = vadd.f32 0.0, %v2981
        %v2983 = vpop.f32.mrf.mxu0
        %v2984 = vpop.f32.mrf.mxu0
        %v2985 = vadd.f32 0.0, %v2984
        %v2986 = vpop.f32.mrf.mxu0
        %2987 = vmatprep.mubr.bf16.mxu0 0
        %2988 = vmatmul.mubr.bf16.gmra.mxu0 %v2167
        %v2989 = vpop.f32.mrf.mxu0
        %v2990 = vadd.f32 0.0, %v2989
        %v2991 = vpop.f32.mrf.mxu0
        %v2992 = vpop.f32.mrf.mxu0
        %v2993 = vadd.f32 0.0, %v2992
        %v2994 = vpop.f32.mrf.mxu0
        %2995 = vmatprep.mubr.bf16.mxu0 0
        %2996 = vmatmul.mubr.bf16.gmra.mxu0 %v2168
        %v2997 = vpop.f32.mrf.mxu0
        %v2998 = vadd.f32 0.0, %v2997
        %v2999 = vpop.f32.mrf.mxu0
        %v3000 = vpop.f32.mrf.mxu0
        %v3001 = vadd.f32 0.0, %v3000
        %v3002 = vpop.f32.mrf.mxu0
        %3003 = vmatprep.mubr.bf16.mxu0 0
        %3004 = vmatmul.mubr.bf16.gmra.mxu0 %v2169
        %v3005 = vpop.f32.mrf.mxu0
        %v3006 = vadd.f32 0.0, %v3005
        %v3007 = vpop.f32.mrf.mxu0
        %v3008 = vpop.f32.mrf.mxu0
        %v3009 = vadd.f32 0.0, %v3008
        %v3010 = vpop.f32.mrf.mxu0
        %3011 = vdwg.mxu0
        %v3012 = vld [vmem:[#allocation2 + $0xc] sm:$0xf]
        %v3013 = vld [vmem:[#allocation2 + $0x20] sm:$0xf]
        %v3014 = vld [vmem:[#allocation2 + $0x34] sm:$0xf]
        %v3015 = vld [vmem:[#allocation2 + $0x48] sm:$0xf]
        %v3016 = vld [vmem:[#allocation2 + $0x5c] sm:$0xf]
        %v3017 = vld [vmem:[#allocation2 + $0x70] sm:$0xf]
        %v3018 = vld [vmem:[#allocation2 + $0x84] sm:$0xf]
        %v3019 = vld [vmem:[#allocation2 + $0x98] sm:$0xf]
        %v3020 = vld [vmem:[#allocation2 + $0xac] sm:$0xf]
        %v3021 = vld [vmem:[#allocation2 + $0xc0] sm:$0xf]
        %v3022 = vld [vmem:[#allocation2 + $0xd4] sm:$0xf]
        %v3023 = vld [vmem:[#allocation2 + $0xe8] sm:$0xf]
        %v3024 = vld [vmem:[#allocation2 + $0xfc] sm:$0xf]
        %v3025 = vld [vmem:[#allocation2 + $0x110] sm:$0xf]
        %v3026 = vld [vmem:[#allocation2 + $0x124] sm:$0xf]
        %v3027 = vld [vmem:[#allocation2 + $0x138] sm:$0xf]
        %v3044 = vunpack.c.l.b16 %v3012
        %v3045 = vunpack.c.l.b16 %v3013
        %v3046 = vunpack.c.l.b16 %v3014
        %v3047 = vunpack.c.l.b16 %v3015
        %v3048 = vunpack.c.l.b16 %v3016
        %v3049 = vunpack.c.l.b16 %v3017
        %v3050 = vunpack.c.l.b16 %v3018
        %v3051 = vunpack.c.l.b16 %v3019
        %v3052 = vunpack.c.l.b16 %v3020
        %v3053 = vunpack.c.l.b16 %v3021
        %v3054 = vunpack.c.l.b16 %v3022
        %v3055 = vunpack.c.l.b16 %v3023
        %v3056 = vunpack.c.l.b16 %v3024
        %v3057 = vunpack.c.l.b16 %v3025
        %v3058 = vunpack.c.l.b16 %v3026
        %v3059 = vunpack.c.l.b16 %v3027
        %v3060 = vpack.c.b16 %v3045, %v3044
        %v3061 = vpack.c.b16 %v3047, %v3046
        %v3062 = vpack.c.b16 %v3049, %v3048
        %v3063 = vpack.c.b16 %v3051, %v3050
        %v3064 = vpack.c.b16 %v3053, %v3052
        %v3065 = vpack.c.b16 %v3055, %v3054
        %v3066 = vpack.c.b16 %v3057, %v3056
        %v3067 = vpack.c.b16 %v3059, %v3058
        %3076 = vmatprep.subr.bf16.mxu0 0
        %3077 = vmatpush1.bf16.msra.mxu0 %v3067
        %3078 = vmatprep.subr.bf16.mxu0 0
        %3079 = vmatpush1.bf16.msra.mxu0 %v3066
        %3080 = vmatprep.subr.bf16.mxu0 0
        %3081 = vmatpush1.bf16.msra.mxu0 %v3065
        %3082 = vmatprep.subr.bf16.mxu0 0
        %3083 = vmatpush1.bf16.msra.mxu0 %v3064
        %3084 = vmatprep.subr.bf16.mxu0 0
        %3085 = vmatpush1.bf16.msra.mxu0 %v3063
        %3086 = vmatprep.subr.bf16.mxu0 0
        %3087 = vmatpush1.bf16.msra.mxu0 %v3062
        %3088 = vmatprep.subr.bf16.mxu0 0
        %3089 = vmatpush1.bf16.msra.mxu0 %v3061
        %3090 = vmatprep.subr.bf16.mxu0 0
        %3091 = vmatpush1.bf16.msra.mxu0 %v3060
        %3092 = vmatprep.subr.bf16.mxu0 0
        %3093 = vmatpush2.bf16.msra.mxu0 0
        %3094 = vmatprep.subr.bf16.mxu0 0
        %3095 = vmatpush2.bf16.msra.mxu0 0
        %3096 = vmatprep.subr.bf16.mxu0 0
        %3097 = vmatpush2.bf16.msra.mxu0 0
        %3098 = vmatprep.subr.bf16.mxu0 0
        %3099 = vmatpush2.bf16.msra.mxu0 0
        %3100 = vmatprep.subr.bf16.mxu0 0
        %3101 = vmatpush2.bf16.msra.mxu0 0
        %3102 = vmatprep.subr.bf16.mxu0 0
        %3103 = vmatpush2.bf16.msra.mxu0 0
        %3104 = vmatprep.subr.bf16.mxu0 0
        %3105 = vmatpush2.bf16.msra.mxu0 0
        %3106 = vmatprep.subr.bf16.mxu0 0
        %3107 = vmatpush2.bf16.msra.mxu0 0
        %3108 = vmatprep.mubr.bf16.mxu0 0
        %3109 = vmatmul.mubr.bf16.gmra.mxu0 %v2362
        %v3110 = vpop.f32.mrf.mxu0
        %v3111 = vadd.f32 0.0, %v3110
        %v3112 = vpop.f32.mrf.mxu0
        %v3113 = vpop.f32.mrf.mxu0
        %v3114 = vadd.f32 0.0, %v3113
        %v3115 = vpop.f32.mrf.mxu0
        %3116 = vmatprep.mubr.bf16.mxu0 0
        %3117 = vmatmul.mubr.bf16.gmra.mxu0 %v2363
        %v3118 = vpop.f32.mrf.mxu0
        %v3119 = vadd.f32 0.0, %v3118
        %v3120 = vpop.f32.mrf.mxu0
        %v3121 = vpop.f32.mrf.mxu0
        %v3122 = vadd.f32 0.0, %v3121
        %v3123 = vpop.f32.mrf.mxu0
        %3124 = vmatprep.mubr.bf16.mxu0 0
        %3125 = vmatmul.mubr.bf16.gmra.mxu0 %v2364
        %v3126 = vpop.f32.mrf.mxu0
        %v3127 = vadd.f32 0.0, %v3126
        %v3128 = vpop.f32.mrf.mxu0
        %v3129 = vpop.f32.mrf.mxu0
        %v3130 = vadd.f32 0.0, %v3129
        %v3131 = vpop.f32.mrf.mxu0
        %3132 = vmatprep.mubr.bf16.mxu0 0
        %3133 = vmatmul.mubr.bf16.gmra.mxu0 %v2365
        %v3134 = vpop.f32.mrf.mxu0
        %v3135 = vadd.f32 0.0, %v3134
        %v3136 = vpop.f32.mrf.mxu0
        %v3137 = vpop.f32.mrf.mxu0
        %v3138 = vadd.f32 0.0, %v3137
        %v3139 = vpop.f32.mrf.mxu0
        %3140 = vmatprep.mubr.bf16.mxu0 0
        %3141 = vmatmul.mubr.bf16.gmra.mxu0 %v2366
        %v3142 = vpop.f32.mrf.mxu0
        %v3143 = vadd.f32 0.0, %v3142
        %v3144 = vpop.f32.mrf.mxu0
        %v3145 = vpop.f32.mrf.mxu0
        %v3146 = vadd.f32 0.0, %v3145
        %v3147 = vpop.f32.mrf.mxu0
        %3148 = vmatprep.mubr.bf16.mxu0 0
        %3149 = vmatmul.mubr.bf16.gmra.mxu0 %v2367
        %v3150 = vpop.f32.mrf.mxu0
        %v3151 = vadd.f32 0.0, %v3150
        %v3152 = vpop.f32.mrf.mxu0
        %v3153 = vpop.f32.mrf.mxu0
        %v3154 = vadd.f32 0.0, %v3153
        %v3155 = vpop.f32.mrf.mxu0
        %3156 = vmatprep.mubr.bf16.mxu0 0
        %3157 = vmatmul.mubr.bf16.gmra.mxu0 %v2368
        %v3158 = vpop.f32.mrf.mxu0
        %v3159 = vadd.f32 0.0, %v3158
        %v3160 = vpop.f32.mrf.mxu0
        %v3161 = vpop.f32.mrf.mxu0
        %v3162 = vadd.f32 0.0, %v3161
        %v3163 = vpop.f32.mrf.mxu0
        %3164 = vmatprep.mubr.bf16.mxu0 0
        %3165 = vmatmul.mubr.bf16.gmra.mxu0 %v2369
        %v3166 = vpop.f32.mrf.mxu0
        %v3167 = vadd.f32 0.0, %v3166
        %v3168 = vpop.f32.mrf.mxu0
        %v3169 = vpop.f32.mrf.mxu0
        %v3170 = vadd.f32 0.0, %v3169
        %v3171 = vpop.f32.mrf.mxu0
        %3172 = vmatprep.mubr.bf16.mxu0 0
        %3173 = vmatmul.mubr.bf16.gmra.mxu0 %v2370
        %v3174 = vpop.f32.mrf.mxu0
        %v3175 = vadd.f32 0.0, %v3174
        %v3176 = vpop.f32.mrf.mxu0
        %v3177 = vpop.f32.mrf.mxu0
        %v3178 = vadd.f32 0.0, %v3177
        %v3179 = vpop.f32.mrf.mxu0
        %3180 = vmatprep.mubr.bf16.mxu0 0
        %3181 = vmatmul.mubr.bf16.gmra.mxu0 %v2371
        %v3182 = vpop.f32.mrf.mxu0
        %v3183 = vadd.f32 0.0, %v3182
        %v3184 = vpop.f32.mrf.mxu0
        %v3185 = vpop.f32.mrf.mxu0
        %v3186 = vadd.f32 0.0, %v3185
        %v3187 = vpop.f32.mrf.mxu0
        %3188 = vmatprep.mubr.bf16.mxu0 0
        %3189 = vmatmul.mubr.bf16.gmra.mxu0 %v2372
        %v3190 = vpop.f32.mrf.mxu0
        %v3191 = vadd.f32 0.0, %v3190
        %v3192 = vpop.f32.mrf.mxu0
        %v3193 = vpop.f32.mrf.mxu0
        %v3194 = vadd.f32 0.0, %v3193
        %v3195 = vpop.f32.mrf.mxu0
        %3196 = vmatprep.mubr.bf16.mxu0 0
        %3197 = vmatmul.mubr.bf16.gmra.mxu0 %v2373
        %v3198 = vpop.f32.mrf.mxu0
        %v3199 = vadd.f32 0.0, %v3198
        %v3200 = vpop.f32.mrf.mxu0
        %v3201 = vpop.f32.mrf.mxu0
        %v3202 = vadd.f32 0.0, %v3201
        %v3203 = vpop.f32.mrf.mxu0
        %3204 = vmatprep.mubr.bf16.mxu0 0
        %3205 = vmatmul.mubr.bf16.gmra.mxu0 %v2374
        %v3206 = vpop.f32.mrf.mxu0
        %v3207 = vadd.f32 0.0, %v3206
        %v3208 = vpop.f32.mrf.mxu0
        %v3209 = vpop.f32.mrf.mxu0
        %v3210 = vadd.f32 0.0, %v3209
        %v3211 = vpop.f32.mrf.mxu0
        %3212 = vmatprep.mubr.bf16.mxu0 0
        %3213 = vmatmul.mubr.bf16.gmra.mxu0 %v2375
        %v3214 = vpop.f32.mrf.mxu0
        %v3215 = vadd.f32 0.0, %v3214
        %v3216 = vpop.f32.mrf.mxu0
        %v3217 = vpop.f32.mrf.mxu0
        %v3218 = vadd.f32 0.0, %v3217
        %v3219 = vpop.f32.mrf.mxu0
        %3220 = vmatprep.mubr.bf16.mxu0 0
        %3221 = vmatmul.mubr.bf16.gmra.mxu0 %v2376
        %v3222 = vpop.f32.mrf.mxu0
        %v3223 = vadd.f32 0.0, %v3222
        %v3224 = vpop.f32.mrf.mxu0
        %v3225 = vpop.f32.mrf.mxu0
        %v3226 = vadd.f32 0.0, %v3225
        %v3227 = vpop.f32.mrf.mxu0
        %3228 = vmatprep.mubr.bf16.mxu0 0
        %3229 = vmatmul.mubr.bf16.gmra.mxu0 %v2377
        %v3230 = vpop.f32.mrf.mxu0
        %v3231 = vadd.f32 0.0, %v3230
        %v3232 = vpop.f32.mrf.mxu0
        %v3233 = vpop.f32.mrf.mxu0
        %v3234 = vadd.f32 0.0, %v3233
        %v3235 = vpop.f32.mrf.mxu0
        %3236 = vdwg.mxu0
        %v3237 = vld [vmem:[%s873] sm:$0xff]
        %v3238 = vld [vmem:[%s873 + $0x8] sm:$0xff]
        %v3239 = vld [vmem:[%s873 + $0x10] sm:$0xff]
        %v3240 = vld [vmem:[%s873 + $0x18] sm:$0xff]
        %v3241 = vld [vmem:[%s873 + $0x20] sm:$0xff]
        %v3242 = vld [vmem:[%s873 + $0x28] sm:$0xff]
        %v3243 = vld [vmem:[%s873 + $0x30] sm:$0xff]
        %v3244 = vld [vmem:[%s873 + $0x38] sm:$0xff]
        %v3245 = vld [vmem:[%s873 + $0x40] sm:$0xff]
        %v3246 = vld [vmem:[%s873 + $0x48] sm:$0xff]
        %v3247 = vld [vmem:[%s873 + $0x50] sm:$0xff]
        %v3248 = vld [vmem:[%s873 + $0x58] sm:$0xff]
        %v3249 = vld [vmem:[%s873 + $0x60] sm:$0xff]
        %v3250 = vld [vmem:[%s873 + $0x68] sm:$0xff]
        %v3251 = vld [vmem:[%s873 + $0x70] sm:$0xff]
        %v3252 = vld [vmem:[%s873 + $0x78] sm:$0xff]
        %v3253 = vld [vmem:[%s873 + $0x80] sm:$0xff]
        %v3254 = vld [vmem:[%s873 + $0x88] sm:$0xff]
        %v3255 = vld [vmem:[%s873 + $0x90] sm:$0xff]
        %v3256 = vld [vmem:[%s873 + $0x98] sm:$0xff]
        %v3257 = vld [vmem:[%s873 + $0xa0] sm:$0xff]
        %v3258 = vld [vmem:[%s873 + $0xa8] sm:$0xff]
        %v3259 = vld [vmem:[%s873 + $0xb0] sm:$0xff]
        %v3260 = vld [vmem:[%s873 + $0xb8] sm:$0xff]
        %v3261 = vld [vmem:[%s873 + $0xc0] sm:$0xff]
        %v3262 = vld [vmem:[%s873 + $0xc8] sm:$0xff]
        %v3263 = vld [vmem:[%s873 + $0xd0] sm:$0xff]
        %v3264 = vld [vmem:[%s873 + $0xd8] sm:$0xff]
        %v3265 = vld [vmem:[%s873 + $0xe0] sm:$0xff]
        %v3266 = vld [vmem:[%s873 + $0xe8] sm:$0xff]
        %v3267 = vld [vmem:[%s873 + $0xf0] sm:$0xff]
        %v3268 = vld [vmem:[%s873 + $0xf8] sm:$0xff]
        %v3269 = vpack.c.bf16 %v3238, %v3237
        %v3270 = vpack.c.bf16 %v3240, %v3239
        %v3271 = vpack.c.bf16 %v3242, %v3241
        %v3272 = vpack.c.bf16 %v3244, %v3243
        %v3273 = vpack.c.bf16 %v3246, %v3245
        %v3274 = vpack.c.bf16 %v3248, %v3247
        %v3275 = vpack.c.bf16 %v3250, %v3249
        %v3276 = vpack.c.bf16 %v3252, %v3251
        %v3277 = vpack.c.bf16 %v3254, %v3253
        %v3278 = vpack.c.bf16 %v3256, %v3255
        %v3279 = vpack.c.bf16 %v3258, %v3257
        %v3280 = vpack.c.bf16 %v3260, %v3259
        %v3281 = vpack.c.bf16 %v3262, %v3261
        %v3282 = vpack.c.bf16 %v3264, %v3263
        %v3283 = vpack.c.bf16 %v3266, %v3265
        %v3284 = vpack.c.bf16 %v3268, %v3267
        %v3285 = vld [vmem:[%s8] sm:$0xf]
        %v3286 = vld [vmem:[%s8 + $0x4] sm:$0xf]
        %v3287 = vld [vmem:[%s8 + $0x8] sm:$0xf]
        %v3288 = vld [vmem:[%s8 + $0xc] sm:$0xf]
        %v3289 = vld [vmem:[%s8 + $0x10] sm:$0xf]
        %v3290 = vld [vmem:[%s8 + $0x14] sm:$0xf]
        %v3291 = vld [vmem:[%s8 + $0x18] sm:$0xf]
        %v3292 = vld [vmem:[%s8 + $0x1c] sm:$0xf]
        %v3293 = vld [vmem:[%s8 + $0x20] sm:$0xf]
        %v3294 = vld [vmem:[%s8 + $0x24] sm:$0xf]
        %v3295 = vld [vmem:[%s8 + $0x28] sm:$0xf]
        %v3296 = vld [vmem:[%s8 + $0x2c] sm:$0xf]
        %v3297 = vld [vmem:[%s8 + $0x30] sm:$0xf]
        %v3298 = vld [vmem:[%s8 + $0x34] sm:$0xf]
        %v3299 = vld [vmem:[%s8 + $0x38] sm:$0xf]
        %v3300 = vld [vmem:[%s8 + $0x3c] sm:$0xf]
        %v3317 = vunpack.c.l.b16 %v3285
        %v3318 = vunpack.c.l.b16 %v3286
        %v3319 = vunpack.c.l.b16 %v3287
        %v3320 = vunpack.c.l.b16 %v3288
        %v3321 = vunpack.c.l.b16 %v3289
        %v3322 = vunpack.c.l.b16 %v3290
        %v3323 = vunpack.c.l.b16 %v3291
        %v3324 = vunpack.c.l.b16 %v3292
        %v3325 = vunpack.c.l.b16 %v3293
        %v3326 = vunpack.c.l.b16 %v3294
        %v3327 = vunpack.c.l.b16 %v3295
        %v3328 = vunpack.c.l.b16 %v3296
        %v3329 = vunpack.c.l.b16 %v3297
        %v3330 = vunpack.c.l.b16 %v3298
        %v3331 = vunpack.c.l.b16 %v3299
        %v3332 = vunpack.c.l.b16 %v3300
        %v3333 = vpack.c.b16 %v3318, %v3317
        %v3334 = vpack.c.b16 %v3320, %v3319
        %v3335 = vpack.c.b16 %v3322, %v3321
        %v3336 = vpack.c.b16 %v3324, %v3323
        %v3337 = vpack.c.b16 %v3326, %v3325
        %v3338 = vpack.c.b16 %v3328, %v3327
        %v3339 = vpack.c.b16 %v3330, %v3329
        %v3340 = vpack.c.b16 %v3332, %v3331
        %3349 = vmatprep.subr.bf16.mxu0 0
        %3350 = vmatpush1.bf16.msra.mxu0 %v3340
        %3351 = vmatprep.subr.bf16.mxu0 0
        %3352 = vmatpush1.bf16.msra.mxu0 %v3339
        %3353 = vmatprep.subr.bf16.mxu0 0
        %3354 = vmatpush1.bf16.msra.mxu0 %v3338
        %3355 = vmatprep.subr.bf16.mxu0 0
        %3356 = vmatpush1.bf16.msra.mxu0 %v3337
        %3357 = vmatprep.subr.bf16.mxu0 0
        %3358 = vmatpush1.bf16.msra.mxu0 %v3336
        %3359 = vmatprep.subr.bf16.mxu0 0
        %3360 = vmatpush1.bf16.msra.mxu0 %v3335
        %3361 = vmatprep.subr.bf16.mxu0 0
        %3362 = vmatpush1.bf16.msra.mxu0 %v3334
        %3363 = vmatprep.subr.bf16.mxu0 0
        %3364 = vmatpush1.bf16.msra.mxu0 %v3333
        %3365 = vmatprep.subr.bf16.mxu0 0
        %3366 = vmatpush2.bf16.msra.mxu0 0
        %3367 = vmatprep.subr.bf16.mxu0 0
        %3368 = vmatpush2.bf16.msra.mxu0 0
        %3369 = vmatprep.subr.bf16.mxu0 0
        %3370 = vmatpush2.bf16.msra.mxu0 0
        %3371 = vmatprep.subr.bf16.mxu0 0
        %3372 = vmatpush2.bf16.msra.mxu0 0
        %3373 = vmatprep.subr.bf16.mxu0 0
        %3374 = vmatpush2.bf16.msra.mxu0 0
        %3375 = vmatprep.subr.bf16.mxu0 0
        %3376 = vmatpush2.bf16.msra.mxu0 0
        %3377 = vmatprep.subr.bf16.mxu0 0
        %3378 = vmatpush2.bf16.msra.mxu0 0
        %3379 = vmatprep.subr.bf16.mxu0 0
        %3380 = vmatpush2.bf16.msra.mxu0 0
        %3381 = vmatprep.mubr.bf16.mxu0 0
        %3382 = vmatmul.mubr.bf16.gmra.mxu0 %v3269
        %v3383 = vpop.f32.mrf.mxu0
        %v3384 = vadd.f32 %v2693, %v3383
        %v3385 = vpop.f32.mrf.mxu0
        %v3386 = vpop.f32.mrf.mxu0
        %v3387 = vadd.f32 %v2697, %v3386
        %v3388 = vpop.f32.mrf.mxu0
        %3389 = vmatprep.mubr.bf16.mxu0 0
        %3390 = vmatmul.mubr.bf16.gmra.mxu0 %v3270
        %v3391 = vpop.f32.mrf.mxu0
        %v3392 = vadd.f32 %v2703, %v3391
        %v3393 = vpop.f32.mrf.mxu0
        %v3394 = vpop.f32.mrf.mxu0
        %v3395 = vadd.f32 %v2707, %v3394
        %v3396 = vpop.f32.mrf.mxu0
        %3397 = vmatprep.mubr.bf16.mxu0 0
        %3398 = vmatmul.mubr.bf16.gmra.mxu0 %v3271
        %v3399 = vpop.f32.mrf.mxu0
        %v3400 = vadd.f32 %v2713, %v3399
        %v3401 = vpop.f32.mrf.mxu0
        %v3402 = vpop.f32.mrf.mxu0
        %v3403 = vadd.f32 %v2717, %v3402
        %v3404 = vpop.f32.mrf.mxu0
        %3405 = vmatprep.mubr.bf16.mxu0 0
        %3406 = vmatmul.mubr.bf16.gmra.mxu0 %v3272
        %v3407 = vpop.f32.mrf.mxu0
        %v3408 = vadd.f32 %v2723, %v3407
        %v3409 = vpop.f32.mrf.mxu0
        %v3410 = vpop.f32.mrf.mxu0
        %v3411 = vadd.f32 %v2727, %v3410
        %v3412 = vpop.f32.mrf.mxu0
        %3413 = vmatprep.mubr.bf16.mxu0 0
        %3414 = vmatmul.mubr.bf16.gmra.mxu0 %v3273
        %v3415 = vpop.f32.mrf.mxu0
        %v3416 = vadd.f32 %v2733, %v3415
        %v3417 = vpop.f32.mrf.mxu0
        %v3418 = vpop.f32.mrf.mxu0
        %v3419 = vadd.f32 %v2737, %v3418
        %v3420 = vpop.f32.mrf.mxu0
        %3421 = vmatprep.mubr.bf16.mxu0 0
        %3422 = vmatmul.mubr.bf16.gmra.mxu0 %v3274
        %v3423 = vpop.f32.mrf.mxu0
        %v3424 = vadd.f32 %v2743, %v3423
        %v3425 = vpop.f32.mrf.mxu0
        %v3426 = vpop.f32.mrf.mxu0
        %v3427 = vadd.f32 %v2747, %v3426
        %v3428 = vpop.f32.mrf.mxu0
        %3429 = vmatprep.mubr.bf16.mxu0 0
        %3430 = vmatmul.mubr.bf16.gmra.mxu0 %v3275
        %v3431 = vpop.f32.mrf.mxu0
        %v3432 = vadd.f32 %v2753, %v3431
        %v3433 = vpop.f32.mrf.mxu0
        %v3434 = vpop.f32.mrf.mxu0
        %v3435 = vadd.f32 %v2757, %v3434
        %v3436 = vpop.f32.mrf.mxu0
        %3437 = vmatprep.mubr.bf16.mxu0 0
        %3438 = vmatmul.mubr.bf16.gmra.mxu0 %v3276
        %v3439 = vpop.f32.mrf.mxu0
        %v3440 = vadd.f32 %v2763, %v3439
        %v3441 = vpop.f32.mrf.mxu0
        %v3442 = vpop.f32.mrf.mxu0
        %v3443 = vadd.f32 %v2767, %v3442
        %v3444 = vpop.f32.mrf.mxu0
        %3445 = vmatprep.mubr.bf16.mxu0 0
        %3446 = vmatmul.mubr.bf16.gmra.mxu0 %v3277
        %v3447 = vpop.f32.mrf.mxu0
        %v3448 = vadd.f32 %v2773, %v3447
        %v3449 = vpop.f32.mrf.mxu0
        %v3450 = vpop.f32.mrf.mxu0
        %v3451 = vadd.f32 %v2777, %v3450
        %v3452 = vpop.f32.mrf.mxu0
        %3453 = vmatprep.mubr.bf16.mxu0 0
        %3454 = vmatmul.mubr.bf16.gmra.mxu0 %v3278
        %v3455 = vpop.f32.mrf.mxu0
        %v3456 = vadd.f32 %v2783, %v3455
        %v3457 = vpop.f32.mrf.mxu0
        %v3458 = vpop.f32.mrf.mxu0
        %v3459 = vadd.f32 %v2787, %v3458
        %v3460 = vpop.f32.mrf.mxu0
        %3461 = vmatprep.mubr.bf16.mxu0 0
        %3462 = vmatmul.mubr.bf16.gmra.mxu0 %v3279
        %v3463 = vpop.f32.mrf.mxu0
        %v3464 = vadd.f32 %v2793, %v3463
        %v3465 = vpop.f32.mrf.mxu0
        %v3466 = vpop.f32.mrf.mxu0
        %v3467 = vadd.f32 %v2797, %v3466
        %v3468 = vpop.f32.mrf.mxu0
        %3469 = vmatprep.mubr.bf16.mxu0 0
        %3470 = vmatmul.mubr.bf16.gmra.mxu0 %v3280
        %v3471 = vpop.f32.mrf.mxu0
        %v3472 = vadd.f32 %v2803, %v3471
        %v3473 = vpop.f32.mrf.mxu0
        %v3474 = vpop.f32.mrf.mxu0
        %v3475 = vadd.f32 %v2807, %v3474
        %v3476 = vpop.f32.mrf.mxu0
        %3477 = vmatprep.mubr.bf16.mxu0 0
        %3478 = vmatmul.mubr.bf16.gmra.mxu0 %v3281
        %v3479 = vpop.f32.mrf.mxu0
        %v3480 = vadd.f32 %v2813, %v3479
        %v3481 = vpop.f32.mrf.mxu0
        %v3482 = vpop.f32.mrf.mxu0
        %v3483 = vadd.f32 %v2817, %v3482
        %v3484 = vpop.f32.mrf.mxu0
        %3485 = vmatprep.mubr.bf16.mxu0 0
        %3486 = vmatmul.mubr.bf16.gmra.mxu0 %v3282
        %v3487 = vpop.f32.mrf.mxu0
        %v3488 = vadd.f32 %v2823, %v3487
        %v3489 = vpop.f32.mrf.mxu0
        %v3490 = vpop.f32.mrf.mxu0
        %v3491 = vadd.f32 %v2827, %v3490
        %v3492 = vpop.f32.mrf.mxu0
        %3493 = vmatprep.mubr.bf16.mxu0 0
        %3494 = vmatmul.mubr.bf16.gmra.mxu0 %v3283
        %v3495 = vpop.f32.mrf.mxu0
        %v3496 = vadd.f32 %v2833, %v3495
        %v3497 = vpop.f32.mrf.mxu0
        %v3498 = vpop.f32.mrf.mxu0
        %v3499 = vadd.f32 %v2837, %v3498
        %v3500 = vpop.f32.mrf.mxu0
        %3501 = vmatprep.mubr.bf16.mxu0 0
        %3502 = vmatmul.mubr.bf16.gmra.mxu0 %v3284
        %v3503 = vpop.f32.mrf.mxu0
        %v3504 = vadd.f32 %v2843, %v3503
        %v3505 = vpop.f32.mrf.mxu0
        %v3506 = vpop.f32.mrf.mxu0
        %v3507 = vadd.f32 %v2847, %v3506
        %v3508 = vpop.f32.mrf.mxu0
        %3509 = vdwg.mxu0
        %v3510 = vadd.f32 %v3384, %v3111
        %v3511 = vadd.f32 %v3387, %v3114
        %v3512 = vadd.f32 %v3392, %v3119
        %v3513 = vadd.f32 %v3395, %v3122
        %v3514 = vadd.f32 %v3400, %v3127
        %v3515 = vadd.f32 %v3403, %v3130
        %v3516 = vadd.f32 %v3408, %v3135
        %v3517 = vadd.f32 %v3411, %v3138
        %v3518 = vadd.f32 %v3416, %v3143
        %v3519 = vadd.f32 %v3419, %v3146
        %v3520 = vadd.f32 %v3424, %v3151
        %v3521 = vadd.f32 %v3427, %v3154
        %v3522 = vadd.f32 %v3432, %v3159
        %v3523 = vadd.f32 %v3435, %v3162
        %v3524 = vadd.f32 %v3440, %v3167
        %v3525 = vadd.f32 %v3443, %v3170
        %v3526 = vadd.f32 %v3448, %v3175
        %v3527 = vadd.f32 %v3451, %v3178
        %v3528 = vadd.f32 %v3456, %v3183
        %v3529 = vadd.f32 %v3459, %v3186
        %v3530 = vadd.f32 %v3464, %v3191
        %v3531 = vadd.f32 %v3467, %v3194
        %v3532 = vadd.f32 %v3472, %v3199
        %v3533 = vadd.f32 %v3475, %v3202
        %v3534 = vadd.f32 %v3480, %v3207
        %v3535 = vadd.f32 %v3483, %v3210
        %v3536 = vadd.f32 %v3488, %v3215
        %v3537 = vadd.f32 %v3491, %v3218
        %v3538 = vadd.f32 %v3496, %v3223
        %v3539 = vadd.f32 %v3499, %v3226
        %v3540 = vadd.f32 %v3504, %v3231
        %v3541 = vadd.f32 %v3507, %v3234
        %v3542 = vld [vmem:[%s10] sm:$0x1]
        %v3544 = vlaneseq
        %v3545 = vshrl.u32 %v3544, 7
        %v3546 = vsub.s32 0, %v3545
        %v3547 = vrot.slane %v3542, %v3546
        %v3549 = vadd.f32 %v3510, %v3547
        %v3550 = vadd.f32 %v3511, %v3547
        %v3551 = vadd.f32 %v3512, %v3547
        %v3552 = vadd.f32 %v3513, %v3547
        %v3553 = vadd.f32 %v3514, %v3547
        %v3554 = vadd.f32 %v3515, %v3547
        %v3555 = vadd.f32 %v3516, %v3547
        %v3556 = vadd.f32 %v3517, %v3547
        %v3557 = vadd.f32 %v3518, %v3547
        %v3558 = vadd.f32 %v3519, %v3547
        %v3559 = vadd.f32 %v3520, %v3547
        %v3560 = vadd.f32 %v3521, %v3547
        %v3561 = vadd.f32 %v3522, %v3547
        %v3562 = vadd.f32 %v3523, %v3547
        %v3563 = vadd.f32 %v3524, %v3547
        %v3564 = vadd.f32 %v3525, %v3547
        %v3565 = vadd.f32 %v3526, %v3547
        %v3566 = vadd.f32 %v3527, %v3547
        %v3567 = vadd.f32 %v3528, %v3547
        %v3568 = vadd.f32 %v3529, %v3547
        %v3569 = vadd.f32 %v3530, %v3547
        %v3570 = vadd.f32 %v3531, %v3547
        %v3571 = vadd.f32 %v3532, %v3547
        %v3572 = vadd.f32 %v3533, %v3547
        %v3573 = vadd.f32 %v3534, %v3547
        %v3574 = vadd.f32 %v3535, %v3547
        %v3575 = vadd.f32 %v3536, %v3547
        %v3576 = vadd.f32 %v3537, %v3547
        %v3577 = vadd.f32 %v3538, %v3547
        %v3578 = vadd.f32 %v3539, %v3547
        %v3579 = vadd.f32 %v3540, %v3547
        %v3580 = vadd.f32 %v3541, %v3547
        %v3581 = vld [vmem:[%s803] sm:$0xff]
        %v3582 = vld [vmem:[%s803 + $0x8] sm:$0xff]
        %v3583 = vld [vmem:[%s803 + $0x10] sm:$0xff]
        %v3584 = vld [vmem:[%s803 + $0x18] sm:$0xff]
        %v3585 = vld [vmem:[%s803 + $0x20] sm:$0xff]
        %v3586 = vld [vmem:[%s803 + $0x28] sm:$0xff]
        %v3587 = vld [vmem:[%s803 + $0x30] sm:$0xff]
        %v3588 = vld [vmem:[%s803 + $0x38] sm:$0xff]
        %v3589 = vld [vmem:[%s803 + $0x40] sm:$0xff]
        %v3590 = vld [vmem:[%s803 + $0x48] sm:$0xff]
        %v3591 = vld [vmem:[%s803 + $0x50] sm:$0xff]
        %v3592 = vld [vmem:[%s803 + $0x58] sm:$0xff]
        %v3593 = vld [vmem:[%s803 + $0x60] sm:$0xff]
        %v3594 = vld [vmem:[%s803 + $0x68] sm:$0xff]
        %v3595 = vld [vmem:[%s803 + $0x70] sm:$0xff]
        %v3596 = vld [vmem:[%s803 + $0x78] sm:$0xff]
        %v3597 = vld [vmem:[%s803 + $0x80] sm:$0xff]
        %v3598 = vld [vmem:[%s803 + $0x88] sm:$0xff]
        %v3599 = vld [vmem:[%s803 + $0x90] sm:$0xff]
        %v3600 = vld [vmem:[%s803 + $0x98] sm:$0xff]
        %v3601 = vld [vmem:[%s803 + $0xa0] sm:$0xff]
        %v3602 = vld [vmem:[%s803 + $0xa8] sm:$0xff]
        %v3603 = vld [vmem:[%s803 + $0xb0] sm:$0xff]
        %v3604 = vld [vmem:[%s803 + $0xb8] sm:$0xff]
        %v3605 = vld [vmem:[%s803 + $0xc0] sm:$0xff]
        %v3606 = vld [vmem:[%s803 + $0xc8] sm:$0xff]
        %v3607 = vld [vmem:[%s803 + $0xd0] sm:$0xff]
        %v3608 = vld [vmem:[%s803 + $0xd8] sm:$0xff]
        %v3609 = vld [vmem:[%s803 + $0xe0] sm:$0xff]
        %v3610 = vld [vmem:[%s803 + $0xe8] sm:$0xff]
        %v3611 = vld [vmem:[%s803 + $0xf0] sm:$0xff]
        %v3612 = vld [vmem:[%s803 + $0xf8] sm:$0xff]
        %3614 = vset.pattern.permute.xlu0 0
        %3615 = vperm.xlu0 %3614, %v3581
        %v3616 = vpop.permute.xlu0 %3615
        %3619 = vset.pattern.permute.xlu0 0
        %3620 = vperm.xlu0 %3619, %v3582
        %v3621 = vpop.permute.xlu0 %3620
        %3624 = vset.pattern.permute.xlu0 0
        %3625 = vperm.xlu0 %3624, %v3583
        %v3626 = vpop.permute.xlu0 %3625
        %3629 = vset.pattern.permute.xlu0 0
        %3630 = vperm.xlu0 %3629, %v3584
        %v3631 = vpop.permute.xlu0 %3630
        %3634 = vset.pattern.permute.xlu0 0
        %3635 = vperm.xlu0 %3634, %v3585
        %v3636 = vpop.permute.xlu0 %3635
        %3639 = vset.pattern.permute.xlu0 0
        %3640 = vperm.xlu0 %3639, %v3586
        %v3641 = vpop.permute.xlu0 %3640
        %3644 = vset.pattern.permute.xlu0 0
        %3645 = vperm.xlu0 %3644, %v3587
        %v3646 = vpop.permute.xlu0 %3645
        %3649 = vset.pattern.permute.xlu0 0
        %3650 = vperm.xlu0 %3649, %v3588
        %v3651 = vpop.permute.xlu0 %3650
        %3654 = vset.pattern.permute.xlu0 0
        %3655 = vperm.xlu0 %3654, %v3589
        %v3656 = vpop.permute.xlu0 %3655
        %3659 = vset.pattern.permute.xlu0 0
        %3660 = vperm.xlu0 %3659, %v3590
        %v3661 = vpop.permute.xlu0 %3660
        %3664 = vset.pattern.permute.xlu0 0
        %3665 = vperm.xlu0 %3664, %v3591
        %v3666 = vpop.permute.xlu0 %3665
        %3669 = vset.pattern.permute.xlu0 0
        %3670 = vperm.xlu0 %3669, %v3592
        %v3671 = vpop.permute.xlu0 %3670
        %3674 = vset.pattern.permute.xlu0 0
        %3675 = vperm.xlu0 %3674, %v3593
        %v3676 = vpop.permute.xlu0 %3675
        %3679 = vset.pattern.permute.xlu0 0
        %3680 = vperm.xlu0 %3679, %v3594
        %v3681 = vpop.permute.xlu0 %3680
        %3684 = vset.pattern.permute.xlu0 0
        %3685 = vperm.xlu0 %3684, %v3595
        %v3686 = vpop.permute.xlu0 %3685
        %3689 = vset.pattern.permute.xlu0 0
        %3690 = vperm.xlu0 %3689, %v3596
        %v3691 = vpop.permute.xlu0 %3690
        %3694 = vset.pattern.permute.xlu0 0
        %3695 = vperm.xlu0 %3694, %v3597
        %v3696 = vpop.permute.xlu0 %3695
        %3699 = vset.pattern.permute.xlu0 0
        %3700 = vperm.xlu0 %3699, %v3598
        %v3701 = vpop.permute.xlu0 %3700
        %3704 = vset.pattern.permute.xlu0 0
        %3705 = vperm.xlu0 %3704, %v3599
        %v3706 = vpop.permute.xlu0 %3705
        %3709 = vset.pattern.permute.xlu0 0
        %3710 = vperm.xlu0 %3709, %v3600
        %v3711 = vpop.permute.xlu0 %3710
        %3714 = vset.pattern.permute.xlu0 0
        %3715 = vperm.xlu0 %3714, %v3601
        %v3716 = vpop.permute.xlu0 %3715
        %3719 = vset.pattern.permute.xlu0 0
        %3720 = vperm.xlu0 %3719, %v3602
        %v3721 = vpop.permute.xlu0 %3720
        %3724 = vset.pattern.permute.xlu0 0
        %3725 = vperm.xlu0 %3724, %v3603
        %v3726 = vpop.permute.xlu0 %3725
        %3729 = vset.pattern.permute.xlu0 0
        %3730 = vperm.xlu0 %3729, %v3604
        %v3731 = vpop.permute.xlu0 %3730
        %3734 = vset.pattern.permute.xlu0 0
        %3735 = vperm.xlu0 %3734, %v3605
        %v3736 = vpop.permute.xlu0 %3735
        %3739 = vset.pattern.permute.xlu0 0
        %3740 = vperm.xlu0 %3739, %v3606
        %v3741 = vpop.permute.xlu0 %3740
        %3744 = vset.pattern.permute.xlu0 0
        %3745 = vperm.xlu0 %3744, %v3607
        %v3746 = vpop.permute.xlu0 %3745
        %3749 = vset.pattern.permute.xlu0 0
        %3750 = vperm.xlu0 %3749, %v3608
        %v3751 = vpop.permute.xlu0 %3750
        %3754 = vset.pattern.permute.xlu0 0
        %3755 = vperm.xlu0 %3754, %v3609
        %v3756 = vpop.permute.xlu0 %3755
        %3759 = vset.pattern.permute.xlu0 0
        %3760 = vperm.xlu0 %3759, %v3610
        %v3761 = vpop.permute.xlu0 %3760
        %3764 = vset.pattern.permute.xlu0 0
        %3765 = vperm.xlu0 %3764, %v3611
        %v3766 = vpop.permute.xlu0 %3765
        %3769 = vset.pattern.permute.xlu0 0
        %3770 = vperm.xlu0 %3769, %v3612
        %v3771 = vpop.permute.xlu0 %3770
        %v3773 = vmul.f32 %v3616, %v2695
        %v3774 = vmul.f32 %v3621, %v2699
        %v3775 = vmul.f32 %v3626, %v2705
        %v3776 = vmul.f32 %v3631, %v2709
        %v3777 = vmul.f32 %v3636, %v2715
        %v3778 = vmul.f32 %v3641, %v2719
        %v3779 = vmul.f32 %v3646, %v2725
        %v3780 = vmul.f32 %v3651, %v2729
        %v3781 = vmul.f32 %v3656, %v2735
        %v3782 = vmul.f32 %v3661, %v2739
        %v3783 = vmul.f32 %v3666, %v2745
        %v3784 = vmul.f32 %v3671, %v2749
        %v3785 = vmul.f32 %v3676, %v2755
        %v3786 = vmul.f32 %v3681, %v2759
        %v3787 = vmul.f32 %v3686, %v2765
        %v3788 = vmul.f32 %v3691, %v2769
        %v3789 = vmul.f32 %v3696, %v2775
        %v3790 = vmul.f32 %v3701, %v2779
        %v3791 = vmul.f32 %v3706, %v2785
        %v3792 = vmul.f32 %v3711, %v2789
        %v3793 = vmul.f32 %v3716, %v2795
        %v3794 = vmul.f32 %v3721, %v2799
        %v3795 = vmul.f32 %v3726, %v2805
        %v3796 = vmul.f32 %v3731, %v2809
        %v3797 = vmul.f32 %v3736, %v2815
        %v3798 = vmul.f32 %v3741, %v2819
        %v3799 = vmul.f32 %v3746, %v2825
        %v3800 = vmul.f32 %v3751, %v2829
        %v3801 = vmul.f32 %v3756, %v2835
        %v3802 = vmul.f32 %v3761, %v2839
        %v3803 = vmul.f32 %v3766, %v2845
        %v3804 = vmul.f32 %v3771, %v2849
        %s3805 = scalar_lea.vmem %s803, 256 [#allocation4]
        %v3806 = vld [vmem:[%s3805] sm:$0xff]
        %v3807 = vld [vmem:[%s3805 + $0x8] sm:$0xff]
        %v3808 = vld [vmem:[%s3805 + $0x10] sm:$0xff]
        %v3809 = vld [vmem:[%s3805 + $0x18] sm:$0xff]
        %v3810 = vld [vmem:[%s3805 + $0x20] sm:$0xff]
        %v3811 = vld [vmem:[%s3805 + $0x28] sm:$0xff]
        %v3812 = vld [vmem:[%s3805 + $0x30] sm:$0xff]
        %v3813 = vld [vmem:[%s3805 + $0x38] sm:$0xff]
        %v3814 = vld [vmem:[%s3805 + $0x40] sm:$0xff]
        %v3815 = vld [vmem:[%s3805 + $0x48] sm:$0xff]
        %v3816 = vld [vmem:[%s3805 + $0x50] sm:$0xff]
        %v3817 = vld [vmem:[%s3805 + $0x58] sm:$0xff]
        %v3818 = vld [vmem:[%s3805 + $0x60] sm:$0xff]
        %v3819 = vld [vmem:[%s3805 + $0x68] sm:$0xff]
        %v3820 = vld [vmem:[%s3805 + $0x70] sm:$0xff]
        %v3821 = vld [vmem:[%s3805 + $0x78] sm:$0xff]
        %v3822 = vld [vmem:[%s3805 + $0x80] sm:$0xff]
        %v3823 = vld [vmem:[%s3805 + $0x88] sm:$0xff]
        %v3824 = vld [vmem:[%s3805 + $0x90] sm:$0xff]
        %v3825 = vld [vmem:[%s3805 + $0x98] sm:$0xff]
        %v3826 = vld [vmem:[%s3805 + $0xa0] sm:$0xff]
        %v3827 = vld [vmem:[%s3805 + $0xa8] sm:$0xff]
        %v3828 = vld [vmem:[%s3805 + $0xb0] sm:$0xff]
        %v3829 = vld [vmem:[%s3805 + $0xb8] sm:$0xff]
        %v3830 = vld [vmem:[%s3805 + $0xc0] sm:$0xff]
        %v3831 = vld [vmem:[%s3805 + $0xc8] sm:$0xff]
        %v3832 = vld [vmem:[%s3805 + $0xd0] sm:$0xff]
        %v3833 = vld [vmem:[%s3805 + $0xd8] sm:$0xff]
        %v3834 = vld [vmem:[%s3805 + $0xe0] sm:$0xff]
        %v3835 = vld [vmem:[%s3805 + $0xe8] sm:$0xff]
        %v3836 = vld [vmem:[%s3805 + $0xf0] sm:$0xff]
        %v3837 = vld [vmem:[%s3805 + $0xf8] sm:$0xff]
        %3839 = vset.pattern.permute.xlu0 0
        %3840 = vperm.xlu0 %3839, %v3806
        %v3841 = vpop.permute.xlu0 %3840
        %3844 = vset.pattern.permute.xlu0 0
        %3845 = vperm.xlu0 %3844, %v3807
        %v3846 = vpop.permute.xlu0 %3845
        %3849 = vset.pattern.permute.xlu0 0
        %3850 = vperm.xlu0 %3849, %v3808
        %v3851 = vpop.permute.xlu0 %3850
        %3854 = vset.pattern.permute.xlu0 0
        %3855 = vperm.xlu0 %3854, %v3809
        %v3856 = vpop.permute.xlu0 %3855
        %3859 = vset.pattern.permute.xlu0 0
        %3860 = vperm.xlu0 %3859, %v3810
        %v3861 = vpop.permute.xlu0 %3860
        %3864 = vset.pattern.permute.xlu0 0
        %3865 = vperm.xlu0 %3864, %v3811
        %v3866 = vpop.permute.xlu0 %3865
        %3869 = vset.pattern.permute.xlu0 0
        %3870 = vperm.xlu0 %3869, %v3812
        %v3871 = vpop.permute.xlu0 %3870
        %3874 = vset.pattern.permute.xlu0 0
        %3875 = vperm.xlu0 %3874, %v3813
        %v3876 = vpop.permute.xlu0 %3875
        %3879 = vset.pattern.permute.xlu0 0
        %3880 = vperm.xlu0 %3879, %v3814
        %v3881 = vpop.permute.xlu0 %3880
        %3884 = vset.pattern.permute.xlu0 0
        %3885 = vperm.xlu0 %3884, %v3815
        %v3886 = vpop.permute.xlu0 %3885
        %3889 = vset.pattern.permute.xlu0 0
        %3890 = vperm.xlu0 %3889, %v3816
        %v3891 = vpop.permute.xlu0 %3890
        %3894 = vset.pattern.permute.xlu0 0
        %3895 = vperm.xlu0 %3894, %v3817
        %v3896 = vpop.permute.xlu0 %3895
        %3899 = vset.pattern.permute.xlu0 0
        %3900 = vperm.xlu0 %3899, %v3818
        %v3901 = vpop.permute.xlu0 %3900
        %3904 = vset.pattern.permute.xlu0 0
        %3905 = vperm.xlu0 %3904, %v3819
        %v3906 = vpop.permute.xlu0 %3905
        %3909 = vset.pattern.permute.xlu0 0
        %3910 = vperm.xlu0 %3909, %v3820
        %v3911 = vpop.permute.xlu0 %3910
        %3914 = vset.pattern.permute.xlu0 0
        %3915 = vperm.xlu0 %3914, %v3821
        %v3916 = vpop.permute.xlu0 %3915
        %3919 = vset.pattern.permute.xlu0 0
        %3920 = vperm.xlu0 %3919, %v3822
        %v3921 = vpop.permute.xlu0 %3920
        %3924 = vset.pattern.permute.xlu0 0
        %3925 = vperm.xlu0 %3924, %v3823
        %v3926 = vpop.permute.xlu0 %3925
        %3929 = vset.pattern.permute.xlu0 0
        %3930 = vperm.xlu0 %3929, %v3824
        %v3931 = vpop.permute.xlu0 %3930
        %3934 = vset.pattern.permute.xlu0 0
        %3935 = vperm.xlu0 %3934, %v3825
        %v3936 = vpop.permute.xlu0 %3935
        %3939 = vset.pattern.permute.xlu0 0
        %3940 = vperm.xlu0 %3939, %v3826
        %v3941 = vpop.permute.xlu0 %3940
        %3944 = vset.pattern.permute.xlu0 0
        %3945 = vperm.xlu0 %3944, %v3827
        %v3946 = vpop.permute.xlu0 %3945
        %3949 = vset.pattern.permute.xlu0 0
        %3950 = vperm.xlu0 %3949, %v3828
        %v3951 = vpop.permute.xlu0 %3950
        %3954 = vset.pattern.permute.xlu0 0
        %3955 = vperm.xlu0 %3954, %v3829
        %v3956 = vpop.permute.xlu0 %3955
        %3959 = vset.pattern.permute.xlu0 0
        %3960 = vperm.xlu0 %3959, %v3830
        %v3961 = vpop.permute.xlu0 %3960
        %3964 = vset.pattern.permute.xlu0 0
        %3965 = vperm.xlu0 %3964, %v3831
        %v3966 = vpop.permute.xlu0 %3965
        %3969 = vset.pattern.permute.xlu0 0
        %3970 = vperm.xlu0 %3969, %v3832
        %v3971 = vpop.permute.xlu0 %3970
        %3974 = vset.pattern.permute.xlu0 0
        %3975 = vperm.xlu0 %3974, %v3833
        %v3976 = vpop.permute.xlu0 %3975
        %3979 = vset.pattern.permute.xlu0 0
        %3980 = vperm.xlu0 %3979, %v3834
        %v3981 = vpop.permute.xlu0 %3980
        %3984 = vset.pattern.permute.xlu0 0
        %3985 = vperm.xlu0 %3984, %v3835
        %v3986 = vpop.permute.xlu0 %3985
        %3989 = vset.pattern.permute.xlu0 0
        %3990 = vperm.xlu0 %3989, %v3836
        %v3991 = vpop.permute.xlu0 %3990
        %3994 = vset.pattern.permute.xlu0 0
        %3995 = vperm.xlu0 %3994, %v3837
        %v3996 = vpop.permute.xlu0 %3995
        %v3998 = vmul.f32 %v3841, %v2886
        %v3999 = vmul.f32 %v3846, %v2889
        %v4000 = vmul.f32 %v3851, %v2894
        %v4001 = vmul.f32 %v3856, %v2897
        %v4002 = vmul.f32 %v3861, %v2902
        %v4003 = vmul.f32 %v3866, %v2905
        %v4004 = vmul.f32 %v3871, %v2910
        %v4005 = vmul.f32 %v3876, %v2913
        %v4006 = vmul.f32 %v3881, %v2918
        %v4007 = vmul.f32 %v3886, %v2921
        %v4008 = vmul.f32 %v3891, %v2926
        %v4009 = vmul.f32 %v3896, %v2929
        %v4010 = vmul.f32 %v3901, %v2934
        %v4011 = vmul.f32 %v3906, %v2937
        %v4012 = vmul.f32 %v3911, %v2942
        %v4013 = vmul.f32 %v3916, %v2945
        %v4014 = vmul.f32 %v3921, %v2950
        %v4015 = vmul.f32 %v3926, %v2953
        %v4016 = vmul.f32 %v3931, %v2958
        %v4017 = vmul.f32 %v3936, %v2961
        %v4018 = vmul.f32 %v3941, %v2966
        %v4019 = vmul.f32 %v3946, %v2969
        %v4020 = vmul.f32 %v3951, %v2974
        %v4021 = vmul.f32 %v3956, %v2977
        %v4022 = vmul.f32 %v3961, %v2982
        %v4023 = vmul.f32 %v3966, %v2985
        %v4024 = vmul.f32 %v3971, %v2990
        %v4025 = vmul.f32 %v3976, %v2993
        %v4026 = vmul.f32 %v3981, %v2998
        %v4027 = vmul.f32 %v3986, %v3001
        %v4028 = vmul.f32 %v3991, %v3006
        %v4029 = vmul.f32 %v3996, %v3009
        %v4030 = vadd.f32 %v3773, %v3998
        %v4031 = vadd.f32 %v3774, %v3999
        %v4032 = vadd.f32 %v3775, %v4000
        %v4033 = vadd.f32 %v3776, %v4001
        %v4034 = vadd.f32 %v3777, %v4002
        %v4035 = vadd.f32 %v3778, %v4003
        %v4036 = vadd.f32 %v3779, %v4004
        %v4037 = vadd.f32 %v3780, %v4005
        %v4038 = vadd.f32 %v3781, %v4006
        %v4039 = vadd.f32 %v3782, %v4007
        %v4040 = vadd.f32 %v3783, %v4008
        %v4041 = vadd.f32 %v3784, %v4009
        %v4042 = vadd.f32 %v3785, %v4010
        %v4043 = vadd.f32 %v3786, %v4011
        %v4044 = vadd.f32 %v3787, %v4012
        %v4045 = vadd.f32 %v3788, %v4013
        %v4046 = vadd.f32 %v3789, %v4014
        %v4047 = vadd.f32 %v3790, %v4015
        %v4048 = vadd.f32 %v3791, %v4016
        %v4049 = vadd.f32 %v3792, %v4017
        %v4050 = vadd.f32 %v3793, %v4018
        %v4051 = vadd.f32 %v3794, %v4019
        %v4052 = vadd.f32 %v3795, %v4020
        %v4053 = vadd.f32 %v3796, %v4021
        %v4054 = vadd.f32 %v3797, %v4022
        %v4055 = vadd.f32 %v3798, %v4023
        %v4056 = vadd.f32 %v3799, %v4024
        %v4057 = vadd.f32 %v3800, %v4025
        %v4058 = vadd.f32 %v3801, %v4026
        %v4059 = vadd.f32 %v3802, %v4027
        %v4060 = vadd.f32 %v3803, %v4028
        %v4061 = vadd.f32 %v3804, %v4029
        %v4062 = vxor.u32 %v3549, 2147483648
        %v4063 = vxor.u32 %v3550, 2147483648
        %v4064 = vxor.u32 %v3551, 2147483648
        %v4065 = vxor.u32 %v3552, 2147483648
        %v4066 = vxor.u32 %v3553, 2147483648
        %v4067 = vxor.u32 %v3554, 2147483648
        %v4068 = vxor.u32 %v3555, 2147483648
        %v4069 = vxor.u32 %v3556, 2147483648
        %v4070 = vxor.u32 %v3557, 2147483648
        %v4071 = vxor.u32 %v3558, 2147483648
        %v4072 = vxor.u32 %v3559, 2147483648
        %v4073 = vxor.u32 %v3560, 2147483648
        %v4074 = vxor.u32 %v3561, 2147483648
        %v4075 = vxor.u32 %v3562, 2147483648
        %v4076 = vxor.u32 %v3563, 2147483648
        %v4077 = vxor.u32 %v3564, 2147483648
        %v4078 = vxor.u32 %v3565, 2147483648
        %v4079 = vxor.u32 %v3566, 2147483648
        %v4080 = vxor.u32 %v3567, 2147483648
        %v4081 = vxor.u32 %v3568, 2147483648
        %v4082 = vxor.u32 %v3569, 2147483648
        %v4083 = vxor.u32 %v3570, 2147483648
        %v4084 = vxor.u32 %v3571, 2147483648
        %v4085 = vxor.u32 %v3572, 2147483648
        %v4086 = vxor.u32 %v3573, 2147483648
        %v4087 = vxor.u32 %v3574, 2147483648
        %v4088 = vxor.u32 %v3575, 2147483648
        %v4089 = vxor.u32 %v3576, 2147483648
        %v4090 = vxor.u32 %v3577, 2147483648
        %v4091 = vxor.u32 %v3578, 2147483648
        %v4092 = vxor.u32 %v3579, 2147483648
        %v4093 = vxor.u32 %v3580, 2147483648
        %v4094 = vmul.f32 %v4062, 1.442695
        %v4095 = vpow.pop %v4094
        %v4096 = vmul.f32 %v4063, 1.442695
        %v4097 = vpow.pop %v4096
        %v4098 = vmul.f32 %v4064, 1.442695
        %v4099 = vpow.pop %v4098
        %v4100 = vmul.f32 %v4065, 1.442695
        %v4101 = vpow.pop %v4100
        %v4102 = vmul.f32 %v4066, 1.442695
        %v4103 = vpow.pop %v4102
        %v4104 = vmul.f32 %v4067, 1.442695
        %v4105 = vpow.pop %v4104
        %v4106 = vmul.f32 %v4068, 1.442695
        %v4107 = vpow.pop %v4106
        %v4108 = vmul.f32 %v4069, 1.442695
        %v4109 = vpow.pop %v4108
        %v4110 = vmul.f32 %v4070, 1.442695
        %v4111 = vpow.pop %v4110
        %v4112 = vmul.f32 %v4071, 1.442695
        %v4113 = vpow.pop %v4112
        %v4114 = vmul.f32 %v4072, 1.442695
        %v4115 = vpow.pop %v4114
        %v4116 = vmul.f32 %v4073, 1.442695
        %v4117 = vpow.pop %v4116
        %v4118 = vmul.f32 %v4074, 1.442695
        %v4119 = vpow.pop %v4118
        %v4120 = vmul.f32 %v4075, 1.442695
        %v4121 = vpow.pop %v4120
        %v4122 = vmul.f32 %v4076, 1.442695
        %v4123 = vpow.pop %v4122
        %v4124 = vmul.f32 %v4077, 1.442695
        %v4125 = vpow.pop %v4124
        %v4126 = vmul.f32 %v4078, 1.442695
        %v4127 = vpow.pop %v4126
        %v4128 = vmul.f32 %v4079, 1.442695
        %v4129 = vpow.pop %v4128
        %v4130 = vmul.f32 %v4080, 1.442695
        %v4131 = vpow.pop %v4130
        %v4132 = vmul.f32 %v4081, 1.442695
        %v4133 = vpow.pop %v4132
        %v4134 = vmul.f32 %v4082, 1.442695
        %v4135 = vpow.pop %v4134
        %v4136 = vmul.f32 %v4083, 1.442695
        %v4137 = vpow.pop %v4136
        %v4138 = vmul.f32 %v4084, 1.442695
        %v4139 = vpow.pop %v4138
        %v4140 = vmul.f32 %v4085, 1.442695
        %v4141 = vpow.pop %v4140
        %v4142 = vmul.f32 %v4086, 1.442695
        %v4143 = vpow.pop %v4142
        %v4144 = vmul.f32 %v4087, 1.442695
        %v4145 = vpow.pop %v4144
        %v4146 = vmul.f32 %v4088, 1.442695
        %v4147 = vpow.pop %v4146
        %v4148 = vmul.f32 %v4089, 1.442695
        %v4149 = vpow.pop %v4148
        %v4150 = vmul.f32 %v4090, 1.442695
        %v4151 = vpow.pop %v4150
        %v4152 = vmul.f32 %v4091, 1.442695
        %v4153 = vpow.pop %v4152
        %v4154 = vmul.f32 %v4092, 1.442695
        %v4155 = vpow.pop %v4154
        %v4156 = vmul.f32 %v4093, 1.442695
        %v4157 = vpow.pop %v4156
        %v4158 = vadd.f32 %v4095, 1.0
        %v4159 = vadd.f32 %v4097, 1.0
        %v4160 = vadd.f32 %v4099, 1.0
        %v4161 = vadd.f32 %v4101, 1.0
        %v4162 = vadd.f32 %v4103, 1.0
        %v4163 = vadd.f32 %v4105, 1.0
        %v4164 = vadd.f32 %v4107, 1.0
        %v4165 = vadd.f32 %v4109, 1.0
        %v4166 = vadd.f32 %v4111, 1.0
        %v4167 = vadd.f32 %v4113, 1.0
        %v4168 = vadd.f32 %v4115, 1.0
        %v4169 = vadd.f32 %v4117, 1.0
        %v4170 = vadd.f32 %v4119, 1.0
        %v4171 = vadd.f32 %v4121, 1.0
        %v4172 = vadd.f32 %v4123, 1.0
        %v4173 = vadd.f32 %v4125, 1.0
        %v4174 = vadd.f32 %v4127, 1.0
        %v4175 = vadd.f32 %v4129, 1.0
        %v4176 = vadd.f32 %v4131, 1.0
        %v4177 = vadd.f32 %v4133, 1.0
        %v4178 = vadd.f32 %v4135, 1.0
        %v4179 = vadd.f32 %v4137, 1.0
        %v4180 = vadd.f32 %v4139, 1.0
        %v4181 = vadd.f32 %v4141, 1.0
        %v4182 = vadd.f32 %v4143, 1.0
        %v4183 = vadd.f32 %v4145, 1.0
        %v4184 = vadd.f32 %v4147, 1.0
        %v4185 = vadd.f32 %v4149, 1.0
        %v4186 = vadd.f32 %v4151, 1.0
        %v4187 = vadd.f32 %v4153, 1.0
        %v4188 = vadd.f32 %v4155, 1.0
        %v4189 = vadd.f32 %v4157, 1.0
        %v4190 = vrcp.pop %v4158
        %v4191 = vmul.f32 1.0, %v4190
        %v4192 = vrcp.pop %v4159
        %v4193 = vmul.f32 1.0, %v4192
        %v4194 = vrcp.pop %v4160
        %v4195 = vmul.f32 1.0, %v4194
        %v4196 = vrcp.pop %v4161
        %v4197 = vmul.f32 1.0, %v4196
        %v4198 = vrcp.pop %v4162
        %v4199 = vmul.f32 1.0, %v4198
        %v4200 = vrcp.pop %v4163
        %v4201 = vmul.f32 1.0, %v4200
        %v4202 = vrcp.pop %v4164
        %v4203 = vmul.f32 1.0, %v4202
        %v4204 = vrcp.pop %v4165
        %v4205 = vmul.f32 1.0, %v4204
        %v4206 = vrcp.pop %v4166
        %v4207 = vmul.f32 1.0, %v4206
        %v4208 = vrcp.pop %v4167
        %v4209 = vmul.f32 1.0, %v4208
        %v4210 = vrcp.pop %v4168
        %v4211 = vmul.f32 1.0, %v4210
        %v4212 = vrcp.pop %v4169
        %v4213 = vmul.f32 1.0, %v4212
        %v4214 = vrcp.pop %v4170
        %v4215 = vmul.f32 1.0, %v4214
        %v4216 = vrcp.pop %v4171
        %v4217 = vmul.f32 1.0, %v4216
        %v4218 = vrcp.pop %v4172
        %v4219 = vmul.f32 1.0, %v4218
        %v4220 = vrcp.pop %v4173
        %v4221 = vmul.f32 1.0, %v4220
        %v4222 = vrcp.pop %v4174
        %v4223 = vmul.f32 1.0, %v4222
        %v4224 = vrcp.pop %v4175
        %v4225 = vmul.f32 1.0, %v4224
        %v4226 = vrcp.pop %v4176
        %v4227 = vmul.f32 1.0, %v4226
        %v4228 = vrcp.pop %v4177
        %v4229 = vmul.f32 1.0, %v4228
        %v4230 = vrcp.pop %v4178
        %v4231 = vmul.f32 1.0, %v4230
        %v4232 = vrcp.pop %v4179
        %v4233 = vmul.f32 1.0, %v4232
        %v4234 = vrcp.pop %v4180
        %v4235 = vmul.f32 1.0, %v4234
        %v4236 = vrcp.pop %v4181
        %v4237 = vmul.f32 1.0, %v4236
        %v4238 = vrcp.pop %v4182
        %v4239 = vmul.f32 1.0, %v4238
        %v4240 = vrcp.pop %v4183
        %v4241 = vmul.f32 1.0, %v4240
        %v4242 = vrcp.pop %v4184
        %v4243 = vmul.f32 1.0, %v4242
        %v4244 = vrcp.pop %v4185
        %v4245 = vmul.f32 1.0, %v4244
        %v4246 = vrcp.pop %v4186
        %v4247 = vmul.f32 1.0, %v4246
        %v4248 = vrcp.pop %v4187
        %v4249 = vmul.f32 1.0, %v4248
        %v4250 = vrcp.pop %v4188
        %v4251 = vmul.f32 1.0, %v4250
        %v4252 = vrcp.pop %v4189
        %v4253 = vmul.f32 1.0, %v4252
        %v4254 = vmul.f32 %v4191, %v4030
        %v4255 = vmul.f32 %v4193, %v4031
        %v4256 = vmul.f32 %v4195, %v4032
        %v4257 = vmul.f32 %v4197, %v4033
        %v4258 = vmul.f32 %v4199, %v4034
        %v4259 = vmul.f32 %v4201, %v4035
        %v4260 = vmul.f32 %v4203, %v4036
        %v4261 = vmul.f32 %v4205, %v4037
        %v4262 = vmul.f32 %v4207, %v4038
        %v4263 = vmul.f32 %v4209, %v4039
        %v4264 = vmul.f32 %v4211, %v4040
        %v4265 = vmul.f32 %v4213, %v4041
        %v4266 = vmul.f32 %v4215, %v4042
        %v4267 = vmul.f32 %v4217, %v4043
        %v4268 = vmul.f32 %v4219, %v4044
        %v4269 = vmul.f32 %v4221, %v4045
        %v4270 = vmul.f32 %v4223, %v4046
        %v4271 = vmul.f32 %v4225, %v4047
        %v4272 = vmul.f32 %v4227, %v4048
        %v4273 = vmul.f32 %v4229, %v4049
        %v4274 = vmul.f32 %v4231, %v4050
        %v4275 = vmul.f32 %v4233, %v4051
        %v4276 = vmul.f32 %v4235, %v4052
        %v4277 = vmul.f32 %v4237, %v4053
        %v4278 = vmul.f32 %v4239, %v4054
        %v4279 = vmul.f32 %v4241, %v4055
        %v4280 = vmul.f32 %v4243, %v4056
        %v4281 = vmul.f32 %v4245, %v4057
        %v4282 = vmul.f32 %v4247, %v4058
        %v4283 = vmul.f32 %v4249, %v4059
        %v4284 = vmul.f32 %v4251, %v4060
        %v4285 = vmul.f32 %v4253, %v4061
        %v4286 = vpack.c.bf16 %v4255, %v4254
        %v4287 = vpack.c.bf16 %v4257, %v4256
        %v4288 = vpack.c.bf16 %v4259, %v4258
        %v4289 = vpack.c.bf16 %v4261, %v4260
        %v4290 = vpack.c.bf16 %v4263, %v4262
        %v4291 = vpack.c.bf16 %v4265, %v4264
        %v4292 = vpack.c.bf16 %v4267, %v4266
        %v4293 = vpack.c.bf16 %v4269, %v4268
        %v4294 = vpack.c.bf16 %v4271, %v4270
        %v4295 = vpack.c.bf16 %v4273, %v4272
        %v4296 = vpack.c.bf16 %v4275, %v4274
        %v4297 = vpack.c.bf16 %v4277, %v4276
        %v4298 = vpack.c.bf16 %v4279, %v4278
        %v4299 = vpack.c.bf16 %v4281, %v4280
        %v4300 = vpack.c.bf16 %v4283, %v4282
        %v4301 = vpack.c.bf16 %v4285, %v4284
        %v4302 = vpack.c.bf16 %v4193, %v4191
        %v4303 = vpack.c.bf16 %v4197, %v4195
        %v4304 = vpack.c.bf16 %v4201, %v4199
        %v4305 = vpack.c.bf16 %v4205, %v4203
        %v4306 = vpack.c.bf16 %v4209, %v4207
        %v4307 = vpack.c.bf16 %v4213, %v4211
        %v4308 = vpack.c.bf16 %v4217, %v4215
        %v4309 = vpack.c.bf16 %v4221, %v4219
        %v4310 = vpack.c.bf16 %v4225, %v4223
        %v4311 = vpack.c.bf16 %v4229, %v4227
        %v4312 = vpack.c.bf16 %v4233, %v4231
        %v4313 = vpack.c.bf16 %v4237, %v4235
        %v4314 = vpack.c.bf16 %v4241, %v4239
        %v4315 = vpack.c.bf16 %v4245, %v4243
        %v4316 = vpack.c.bf16 %v4249, %v4247
        %v4317 = vpack.c.bf16 %v4253, %v4251
        %v4318 = vld [vmem:[#allocation3] sm:$0xff]
        %v4319 = vld [vmem:[#allocation3 + $0x8] sm:$0xff]
        %v4320 = vld [vmem:[#allocation3 + $0x10] sm:$0xff]
        %v4321 = vld [vmem:[#allocation3 + $0x18] sm:$0xff]
        %v4322 = vld [vmem:[#allocation3 + $0x20] sm:$0xff]
        %v4323 = vld [vmem:[#allocation3 + $0x28] sm:$0xff]
        %v4324 = vld [vmem:[#allocation3 + $0x30] sm:$0xff]
        %v4325 = vld [vmem:[#allocation3 + $0x38] sm:$0xff]
        %v4326 = vld [vmem:[#allocation3 + $0x40] sm:$0xff]
        %v4327 = vld [vmem:[#allocation3 + $0x48] sm:$0xff]
        %v4328 = vld [vmem:[#allocation3 + $0x50] sm:$0xff]
        %v4329 = vld [vmem:[#allocation3 + $0x58] sm:$0xff]
        %v4330 = vld [vmem:[#allocation3 + $0x60] sm:$0xff]
        %v4331 = vld [vmem:[#allocation3 + $0x68] sm:$0xff]
        %v4332 = vld [vmem:[#allocation3 + $0x70] sm:$0xff]
        %v4333 = vld [vmem:[#allocation3 + $0x78] sm:$0xff]
        %v4334 = vld [vmem:[#allocation3 + $0x80] sm:$0xff]
        %v4335 = vld [vmem:[#allocation3 + $0x88] sm:$0xff]
        %v4336 = vld [vmem:[#allocation3 + $0x90] sm:$0xff]
        %v4337 = vld [vmem:[#allocation3 + $0x98] sm:$0xff]
        %v4338 = vld [vmem:[#allocation3 + $0xa0] sm:$0xff]
        %v4339 = vld [vmem:[#allocation3 + $0xa8] sm:$0xff]
        %v4340 = vld [vmem:[#allocation3 + $0xb0] sm:$0xff]
        %v4341 = vld [vmem:[#allocation3 + $0xb8] sm:$0xff]
        %v4342 = vld [vmem:[#allocation3 + $0xc0] sm:$0xff]
        %v4343 = vld [vmem:[#allocation3 + $0xc8] sm:$0xff]
        %v4344 = vld [vmem:[#allocation3 + $0xd0] sm:$0xff]
        %v4345 = vld [vmem:[#allocation3 + $0xd8] sm:$0xff]
        %v4346 = vld [vmem:[#allocation3 + $0xe0] sm:$0xff]
        %v4347 = vld [vmem:[#allocation3 + $0xe8] sm:$0xff]
        %v4348 = vld [vmem:[#allocation3 + $0xf0] sm:$0xff]
        %v4349 = vld [vmem:[#allocation3 + $0xf8] sm:$0xff]
        %4350 = vmatprep.subr.bf16.mxu0 %v4309
        %4351 = vmatpush1.bf16.msra.mxu0 %v4293
        %4352 = vmatprep.subr.bf16.mxu0 %v4308
        %4353 = vmatpush1.bf16.msra.mxu0 %v4292
        %4354 = vmatprep.subr.bf16.mxu0 %v4307
        %4355 = vmatpush1.bf16.msra.mxu0 %v4291
        %4356 = vmatprep.subr.bf16.mxu0 %v4306
        %4357 = vmatpush1.bf16.msra.mxu0 %v4290
        %4358 = vmatprep.subr.bf16.mxu0 %v4305
        %4359 = vmatpush1.bf16.msra.mxu0 %v4289
        %4360 = vmatprep.subr.bf16.mxu0 %v4304
        %4361 = vmatpush1.bf16.msra.mxu0 %v4288
        %4362 = vmatprep.subr.bf16.mxu0 %v4303
        %4363 = vmatpush1.bf16.msra.mxu0 %v4287
        %4364 = vmatprep.subr.bf16.mxu0 %v4302
        %4365 = vmatpush1.bf16.msra.mxu0 %v4286
        %4366 = vmatprep.subr.bf16.mxu0 %v4317
        %4367 = vmatpush2.bf16.msra.mxu0 %v4301
        %4368 = vmatprep.subr.bf16.mxu0 %v4316
        %4369 = vmatpush2.bf16.msra.mxu0 %v4300
        %4370 = vmatprep.subr.bf16.mxu0 %v4315
        %4371 = vmatpush2.bf16.msra.mxu0 %v4299
        %4372 = vmatprep.subr.bf16.mxu0 %v4314
        %4373 = vmatpush2.bf16.msra.mxu0 %v4298
        %4374 = vmatprep.subr.bf16.mxu0 %v4313
        %4375 = vmatpush2.bf16.msra.mxu0 %v4297
        %4376 = vmatprep.subr.bf16.mxu0 %v4312
        %4377 = vmatpush2.bf16.msra.mxu0 %v4296
        %4378 = vmatprep.subr.bf16.mxu0 %v4311
        %4379 = vmatpush2.bf16.msra.mxu0 %v4295
        %4380 = vmatprep.subr.bf16.mxu0 %v4310
        %4381 = vmatpush2.bf16.msra.mxu0 %v4294
        %4382 = vmatprep.mubr.bf16.mxu0 %v2483
        %4383 = vmatmul.mubr.bf16.gmra.mxu0 %v2482
        %v4384 = vpop.f32.mrf.mxu0
        %v4385 = vadd.f32 0.0, %v4384
        %v4386 = vpop.f32.mrf.mxu0
        %v4387 = vadd.f32 0.0, %v4386
        %v4388 = vpop.f32.mrf.mxu0
        %v4389 = vadd.f32 0.0, %v4388
        %v4390 = vpop.f32.mrf.mxu0
        %v4391 = vadd.f32 0.0, %v4390
        %4392 = vmatprep.mubr.bf16.mxu0 %v2485
        %4393 = vmatmul.mubr.bf16.gmra.mxu0 %v2484
        %v4394 = vpop.f32.mrf.mxu0
        %v4395 = vadd.f32 0.0, %v4394
        %v4396 = vpop.f32.mrf.mxu0
        %v4397 = vadd.f32 0.0, %v4396
        %v4398 = vpop.f32.mrf.mxu0
        %v4399 = vadd.f32 0.0, %v4398
        %v4400 = vpop.f32.mrf.mxu0
        %v4401 = vadd.f32 0.0, %v4400
        %4402 = vmatprep.mubr.bf16.mxu0 %v2487
        %4403 = vmatmul.mubr.bf16.gmra.mxu0 %v2486
        %v4404 = vpop.f32.mrf.mxu0
        %v4405 = vadd.f32 0.0, %v4404
        %v4406 = vpop.f32.mrf.mxu0
        %v4407 = vadd.f32 0.0, %v4406
        %v4408 = vpop.f32.mrf.mxu0
        %v4409 = vadd.f32 0.0, %v4408
        %v4410 = vpop.f32.mrf.mxu0
        %v4411 = vadd.f32 0.0, %v4410
        %4412 = vmatprep.mubr.bf16.mxu0 %v2489
        %4413 = vmatmul.mubr.bf16.gmra.mxu0 %v2488
        %v4414 = vpop.f32.mrf.mxu0
        %v4415 = vadd.f32 0.0, %v4414
        %v4416 = vpop.f32.mrf.mxu0
        %v4417 = vadd.f32 0.0, %v4416
        %v4418 = vpop.f32.mrf.mxu0
        %v4419 = vadd.f32 0.0, %v4418
        %v4420 = vpop.f32.mrf.mxu0
        %v4421 = vadd.f32 0.0, %v4420
        %4422 = vmatprep.mubr.bf16.mxu0 %v2491
        %4423 = vmatmul.mubr.bf16.gmra.mxu0 %v2490
        %v4424 = vpop.f32.mrf.mxu0
        %v4425 = vadd.f32 0.0, %v4424
        %v4426 = vpop.f32.mrf.mxu0
        %v4427 = vadd.f32 0.0, %v4426
        %v4428 = vpop.f32.mrf.mxu0
        %v4429 = vadd.f32 0.0, %v4428
        %v4430 = vpop.f32.mrf.mxu0
        %v4431 = vadd.f32 0.0, %v4430
        %4432 = vmatprep.mubr.bf16.mxu0 %v2493
        %4433 = vmatmul.mubr.bf16.gmra.mxu0 %v2492
        %v4434 = vpop.f32.mrf.mxu0
        %v4435 = vadd.f32 0.0, %v4434
        %v4436 = vpop.f32.mrf.mxu0
        %v4437 = vadd.f32 0.0, %v4436
        %v4438 = vpop.f32.mrf.mxu0
        %v4439 = vadd.f32 0.0, %v4438
        %v4440 = vpop.f32.mrf.mxu0
        %v4441 = vadd.f32 0.0, %v4440
        %4442 = vmatprep.mubr.bf16.mxu0 %v2495
        %4443 = vmatmul.mubr.bf16.gmra.mxu0 %v2494
        %v4444 = vpop.f32.mrf.mxu0
        %v4445 = vadd.f32 0.0, %v4444
        %v4446 = vpop.f32.mrf.mxu0
        %v4447 = vadd.f32 0.0, %v4446
        %v4448 = vpop.f32.mrf.mxu0
        %v4449 = vadd.f32 0.0, %v4448
        %v4450 = vpop.f32.mrf.mxu0
        %v4451 = vadd.f32 0.0, %v4450
        %4452 = vmatprep.mubr.bf16.mxu0 %v2497
        %4453 = vmatmul.mubr.bf16.gmra.mxu0 %v2496
        %v4454 = vpop.f32.mrf.mxu0
        %v4455 = vadd.f32 0.0, %v4454
        %v4456 = vpop.f32.mrf.mxu0
        %v4457 = vadd.f32 0.0, %v4456
        %v4458 = vpop.f32.mrf.mxu0
        %v4459 = vadd.f32 0.0, %v4458
        %v4460 = vpop.f32.mrf.mxu0
        %v4461 = vadd.f32 0.0, %v4460
        %4462 = vdwg.mxu0
        %v4463 = vadd.f32 %v4318, %v4385
        %v4464 = vadd.f32 %v4319, %v4387
        %v4465 = vadd.f32 %v4320, %v4389
        %v4466 = vadd.f32 %v4321, %v4391
        %v4467 = vadd.f32 %v4322, %v4395
        %v4468 = vadd.f32 %v4323, %v4397
        %v4469 = vadd.f32 %v4324, %v4399
        %v4470 = vadd.f32 %v4325, %v4401
        %v4471 = vadd.f32 %v4326, %v4405
        %v4472 = vadd.f32 %v4327, %v4407
        %v4473 = vadd.f32 %v4328, %v4409
        %v4474 = vadd.f32 %v4329, %v4411
        %v4475 = vadd.f32 %v4330, %v4415
        %v4476 = vadd.f32 %v4331, %v4417
        %v4477 = vadd.f32 %v4332, %v4419
        %v4478 = vadd.f32 %v4333, %v4421
        %v4479 = vadd.f32 %v4334, %v4425
        %v4480 = vadd.f32 %v4335, %v4427
        %v4481 = vadd.f32 %v4336, %v4429
        %v4482 = vadd.f32 %v4337, %v4431
        %v4483 = vadd.f32 %v4338, %v4435
        %v4484 = vadd.f32 %v4339, %v4437
        %v4485 = vadd.f32 %v4340, %v4439
        %v4486 = vadd.f32 %v4341, %v4441
        %v4487 = vadd.f32 %v4342, %v4445
        %v4488 = vadd.f32 %v4343, %v4447
        %v4489 = vadd.f32 %v4344, %v4449
        %v4490 = vadd.f32 %v4345, %v4451
        %v4491 = vadd.f32 %v4346, %v4455
        %v4492 = vadd.f32 %v4347, %v4457
        %v4493 = vadd.f32 %v4348, %v4459
        %v4494 = vadd.f32 %v4349, %v4461
        %4495 = vst [vmem:[#allocation3] sm:$0xff] %v4463
        %4496 = vst [vmem:[#allocation3 + $0x8] sm:$0xff] %v4464
        %4497 = vst [vmem:[#allocation3 + $0x10] sm:$0xff] %v4465
        %4498 = vst [vmem:[#allocation3 + $0x18] sm:$0xff] %v4466
        %4499 = vst [vmem:[#allocation3 + $0x20] sm:$0xff] %v4467
        %4500 = vst [vmem:[#allocation3 + $0x28] sm:$0xff] %v4468
        %4501 = vst [vmem:[#allocation3 + $0x30] sm:$0xff] %v4469
        %4502 = vst [vmem:[#allocation3 + $0x38] sm:$0xff] %v4470
        %4503 = vst [vmem:[#allocation3 + $0x40] sm:$0xff] %v4471
        %4504 = vst [vmem:[#allocation3 + $0x48] sm:$0xff] %v4472
        %4505 = vst [vmem:[#allocation3 + $0x50] sm:$0xff] %v4473
        %4506 = vst [vmem:[#allocation3 + $0x58] sm:$0xff] %v4474
        %4507 = vst [vmem:[#allocation3 + $0x60] sm:$0xff] %v4475
        %4508 = vst [vmem:[#allocation3 + $0x68] sm:$0xff] %v4476
        %4509 = vst [vmem:[#allocation3 + $0x70] sm:$0xff] %v4477
        %4510 = vst [vmem:[#allocation3 + $0x78] sm:$0xff] %v4478
        %4511 = vst [vmem:[#allocation3 + $0x80] sm:$0xff] %v4479
        %4512 = vst [vmem:[#allocation3 + $0x88] sm:$0xff] %v4480
        %4513 = vst [vmem:[#allocation3 + $0x90] sm:$0xff] %v4481
        %4514 = vst [vmem:[#allocation3 + $0x98] sm:$0xff] %v4482
        %4515 = vst [vmem:[#allocation3 + $0xa0] sm:$0xff] %v4483
        %4516 = vst [vmem:[#allocation3 + $0xa8] sm:$0xff] %v4484
        %4517 = vst [vmem:[#allocation3 + $0xb0] sm:$0xff] %v4485
        %4518 = vst [vmem:[#allocation3 + $0xb8] sm:$0xff] %v4486
        %4519 = vst [vmem:[#allocation3 + $0xc0] sm:$0xff] %v4487
        %4520 = vst [vmem:[#allocation3 + $0xc8] sm:$0xff] %v4488
        %4521 = vst [vmem:[#allocation3 + $0xd0] sm:$0xff] %v4489
        %4522 = vst [vmem:[#allocation3 + $0xd8] sm:$0xff] %v4490
        %4523 = vst [vmem:[#allocation3 + $0xe0] sm:$0xff] %v4491
        %4524 = vst [vmem:[#allocation3 + $0xe8] sm:$0xff] %v4492
        %4525 = vst [vmem:[#allocation3 + $0xf0] sm:$0xff] %v4493
        %4526 = vst [vmem:[#allocation3 + $0xf8] sm:$0xff] %v4494
        %v4527 = vld [vmem:[%s13] sm:$0x1]
        %v4529 = vlaneseq
        %v4530 = vshrl.u32 %v4529, 7
        %v4531 = vsub.s32 0, %v4530
        %v4532 = vrot.slane %v4527, %v4531
        %v4534 = vmul.f32 %v3549, %v4532
        %v4535 = vmul.f32 %v3550, %v4532
        %v4536 = vmul.f32 %v3551, %v4532
        %v4537 = vmul.f32 %v3552, %v4532
        %v4538 = vmul.f32 %v3553, %v4532
        %v4539 = vmul.f32 %v3554, %v4532
        %v4540 = vmul.f32 %v3555, %v4532
        %v4541 = vmul.f32 %v3556, %v4532
        %v4542 = vmul.f32 %v3557, %v4532
        %v4543 = vmul.f32 %v3558, %v4532
        %v4544 = vmul.f32 %v3559, %v4532
        %v4545 = vmul.f32 %v3560, %v4532
        %v4546 = vmul.f32 %v3561, %v4532
        %v4547 = vmul.f32 %v3562, %v4532
        %v4548 = vmul.f32 %v3563, %v4532
        %v4549 = vmul.f32 %v3564, %v4532
        %v4550 = vmul.f32 %v3565, %v4532
        %v4551 = vmul.f32 %v3566, %v4532
        %v4552 = vmul.f32 %v3567, %v4532
        %v4553 = vmul.f32 %v3568, %v4532
        %v4554 = vmul.f32 %v3569, %v4532
        %v4555 = vmul.f32 %v3570, %v4532
        %v4556 = vmul.f32 %v3571, %v4532
        %v4557 = vmul.f32 %v3572, %v4532
        %v4558 = vmul.f32 %v3573, %v4532
        %v4559 = vmul.f32 %v3574, %v4532
        %v4560 = vmul.f32 %v3575, %v4532
        %v4561 = vmul.f32 %v3576, %v4532
        %v4562 = vmul.f32 %v3577, %v4532
        %v4563 = vmul.f32 %v3578, %v4532
        %v4564 = vmul.f32 %v3579, %v4532
        %v4565 = vmul.f32 %v3580, %v4532
        %v4566 = vld [vmem:[%s14] sm:$0x1]
        %v4568 = vlaneseq
        %v4569 = vshrl.u32 %v4568, 7
        %v4570 = vsub.s32 0, %v4569
        %v4571 = vrot.slane %v4566, %v4570
        %v4573 = vadd.f32 %v4534, %v4571
        %v4574 = vadd.f32 %v4535, %v4571
        %v4575 = vadd.f32 %v4536, %v4571
        %v4576 = vadd.f32 %v4537, %v4571
        %v4577 = vadd.f32 %v4538, %v4571
        %v4578 = vadd.f32 %v4539, %v4571
        %v4579 = vadd.f32 %v4540, %v4571
        %v4580 = vadd.f32 %v4541, %v4571
        %v4581 = vadd.f32 %v4542, %v4571
        %v4582 = vadd.f32 %v4543, %v4571
        %v4583 = vadd.f32 %v4544, %v4571
        %v4584 = vadd.f32 %v4545, %v4571
        %v4585 = vadd.f32 %v4546, %v4571
        %v4586 = vadd.f32 %v4547, %v4571
        %v4587 = vadd.f32 %v4548, %v4571
        %v4588 = vadd.f32 %v4549, %v4571
        %v4589 = vadd.f32 %v4550, %v4571
        %v4590 = vadd.f32 %v4551, %v4571
        %v4591 = vadd.f32 %v4552, %v4571
        %v4592 = vadd.f32 %v4553, %v4571
        %v4593 = vadd.f32 %v4554, %v4571
        %v4594 = vadd.f32 %v4555, %v4571
        %v4595 = vadd.f32 %v4556, %v4571
        %v4596 = vadd.f32 %v4557, %v4571
        %v4597 = vadd.f32 %v4558, %v4571
        %v4598 = vadd.f32 %v4559, %v4571
        %v4599 = vadd.f32 %v4560, %v4571
        %v4600 = vadd.f32 %v4561, %v4571
        %v4601 = vadd.f32 %v4562, %v4571
        %v4602 = vadd.f32 %v4563, %v4571
        %v4603 = vadd.f32 %v4564, %v4571
        %v4604 = vadd.f32 %v4565, %v4571
        %v4605 = vmax.f32 %v4573, 0.0
        %v4606 = vmax.f32 %v4574, 0.0
        %v4607 = vmax.f32 %v4575, 0.0
        %v4608 = vmax.f32 %v4576, 0.0
        %v4609 = vmax.f32 %v4577, 0.0
        %v4610 = vmax.f32 %v4578, 0.0
        %v4611 = vmax.f32 %v4579, 0.0
        %v4612 = vmax.f32 %v4580, 0.0
        %v4613 = vmax.f32 %v4581, 0.0
        %v4614 = vmax.f32 %v4582, 0.0
        %v4615 = vmax.f32 %v4583, 0.0
        %v4616 = vmax.f32 %v4584, 0.0
        %v4617 = vmax.f32 %v4585, 0.0
        %v4618 = vmax.f32 %v4586, 0.0
        %v4619 = vmax.f32 %v4587, 0.0
        %v4620 = vmax.f32 %v4588, 0.0
        %v4621 = vmax.f32 %v4589, 0.0
        %v4622 = vmax.f32 %v4590, 0.0
        %v4623 = vmax.f32 %v4591, 0.0
        %v4624 = vmax.f32 %v4592, 0.0
        %v4625 = vmax.f32 %v4593, 0.0
        %v4626 = vmax.f32 %v4594, 0.0
        %v4627 = vmax.f32 %v4595, 0.0
        %v4628 = vmax.f32 %v4596, 0.0
        %v4629 = vmax.f32 %v4597, 0.0
        %v4630 = vmax.f32 %v4598, 0.0
        %v4631 = vmax.f32 %v4599, 0.0
        %v4632 = vmax.f32 %v4600, 0.0
        %v4633 = vmax.f32 %v4601, 0.0
        %v4634 = vmax.f32 %v4602, 0.0
        %v4635 = vmax.f32 %v4603, 0.0
        %v4636 = vmax.f32 %v4604, 0.0
        %v4637 = vld [vmem:[%s873] sm:$0xff]
        %v4638 = vld [vmem:[%s873 + $0x8] sm:$0xff]
        %v4639 = vld [vmem:[%s873 + $0x10] sm:$0xff]
        %v4640 = vld [vmem:[%s873 + $0x18] sm:$0xff]
        %v4641 = vld [vmem:[%s873 + $0x20] sm:$0xff]
        %v4642 = vld [vmem:[%s873 + $0x28] sm:$0xff]
        %v4643 = vld [vmem:[%s873 + $0x30] sm:$0xff]
        %v4644 = vld [vmem:[%s873 + $0x38] sm:$0xff]
        %v4645 = vld [vmem:[%s873 + $0x40] sm:$0xff]
        %v4646 = vld [vmem:[%s873 + $0x48] sm:$0xff]
        %v4647 = vld [vmem:[%s873 + $0x50] sm:$0xff]
        %v4648 = vld [vmem:[%s873 + $0x58] sm:$0xff]
        %v4649 = vld [vmem:[%s873 + $0x60] sm:$0xff]
        %v4650 = vld [vmem:[%s873 + $0x68] sm:$0xff]
        %v4651 = vld [vmem:[%s873 + $0x70] sm:$0xff]
        %v4652 = vld [vmem:[%s873 + $0x78] sm:$0xff]
        %v4653 = vld [vmem:[%s873 + $0x80] sm:$0xff]
        %v4654 = vld [vmem:[%s873 + $0x88] sm:$0xff]
        %v4655 = vld [vmem:[%s873 + $0x90] sm:$0xff]
        %v4656 = vld [vmem:[%s873 + $0x98] sm:$0xff]
        %v4657 = vld [vmem:[%s873 + $0xa0] sm:$0xff]
        %v4658 = vld [vmem:[%s873 + $0xa8] sm:$0xff]
        %v4659 = vld [vmem:[%s873 + $0xb0] sm:$0xff]
        %v4660 = vld [vmem:[%s873 + $0xb8] sm:$0xff]
        %v4661 = vld [vmem:[%s873 + $0xc0] sm:$0xff]
        %v4662 = vld [vmem:[%s873 + $0xc8] sm:$0xff]
        %v4663 = vld [vmem:[%s873 + $0xd0] sm:$0xff]
        %v4664 = vld [vmem:[%s873 + $0xd8] sm:$0xff]
        %v4665 = vld [vmem:[%s873 + $0xe0] sm:$0xff]
        %v4666 = vld [vmem:[%s873 + $0xe8] sm:$0xff]
        %v4667 = vld [vmem:[%s873 + $0xf0] sm:$0xff]
        %v4668 = vld [vmem:[%s873 + $0xf8] sm:$0xff]
        %v4669 = vadd.f32 %v4637, %v4605
        %v4670 = vadd.f32 %v4638, %v4606
        %v4671 = vadd.f32 %v4639, %v4607
        %v4672 = vadd.f32 %v4640, %v4608
        %v4673 = vadd.f32 %v4641, %v4609
        %v4674 = vadd.f32 %v4642, %v4610
        %v4675 = vadd.f32 %v4643, %v4611
        %v4676 = vadd.f32 %v4644, %v4612
        %v4677 = vadd.f32 %v4645, %v4613
        %v4678 = vadd.f32 %v4646, %v4614
        %v4679 = vadd.f32 %v4647, %v4615
        %v4680 = vadd.f32 %v4648, %v4616
        %v4681 = vadd.f32 %v4649, %v4617
        %v4682 = vadd.f32 %v4650, %v4618
        %v4683 = vadd.f32 %v4651, %v4619
        %v4684 = vadd.f32 %v4652, %v4620
        %v4685 = vadd.f32 %v4653, %v4621
        %v4686 = vadd.f32 %v4654, %v4622
        %v4687 = vadd.f32 %v4655, %v4623
        %v4688 = vadd.f32 %v4656, %v4624
        %v4689 = vadd.f32 %v4657, %v4625
        %v4690 = vadd.f32 %v4658, %v4626
        %v4691 = vadd.f32 %v4659, %v4627
        %v4692 = vadd.f32 %v4660, %v4628
        %v4693 = vadd.f32 %v4661, %v4629
        %v4694 = vadd.f32 %v4662, %v4630
        %v4695 = vadd.f32 %v4663, %v4631
        %v4696 = vadd.f32 %v4664, %v4632
        %v4697 = vadd.f32 %v4665, %v4633
        %v4698 = vadd.f32 %v4666, %v4634
        %v4699 = vadd.f32 %v4667, %v4635
        %v4700 = vadd.f32 %v4668, %v4636
        %4701 = vst [vmem:[%s868] sm:$0xff] %v4669
        %4702 = vst [vmem:[%s868 + $0x8] sm:$0xff] %v4670
        %4703 = vst [vmem:[%s868 + $0x10] sm:$0xff] %v4671
        %4704 = vst [vmem:[%s868 + $0x18] sm:$0xff] %v4672
        %4705 = vst [vmem:[%s868 + $0x20] sm:$0xff] %v4673
        %4706 = vst [vmem:[%s868 + $0x28] sm:$0xff] %v4674
        %4707 = vst [vmem:[%s868 + $0x30] sm:$0xff] %v4675
        %4708 = vst [vmem:[%s868 + $0x38] sm:$0xff] %v4676
        %4709 = vst [vmem:[%s868 + $0x40] sm:$0xff] %v4677
        %4710 = vst [vmem:[%s868 + $0x48] sm:$0xff] %v4678
        %4711 = vst [vmem:[%s868 + $0x50] sm:$0xff] %v4679
        %4712 = vst [vmem:[%s868 + $0x58] sm:$0xff] %v4680
        %4713 = vst [vmem:[%s868 + $0x60] sm:$0xff] %v4681
        %4714 = vst [vmem:[%s868 + $0x68] sm:$0xff] %v4682
        %4715 = vst [vmem:[%s868 + $0x70] sm:$0xff] %v4683
        %4716 = vst [vmem:[%s868 + $0x78] sm:$0xff] %v4684
        %4717 = vst [vmem:[%s868 + $0x80] sm:$0xff] %v4685
        %4718 = vst [vmem:[%s868 + $0x88] sm:$0xff] %v4686
        %4719 = vst [vmem:[%s868 + $0x90] sm:$0xff] %v4687
        %4720 = vst [vmem:[%s868 + $0x98] sm:$0xff] %v4688
        %4721 = vst [vmem:[%s868 + $0xa0] sm:$0xff] %v4689
        %4722 = vst [vmem:[%s868 + $0xa8] sm:$0xff] %v4690
        %4723 = vst [vmem:[%s868 + $0xb0] sm:$0xff] %v4691
        %4724 = vst [vmem:[%s868 + $0xb8] sm:$0xff] %v4692
        %4725 = vst [vmem:[%s868 + $0xc0] sm:$0xff] %v4693
        %4726 = vst [vmem:[%s868 + $0xc8] sm:$0xff] %v4694
        %4727 = vst [vmem:[%s868 + $0xd0] sm:$0xff] %v4695
        %4728 = vst [vmem:[%s868 + $0xd8] sm:$0xff] %v4696
        %4729 = vst [vmem:[%s868 + $0xe0] sm:$0xff] %v4697
        %4730 = vst [vmem:[%s868 + $0xe8] sm:$0xff] %v4698
        %4731 = vst [vmem:[%s868 + $0xf0] sm:$0xff] %v4699
        %4732 = vst [vmem:[%s868 + $0xf8] sm:$0xff] %v4700
        %p4733 = scmp.eq.s32.totalorder %s32, 1
        // Predicated region
        $region123: #{tpu_custom_call.1} parent=113 // pred_check
          %p4734 = pneg %p4733
        $region124: #{tpu_custom_call.1} parent=113 // pred_check_branch
          %4736 = sbr.rel (%p4734) target = $region126
        $region125: #{tpu_custom_call.1} parent=113 // pred_region
          %v4737 = vld [vmem:[#allocation2 + $0x10] sm:$0xf]
          %v4738 = vld [vmem:[#allocation2 + $0x24] sm:$0xf]
          %v4739 = vld [vmem:[#allocation2 + $0x38] sm:$0xf]
          %v4740 = vld [vmem:[#allocation2 + $0x4c] sm:$0xf]
          %v4741 = vld [vmem:[#allocation2 + $0x60] sm:$0xf]
          %v4742 = vld [vmem:[#allocation2 + $0x74] sm:$0xf]
          %v4743 = vld [vmem:[#allocation2 + $0x88] sm:$0xf]
          %v4744 = vld [vmem:[#allocation2 + $0x9c] sm:$0xf]
          %v4745 = vld [vmem:[#allocation2 + $0xb0] sm:$0xf]
          %v4746 = vld [vmem:[#allocation2 + $0xc4] sm:$0xf]
          %v4747 = vld [vmem:[#allocation2 + $0xd8] sm:$0xf]
          %v4748 = vld [vmem:[#allocation2 + $0xec] sm:$0xf]
          %v4749 = vld [vmem:[#allocation2 + $0x100] sm:$0xf]
          %v4750 = vld [vmem:[#allocation2 + $0x114] sm:$0xf]
          %v4751 = vld [vmem:[#allocation2 + $0x128] sm:$0xf]
          %v4752 = vld [vmem:[#allocation2 + $0x13c] sm:$0xf]
          %v4753 = vunpack.c.l.bf16 %v4737
          %v4754 = vunpack.c.l.bf16 %v4738
          %v4755 = vunpack.c.l.bf16 %v4739
          %v4756 = vunpack.c.l.bf16 %v4740
          %v4757 = vunpack.c.l.bf16 %v4741
          %v4758 = vunpack.c.l.bf16 %v4742
          %v4759 = vunpack.c.l.bf16 %v4743
          %v4760 = vunpack.c.l.bf16 %v4744
          %v4761 = vunpack.c.l.bf16 %v4745
          %v4762 = vunpack.c.l.bf16 %v4746
          %v4763 = vunpack.c.l.bf16 %v4747
          %v4764 = vunpack.c.l.bf16 %v4748
          %v4765 = vunpack.c.l.bf16 %v4749
          %v4766 = vunpack.c.l.bf16 %v4750
          %v4767 = vunpack.c.l.bf16 %v4751
          %v4768 = vunpack.c.l.bf16 %v4752
          %v4769 = vld [vmem:[%s9] sm:$0x1]
          %v4771 = vlaneseq
          %v4772 = vshrl.u32 %v4771, 7
          %v4773 = vsub.s32 0, %v4772
          %v4774 = vrot.slane %v4769, %v4773
          %v4776 = vadd.f32 %v4753, %v4774
          %v4777 = vadd.f32 %v4754, %v4774
          %v4778 = vadd.f32 %v4755, %v4774
          %v4779 = vadd.f32 %v4756, %v4774
          %v4780 = vadd.f32 %v4757, %v4774
          %v4781 = vadd.f32 %v4758, %v4774
          %v4782 = vadd.f32 %v4759, %v4774
          %v4783 = vadd.f32 %v4760, %v4774
          %v4784 = vadd.f32 %v4761, %v4774
          %v4785 = vadd.f32 %v4762, %v4774
          %v4786 = vadd.f32 %v4763, %v4774
          %v4787 = vadd.f32 %v4764, %v4774
          %v4788 = vadd.f32 %v4765, %v4774
          %v4789 = vadd.f32 %v4766, %v4774
          %v4790 = vadd.f32 %v4767, %v4774
          %v4791 = vadd.f32 %v4768, %v4774
          %v4792 = vld [vmem:[#allocation3] sm:$0xff]
          %v4793 = vld [vmem:[#allocation3 + $0x10] sm:$0xff]
          %v4794 = vld [vmem:[#allocation3 + $0x20] sm:$0xff]
          %v4795 = vld [vmem:[#allocation3 + $0x30] sm:$0xff]
          %v4796 = vld [vmem:[#allocation3 + $0x40] sm:$0xff]
          %v4797 = vld [vmem:[#allocation3 + $0x50] sm:$0xff]
          %v4798 = vld [vmem:[#allocation3 + $0x60] sm:$0xff]
          %v4799 = vld [vmem:[#allocation3 + $0x70] sm:$0xff]
          %v4800 = vld [vmem:[#allocation3 + $0x80] sm:$0xff]
          %v4801 = vld [vmem:[#allocation3 + $0x90] sm:$0xff]
          %v4802 = vld [vmem:[#allocation3 + $0xa0] sm:$0xff]
          %v4803 = vld [vmem:[#allocation3 + $0xb0] sm:$0xff]
          %v4804 = vld [vmem:[#allocation3 + $0xc0] sm:$0xff]
          %v4805 = vld [vmem:[#allocation3 + $0xd0] sm:$0xff]
          %v4806 = vld [vmem:[#allocation3 + $0xe0] sm:$0xff]
          %v4807 = vld [vmem:[#allocation3 + $0xf0] sm:$0xff]
          %v4808 = vld [vmem:[#allocation3 + $0x8] sm:$0xff]
          %v4809 = vld [vmem:[#allocation3 + $0x18] sm:$0xff]
          %v4810 = vld [vmem:[#allocation3 + $0x28] sm:$0xff]
          %v4811 = vld [vmem:[#allocation3 + $0x38] sm:$0xff]
          %v4812 = vld [vmem:[#allocation3 + $0x48] sm:$0xff]
          %v4813 = vld [vmem:[#allocation3 + $0x58] sm:$0xff]
          %v4814 = vld [vmem:[#allocation3 + $0x68] sm:$0xff]
          %v4815 = vld [vmem:[#allocation3 + $0x78] sm:$0xff]
          %v4816 = vld [vmem:[#allocation3 + $0x88] sm:$0xff]
          %v4817 = vld [vmem:[#allocation3 + $0x98] sm:$0xff]
          %v4818 = vld [vmem:[#allocation3 + $0xa8] sm:$0xff]
          %v4819 = vld [vmem:[#allocation3 + $0xb8] sm:$0xff]
          %v4820 = vld [vmem:[#allocation3 + $0xc8] sm:$0xff]
          %v4821 = vld [vmem:[#allocation3 + $0xd8] sm:$0xff]
          %v4822 = vld [vmem:[#allocation3 + $0xe8] sm:$0xff]
          %v4823 = vld [vmem:[#allocation3 + $0xf8] sm:$0xff]
          %v4824 = vadd.f32 %v4808, 1e-06
          %v4825 = vadd.f32 %v4809, 1e-06
          %v4826 = vadd.f32 %v4810, 1e-06
          %v4827 = vadd.f32 %v4811, 1e-06
          %v4828 = vadd.f32 %v4812, 1e-06
          %v4829 = vadd.f32 %v4813, 1e-06
          %v4830 = vadd.f32 %v4814, 1e-06
          %v4831 = vadd.f32 %v4815, 1e-06
          %v4832 = vadd.f32 %v4816, 1e-06
          %v4833 = vadd.f32 %v4817, 1e-06
          %v4834 = vadd.f32 %v4818, 1e-06
          %v4835 = vadd.f32 %v4819, 1e-06
          %v4836 = vadd.f32 %v4820, 1e-06
          %v4837 = vadd.f32 %v4821, 1e-06
          %v4838 = vadd.f32 %v4822, 1e-06
          %v4839 = vadd.f32 %v4823, 1e-06
          %v4840 = vrcp.pop %v4824
          %v4841 = vrcp.pop %v4825
          %v4842 = vrcp.pop %v4826
          %v4843 = vrcp.pop %v4827
          %v4844 = vrcp.pop %v4828
          %v4845 = vrcp.pop %v4829
          %v4846 = vrcp.pop %v4830
          %v4847 = vrcp.pop %v4831
          %v4848 = vrcp.pop %v4832
          %v4849 = vrcp.pop %v4833
          %v4850 = vrcp.pop %v4834
          %v4851 = vrcp.pop %v4835
          %v4852 = vrcp.pop %v4836
          %v4853 = vrcp.pop %v4837
          %v4854 = vrcp.pop %v4838
          %v4855 = vrcp.pop %v4839
          %v4856 = vmul.f32 %v4792, %v4840
          %v4857 = vmul.f32 %v4793, %v4841
          %v4858 = vmul.f32 %v4794, %v4842
          %v4859 = vmul.f32 %v4795, %v4843
          %v4860 = vmul.f32 %v4796, %v4844
          %v4861 = vmul.f32 %v4797, %v4845
          %v4862 = vmul.f32 %v4798, %v4846
          %v4863 = vmul.f32 %v4799, %v4847
          %v4864 = vmul.f32 %v4800, %v4848
          %v4865 = vmul.f32 %v4801, %v4849
          %v4866 = vmul.f32 %v4802, %v4850
          %v4867 = vmul.f32 %v4803, %v4851
          %v4868 = vmul.f32 %v4804, %v4852
          %v4869 = vmul.f32 %v4805, %v4853
          %v4870 = vmul.f32 %v4806, %v4854
          %v4871 = vmul.f32 %v4807, %v4855
          %v4872 = vadd.f32 %v4776, %v4856
          %v4873 = vadd.f32 %v4777, %v4857
          %v4874 = vadd.f32 %v4778, %v4858
          %v4875 = vadd.f32 %v4779, %v4859
          %v4876 = vadd.f32 %v4780, %v4860
          %v4877 = vadd.f32 %v4781, %v4861
          %v4878 = vadd.f32 %v4782, %v4862
          %v4879 = vadd.f32 %v4783, %v4863
          %v4880 = vadd.f32 %v4784, %v4864
          %v4881 = vadd.f32 %v4785, %v4865
          %v4882 = vadd.f32 %v4786, %v4866
          %v4883 = vadd.f32 %v4787, %v4867
          %v4884 = vadd.f32 %v4788, %v4868
          %v4885 = vadd.f32 %v4789, %v4869
          %v4886 = vadd.f32 %v4790, %v4870
          %v4887 = vadd.f32 %v4791, %v4871
          %v4888 = vld [vmem:[%s6] sm:$0xff]
          %v4889 = vld [vmem:[%s6 + $0x8] sm:$0xff]
          %v4890 = vld [vmem:[%s6 + $0x10] sm:$0xff]
          %v4891 = vld [vmem:[%s6 + $0x18] sm:$0xff]
          %v4892 = vld [vmem:[%s6 + $0x20] sm:$0xff]
          %v4893 = vld [vmem:[%s6 + $0x28] sm:$0xff]
          %v4894 = vld [vmem:[%s6 + $0x30] sm:$0xff]
          %v4895 = vld [vmem:[%s6 + $0x38] sm:$0xff]
          %v4896 = vld [vmem:[%s6 + $0x40] sm:$0xff]
          %v4897 = vld [vmem:[%s6 + $0x48] sm:$0xff]
          %v4898 = vld [vmem:[%s6 + $0x50] sm:$0xff]
          %v4899 = vld [vmem:[%s6 + $0x58] sm:$0xff]
          %v4900 = vld [vmem:[%s6 + $0x60] sm:$0xff]
          %v4901 = vld [vmem:[%s6 + $0x68] sm:$0xff]
          %v4902 = vld [vmem:[%s6 + $0x70] sm:$0xff]
          %v4903 = vld [vmem:[%s6 + $0x78] sm:$0xff]
          %vm4904 = vcmp.gt.f32.partialorder %v4888, 0.0
          %vm4905 = vcmp.gt.f32.partialorder %v4889, 0.0
          %vm4906 = vcmp.gt.f32.partialorder %v4890, 0.0
          %vm4907 = vcmp.gt.f32.partialorder %v4891, 0.0
          %vm4908 = vcmp.gt.f32.partialorder %v4892, 0.0
          %vm4909 = vcmp.gt.f32.partialorder %v4893, 0.0
          %vm4910 = vcmp.gt.f32.partialorder %v4894, 0.0
          %vm4911 = vcmp.gt.f32.partialorder %v4895, 0.0
          %vm4912 = vcmp.gt.f32.partialorder %v4896, 0.0
          %vm4913 = vcmp.gt.f32.partialorder %v4897, 0.0
          %vm4914 = vcmp.gt.f32.partialorder %v4898, 0.0
          %vm4915 = vcmp.gt.f32.partialorder %v4899, 0.0
          %vm4916 = vcmp.gt.f32.partialorder %v4900, 0.0
          %vm4917 = vcmp.gt.f32.partialorder %v4901, 0.0
          %vm4918 = vcmp.gt.f32.partialorder %v4902, 0.0
          %vm4919 = vcmp.gt.f32.partialorder %v4903, 0.0
          %v4920 = vld [vmem:[%s0] sm:$0xf]
          %v4921 = vld [vmem:[%s0 + $0x4] sm:$0xf]
          %v4922 = vld [vmem:[%s0 + $0x8] sm:$0xf]
          %v4923 = vld [vmem:[%s0 + $0xc] sm:$0xf]
          %v4924 = vld [vmem:[%s0 + $0x10] sm:$0xf]
          %v4925 = vld [vmem:[%s0 + $0x14] sm:$0xf]
          %v4926 = vld [vmem:[%s0 + $0x18] sm:$0xf]
          %v4927 = vld [vmem:[%s0 + $0x1c] sm:$0xf]
          %v4928 = vld [vmem:[%s0 + $0x20] sm:$0xf]
          %v4929 = vld [vmem:[%s0 + $0x24] sm:$0xf]
          %v4930 = vld [vmem:[%s0 + $0x28] sm:$0xf]
          %v4931 = vld [vmem:[%s0 + $0x2c] sm:$0xf]
          %v4932 = vld [vmem:[%s0 + $0x30] sm:$0xf]
          %v4933 = vld [vmem:[%s0 + $0x34] sm:$0xf]
          %v4934 = vld [vmem:[%s0 + $0x38] sm:$0xf]
          %v4935 = vld [vmem:[%s0 + $0x3c] sm:$0xf]
          %v4936 = vunpack.c.l.bf16 %v4920
          %v4937 = vunpack.c.l.bf16 %v4921
          %v4938 = vunpack.c.l.bf16 %v4922
          %v4939 = vunpack.c.l.bf16 %v4923
          %v4940 = vunpack.c.l.bf16 %v4924
          %v4941 = vunpack.c.l.bf16 %v4925
          %v4942 = vunpack.c.l.bf16 %v4926
          %v4943 = vunpack.c.l.bf16 %v4927
          %v4944 = vunpack.c.l.bf16 %v4928
          %v4945 = vunpack.c.l.bf16 %v4929
          %v4946 = vunpack.c.l.bf16 %v4930
          %v4947 = vunpack.c.l.bf16 %v4931
          %v4948 = vunpack.c.l.bf16 %v4932
          %v4949 = vunpack.c.l.bf16 %v4933
          %v4950 = vunpack.c.l.bf16 %v4934
          %v4951 = vunpack.c.l.bf16 %v4935
          %v4952 = vsel %vm4904, 1, 0
          %v4953 = vsel %vm4905, 1, 0
          %v4954 = vsel %vm4906, 1, 0
          %v4955 = vsel %vm4907, 1, 0
          %v4956 = vsel %vm4908, 1, 0
          %v4957 = vsel %vm4909, 1, 0
          %v4958 = vsel %vm4910, 1, 0
          %v4959 = vsel %vm4911, 1, 0
          %v4960 = vsel %vm4912, 1, 0
          %v4961 = vsel %vm4913, 1, 0
          %v4962 = vsel %vm4914, 1, 0
          %v4963 = vsel %vm4915, 1, 0
          %v4964 = vsel %vm4916, 1, 0
          %v4965 = vsel %vm4917, 1, 0
          %v4966 = vsel %vm4918, 1, 0
          %v4967 = vsel %vm4919, 1, 0
          %4968 = vset.pattern.permute.xlu0 0
          %4969 = vperm.xlu0 %4968, %v4952
          %v4970 = vpop.permute.xlu0 %4969
          %4971 = vset.pattern.permute.xlu0 0
          %4972 = vperm.xlu0 %4971, %v4953
          %v4973 = vpop.permute.xlu0 %4972
          %4974 = vset.pattern.permute.xlu0 0
          %4975 = vperm.xlu0 %4974, %v4954
          %v4976 = vpop.permute.xlu0 %4975
          %4977 = vset.pattern.permute.xlu0 0
          %4978 = vperm.xlu0 %4977, %v4955
          %v4979 = vpop.permute.xlu0 %4978
          %4980 = vset.pattern.permute.xlu0 0
          %4981 = vperm.xlu0 %4980, %v4956
          %v4982 = vpop.permute.xlu0 %4981
          %4983 = vset.pattern.permute.xlu0 0
          %4984 = vperm.xlu0 %4983, %v4957
          %v4985 = vpop.permute.xlu0 %4984
          %4986 = vset.pattern.permute.xlu0 0
          %4987 = vperm.xlu0 %4986, %v4958
          %v4988 = vpop.permute.xlu0 %4987
          %4989 = vset.pattern.permute.xlu0 0
          %4990 = vperm.xlu0 %4989, %v4959
          %v4991 = vpop.permute.xlu0 %4990
          %4992 = vset.pattern.permute.xlu0 0
          %4993 = vperm.xlu0 %4992, %v4960
          %v4994 = vpop.permute.xlu0 %4993
          %4995 = vset.pattern.permute.xlu0 0
          %4996 = vperm.xlu0 %4995, %v4961
          %v4997 = vpop.permute.xlu0 %4996
          %4998 = vset.pattern.permute.xlu0 0
          %4999 = vperm.xlu0 %4998, %v4962
          %v5000 = vpop.permute.xlu0 %4999
          %5001 = vset.pattern.permute.xlu0 0
          %5002 = vperm.xlu0 %5001, %v4963
          %v5003 = vpop.permute.xlu0 %5002
          %5004 = vset.pattern.permute.xlu0 0
          %5005 = vperm.xlu0 %5004, %v4964
          %v5006 = vpop.permute.xlu0 %5005
          %5007 = vset.pattern.permute.xlu0 0
          %5008 = vperm.xlu0 %5007, %v4965
          %v5009 = vpop.permute.xlu0 %5008
          %5010 = vset.pattern.permute.xlu0 0
          %5011 = vperm.xlu0 %5010, %v4966
          %v5012 = vpop.permute.xlu0 %5011
          %5013 = vset.pattern.permute.xlu0 0
          %5014 = vperm.xlu0 %5013, %v4967
          %v5015 = vpop.permute.xlu0 %5014
          %vm5016 = vcmp.eq.s32.totalorder %v4970, 1
          %vm5017 = vcmp.eq.s32.totalorder %v4973, 1
          %vm5018 = vcmp.eq.s32.totalorder %v4976, 1
          %vm5019 = vcmp.eq.s32.totalorder %v4979, 1
          %vm5020 = vcmp.eq.s32.totalorder %v4982, 1
          %vm5021 = vcmp.eq.s32.totalorder %v4985, 1
          %vm5022 = vcmp.eq.s32.totalorder %v4988, 1
          %vm5023 = vcmp.eq.s32.totalorder %v4991, 1
          %vm5024 = vcmp.eq.s32.totalorder %v4994, 1
          %vm5025 = vcmp.eq.s32.totalorder %v4997, 1
          %vm5026 = vcmp.eq.s32.totalorder %v5000, 1
          %vm5027 = vcmp.eq.s32.totalorder %v5003, 1
          %vm5028 = vcmp.eq.s32.totalorder %v5006, 1
          %vm5029 = vcmp.eq.s32.totalorder %v5009, 1
          %vm5030 = vcmp.eq.s32.totalorder %v5012, 1
          %vm5031 = vcmp.eq.s32.totalorder %v5015, 1
          %v5032 = vsel %vm5016, %v4872, %v4936
          %v5033 = vsel %vm5017, %v4873, %v4937
          %v5034 = vsel %vm5018, %v4874, %v4938
          %v5035 = vsel %vm5019, %v4875, %v4939
          %v5036 = vsel %vm5020, %v4876, %v4940
          %v5037 = vsel %vm5021, %v4877, %v4941
          %v5038 = vsel %vm5022, %v4878, %v4942
          %v5039 = vsel %vm5023, %v4879, %v4943
          %v5040 = vsel %vm5024, %v4880, %v4944
          %v5041 = vsel %vm5025, %v4881, %v4945
          %v5042 = vsel %vm5026, %v4882, %v4946
          %v5043 = vsel %vm5027, %v4883, %v4947
          %v5044 = vsel %vm5028, %v4884, %v4948
          %v5045 = vsel %vm5029, %v4885, %v4949
          %v5046 = vsel %vm5030, %v4886, %v4950
          %v5047 = vsel %vm5031, %v4887, %v4951
          %v5048 = vld [vmem:[%s11] sm:$0x1]
          %v5050 = vlaneseq
          %v5051 = vshrl.u32 %v5050, 7
          %v5052 = vsub.s32 0, %v5051
          %v5053 = vrot.slane %v5048, %v5052
          %v5055 = vmul.f32 %v5032, %v5053
          %v5056 = vmul.f32 %v5033, %v5053
          %v5057 = vmul.f32 %v5034, %v5053
          %v5058 = vmul.f32 %v5035, %v5053
          %v5059 = vmul.f32 %v5036, %v5053
          %v5060 = vmul.f32 %v5037, %v5053
          %v5061 = vmul.f32 %v5038, %v5053
          %v5062 = vmul.f32 %v5039, %v5053
          %v5063 = vmul.f32 %v5040, %v5053
          %v5064 = vmul.f32 %v5041, %v5053
          %v5065 = vmul.f32 %v5042, %v5053
          %v5066 = vmul.f32 %v5043, %v5053
          %v5067 = vmul.f32 %v5044, %v5053
          %v5068 = vmul.f32 %v5045, %v5053
          %v5069 = vmul.f32 %v5046, %v5053
          %v5070 = vmul.f32 %v5047, %v5053
          %v5071 = vld [vmem:[%s12] sm:$0x1]
          %v5073 = vlaneseq
          %v5074 = vshrl.u32 %v5073, 7
          %v5075 = vsub.s32 0, %v5074
          %v5076 = vrot.slane %v5071, %v5075
          %v5078 = vadd.f32 %v5055, %v5076
          %v5079 = vadd.f32 %v5056, %v5076
          %v5080 = vadd.f32 %v5057, %v5076
          %v5081 = vadd.f32 %v5058, %v5076
          %v5082 = vadd.f32 %v5059, %v5076
          %v5083 = vadd.f32 %v5060, %v5076
          %v5084 = vadd.f32 %v5061, %v5076
          %v5085 = vadd.f32 %v5062, %v5076
          %v5086 = vadd.f32 %v5063, %v5076
          %v5087 = vadd.f32 %v5064, %v5076
          %v5088 = vadd.f32 %v5065, %v5076
          %v5089 = vadd.f32 %v5066, %v5076
          %v5090 = vadd.f32 %v5067, %v5076
          %v5091 = vadd.f32 %v5068, %v5076
          %v5092 = vadd.f32 %v5069, %v5076
          %v5093 = vadd.f32 %v5070, %v5076
          %v5094 = vmax.f32 %v5078, 0.0
          %v5095 = vmax.f32 %v5079, 0.0
          %v5096 = vmax.f32 %v5080, 0.0
          %v5097 = vmax.f32 %v5081, 0.0
          %v5098 = vmax.f32 %v5082, 0.0
          %v5099 = vmax.f32 %v5083, 0.0
          %v5100 = vmax.f32 %v5084, 0.0
          %v5101 = vmax.f32 %v5085, 0.0
          %v5102 = vmax.f32 %v5086, 0.0
          %v5103 = vmax.f32 %v5087, 0.0
          %v5104 = vmax.f32 %v5088, 0.0
          %v5105 = vmax.f32 %v5089, 0.0
          %v5106 = vmax.f32 %v5090, 0.0
          %v5107 = vmax.f32 %v5091, 0.0
          %v5108 = vmax.f32 %v5092, 0.0
          %v5109 = vmax.f32 %v5093, 0.0
          %v5110 = vadd.f32 %v4936, %v5094
          %v5111 = vadd.f32 %v4937, %v5095
          %v5112 = vadd.f32 %v4938, %v5096
          %v5113 = vadd.f32 %v4939, %v5097
          %v5114 = vadd.f32 %v4940, %v5098
          %v5115 = vadd.f32 %v4941, %v5099
          %v5116 = vadd.f32 %v4942, %v5100
          %v5117 = vadd.f32 %v4943, %v5101
          %v5118 = vadd.f32 %v4944, %v5102
          %v5119 = vadd.f32 %v4945, %v5103
          %v5120 = vadd.f32 %v4946, %v5104
          %v5121 = vadd.f32 %v4947, %v5105
          %v5122 = vadd.f32 %v4948, %v5106
          %v5123 = vadd.f32 %v4949, %v5107
          %v5124 = vadd.f32 %v4950, %v5108
          %v5125 = vadd.f32 %v4951, %v5109
          %5126 = vst [vmem:[#allocation5] sm:$0xff] %v5110
          %5127 = vst [vmem:[#allocation5 + $0x8] sm:$0xff] %v5111
          %5128 = vst [vmem:[#allocation5 + $0x10] sm:$0xff] %v5112
          %5129 = vst [vmem:[#allocation5 + $0x18] sm:$0xff] %v5113
          %5130 = vst [vmem:[#allocation5 + $0x20] sm:$0xff] %v5114
          %5131 = vst [vmem:[#allocation5 + $0x28] sm:$0xff] %v5115
          %5132 = vst [vmem:[#allocation5 + $0x30] sm:$0xff] %v5116
          %5133 = vst [vmem:[#allocation5 + $0x38] sm:$0xff] %v5117
          %5134 = vst [vmem:[#allocation5 + $0x40] sm:$0xff] %v5118
          %5135 = vst [vmem:[#allocation5 + $0x48] sm:$0xff] %v5119
          %5136 = vst [vmem:[#allocation5 + $0x50] sm:$0xff] %v5120
          %5137 = vst [vmem:[#allocation5 + $0x58] sm:$0xff] %v5121
          %5138 = vst [vmem:[#allocation5 + $0x60] sm:$0xff] %v5122
          %5139 = vst [vmem:[#allocation5 + $0x68] sm:$0xff] %v5123
          %5140 = vst [vmem:[#allocation5 + $0x70] sm:$0xff] %v5124
          %5141 = vst [vmem:[#allocation5 + $0x78] sm:$0xff] %v5125
        $region126: #{tpu_custom_call.1} parent=113 // pred_fallthru
          _
        %s5142 = sand.u32 %s401, 1
        %s5143 = scalar_lea.sflag [#allocation8], %s5142
        %s5144 = sand.u32 %s401, 1
        %s5145 = smul.addr %s5144, 256
        %s5146 = scalar_lea.vmem [#allocation7], %s5145
        // Predicated region
        $region127: #{tpu_custom_call.1} parent=113 // pred_check
          %p5147 = pneg %p385
        $region128: #{tpu_custom_call.1} parent=113 // pred_check_branch
          %5149 = sbr.rel (%p5147) target = $region130
        $region129: #{tpu_custom_call.1} parent=113 // pred_region
          %s5151 = ssub.s32 2048, 2048
          %5152 = vsyncadd [#allocation6], %s5151
          %s5153 = sshll.u32 [#allocation5], 4
          %s5154 = int_to_ptr.vmem [resolvable:$true] %s5153
          %5159 = dma.vmem_to_hbm [thread:$0]  %s5154, 2048, %s15, [#allocation6], 128, 128, 8
        $region130: #{tpu_custom_call.1} parent=113 // pred_fallthru
          _
        // Predicated region
        $region131: #{tpu_custom_call.1} parent=113 // pred_check
          %p5160 = pneg %p411
        $region132: #{tpu_custom_call.1} parent=113 // pred_check_branch
          %5162 = sbr.rel (%p5160) target = $region134
        $region133: #{tpu_custom_call.1} parent=113 // pred_region
          %s5163 = smul.u32 32, %s32
          %s5165 = ssub.s32 4096, 4096
          %5166 = vsyncadd %s5143, %s5165
          %s5167 = smul.addr %s5163, 128
          %s5168 = scalar_lea.hbm %s16, %s5167
          %s5169 = sshll.u32 %s5146, 4
          %s5170 = int_to_ptr.vmem [resolvable:$true] %s5169
          %5175 = dma.vmem_to_hbm [thread:$0]  %s5170, 4096, %s5168, %s5143, 128, 128, 8
        $region134: #{tpu_custom_call.1} parent=113 // pred_fallthru
          _
        // Predicated region
        $region135: #{tpu_custom_call.1} parent=113 // pred_check
          %p5176 = pneg %p385
        $region136: #{tpu_custom_call.1} parent=113 // pred_check_branch
          %5178 = sbr.rel (%p5176) target = $region138
        $region137: #{tpu_custom_call.1} parent=113 // pred_region
          %5179 = dma.done [#allocation6], 2048
        $region138: #{tpu_custom_call.1} parent=113 // pred_fallthru
          _
      $region114: #{tpu_custom_call.1} parent=5 // pred_fallthru
        _
      %p5180 = scmp.le.s32.totalorder 2, %s27
      // Predicated region
      $region139: #{tpu_custom_call.1} parent=5 // pred_check
        %p5181 = pneg %p5180
      $region140: #{tpu_custom_call.1} parent=5 // pred_check_branch
        %5183 = sbr.rel (%p5181) target = $region142
      $region141: #{tpu_custom_call.1} parent=5 // pred_region
        %s5184 = ssub.s32 %s27, 2
        // Predicated region
        $region143: #{tpu_custom_call.1} parent=141 // pred_check
          %p5185 = pneg %p417
        $region144: #{tpu_custom_call.1} parent=141 // pred_check_branch
          %5187 = sbr.rel (%p5185) target = $region146
        $region145: #{tpu_custom_call.1} parent=141 // pred_region
          %s5188 = sand.u32 %s402, 1
          %s5189 = scalar_lea.sflag [#allocation8], %s5188
          %s5190 = sand.u32 %s402, 1
          %s5191 = smul.addr %s5190, 256
          %s5192 = scalar_lea.vmem [#allocation7], %s5191
          %5193 = dma.done %s5189, 4096
        $region146: #{tpu_custom_call.1} parent=141 // pred_fallthru
          _
      $region142: #{tpu_custom_call.1} parent=5 // pred_fallthru
        _
    $region6: #{tpu_custom_call.1} parent=1 // loop_footer
      %s31 = sadd.s32 1, %s27
    $region7: #{tpu_custom_call.1} parent=1 // loop_footer_branch
      %26 = sbr.rel target = $region3
    $region8: #{tpu_custom_call.1} parent=1 // loop_exit
      _
    %5194 = vsyncpa [#allocation6], 1
    %s5195 = scalar_lea.sflag [#allocation6], 1
    %5196 = vsyncpa %s5195, 1
    %5197 = vsyncpa [#allocation8], 1
    %s5198 = scalar_lea.sflag [#allocation8], 1
    %5199 = vsyncpa %s5198, 1

</llo_original>
